<compile_context>
chip_gen: v7x
topology: tpu7x:2x2x1
jax: 0.10.0
libtpu: 0.0.40
codegen_flags: <defaults>
</compile_context>

<pallas_src>
import jax
import jax.numpy as jnp
from jax.experimental import pallas as pl
from jax.experimental.pallas import tpu as pltpu


def make_fused_kernel(*, T, Bp, E, H, O, n_layers, n_seq):
    """Builds the fused kernel body (all shapes static via closure)."""
    H2, H3, H4 = 2 * H, 3 * H, 4 * H

    def kernel(*refs):
        # ---- parse the flat ref list (inputs, then output, then scratch) ----
        idx = 0
        mask_ref = refs[idx]; idx += 1            # (T, 2*Bp, 1) f32: rows [0:Bp]=fwd valid@t,
        x_ref = refs[idx]; idx += 1               #                   rows [Bp:]=bwd valid@T-1-t
        layers = []                               # x: (T*Bp, E) bf16 time-major embeddings
        for _ in range(n_layers):
            w_ih = refs[idx]; idx += 1            # (in, 8H) bf16, cols [0:4H]=fwd, [4H:8H]=bwd,
            b_ih = refs[idx]; idx += 1            # (1, 8H) f32     gate order [i,f,o,g]
            w_hh_f = refs[idx]; idx += 1          # (H, 4H) f32
            w_hh_b = refs[idx]; idx += 1          # (H, 4H) f32
            layers.append((w_ih, b_ih, w_hh_f, w_hh_b))
        fcw_f = refs[idx]; fcw_b = refs[idx + 1]; fcb = refs[idx + 2]; idx += 3
        out_ref = refs[idx]; idx += 1             # (Bp, O)
        gx_scr = refs[idx]; idx += 1              # (T*Bp, 8H) f32 hoisted input projections
        seq_scrs = list(refs[idx:idx + n_seq])    # (T*Bp, 2H) f32 inter-layer sequences

        def run_layer(l, in_ref, out_scr):
            w_ih, b_ih, w_hh_f, w_hh_b = layers[l]
            # Hoisted whole-sequence input projection: ONE (T*Bp,in)@(in,8H) bf16 matmul.
            # (astype is a no-op for layer 0; for layers>0 it feeds bf16 to the MXU
            #  while the sequence scratch itself stays f32.)
            gx_scr[...] = (jnp.dot(in_ref[...].astype(jnp.bfloat16), w_ih[...],
                                   preferred_element_type=jnp.float32)
                           + b_ih[...])
            whf = w_hh_f[...]                     # hoist weight loads out of the loop
            whb = w_hh_b[...]

            # Directions stacked on sublanes: rows [0:Bp]=fwd, [Bp:2Bp]=bwd.
            h = jnp.zeros((2 * Bp, H), jnp.float32)
            c = jnp.zeros((2 * Bp, H), jnp.float32)
            for t in range(T):                    # static unroll (T is small)
                tr = T - 1 - t
                rec_f = jnp.dot(h[:Bp], whf, preferred_element_type=jnp.float32)
                rec_b = jnp.dot(h[Bp:], whb, preferred_element_type=jnp.float32)
                gates = jnp.concatenate(
                    [gx_scr[t * Bp:(t + 1) * Bp, :H4] + rec_f,
                     gx_scr[tr * Bp:(tr + 1) * Bp, H4:] + rec_b], axis=0)  # (2Bp, 4H)
                m = jnp.broadcast_to(mask_ref[t], (2 * Bp, H))  # one broadcast, reused
                keep = 1.0 - m
                sig = jax.nn.sigmoid(gates[:, :H3])             # [i | f | o] in one pass
                i_g = sig[:, :H]
                f_g = sig[:, H:H2]
                o_g = sig[:, H2:H3]
                g_g = jnp.tanh(gates[:, H3:])
                c_new = f_g * c + i_g * g_g
                h_new = o_g * jnp.tanh(c_new)
                o_t = m * h_new                   # padded positions -> 0 (pad_packed)
                h = o_t + keep * h                # freeze state past valid length
                c = m * c_new + keep * c
                if out_scr is not None:           # last layer's sequence is unused
                    out_scr[t * Bp:(t + 1) * Bp, :H] = o_t[:Bp]
                    out_scr[tr * Bp:(tr + 1) * Bp, H:] = o_t[Bp:]
            return h[:Bp], h[Bp:]

        in_ref = x_ref
        h_f = h_b = None
        for l in range(n_layers):
            last = l == n_layers - 1
            out_scr = None if last else seq_scrs[l % max(n_seq, 1)]
            h_f, h_b = run_layer(l, in_ref, out_scr)
            if not last:
                in_ref = out_scr
            # TODO(synk): inter-layer dropout skipped (inference / model.eval() semantics).

        # hidden = cat(hidden[-2], hidden[-1]); fc split row-wise so no lane concat needed.
        logits = (jnp.dot(h_f, fcw_f[...], preferred_element_type=jnp.float32)
                  + jnp.dot(h_b, fcw_b[...], preferred_element_type=jnp.float32)
                  + fcb[...])
        out_ref[...] = jax.nn.sigmoid(logits)

    return kernel


def text_classifier_lstm_forward(params, x_tokens, lengths):
    """Equivalent of TextClassifierLSTM.forward (eval mode)."""
    B, T = x_tokens.shape
    emb_tbl = params["embedding"]
    E = emb_tbl.shape[1]
    H = params["lstm"][0]["fwd"]["w_hh"].shape[0]
    O = params["fc_w"].shape[1]
    n_layers = len(params["lstm"])
    Bp = max(8, ((B + 7) // 8) * 8)                    # sublane-pad the batch
    TB = T * Bp

    def perm_gates(w):
        # Column permutation [i, f, g, o] -> [i, f, o, g] so sigmoid covers [:, :3H].
        return jnp.concatenate(
            [w[:, :H], w[:, H:2 * H], w[:, 3 * H:4 * H], w[:, 2 * H:3 * H]], axis=1)

    # TODO(synk): embedding gather + layout glue stays in plain JAX (no clean win from
    # a Pallas gather at this scale); only the dense recurrent compute is in-kernel.
    emb = emb_tbl[x_tokens]                            # (B, T, E)
    seq = jnp.transpose(emb, (1, 0, 2))                # (T, B, E) time-major
    seq = jnp.pad(seq, ((0, 0), (0, Bp - B), (0, 0)))  # padded rows: length 0 -> inert
    x2d = seq.reshape(TB, E).astype(jnp.bfloat16)      # bf16 MXU operand

    lens = jnp.pad(lengths.astype(jnp.int32), (0, Bp - B))        # (Bp,)
    t_idx = jnp.arange(T, dtype=jnp.int32)
    mf = (lens[None, :] > t_idx[:, None]).astype(jnp.float32)     # (T, Bp) fwd valid@t
    mb = mf[::-1]                                                 # (T, Bp) bwd valid@T-1-t
    masks = jnp.concatenate([mf, mb], axis=1).reshape(T, 2 * Bp, 1)

    args = [masks, x2d]
    for layer in params["lstm"]:
        w_ih = jnp.concatenate([perm_gates(layer["fwd"]["w_ih"]),
                                perm_gates(layer["bwd"]["w_ih"])], axis=1)   # (in, 8H)
        b_ih = jnp.concatenate([perm_gates(layer["fwd"]["b"]),
                                perm_gates(layer["bwd"]["b"])], axis=1)      # (1, 8H)
        args += [w_ih.astype(jnp.bfloat16),
                 b_ih.astype(jnp.float32),
                 perm_gates(layer["fwd"]["w_hh"]).astype(jnp.float32),
                 perm_gates(layer["bwd"]["w_hh"]).astype(jnp.float32)]
    args.append(params["fc_w"][:H].astype(jnp.float32))            # fwd-hidden rows of fc
    args.append(params["fc_w"][H:].astype(jnp.float32))            # bwd-hidden rows of fc
    args.append(params["fc_b"].astype(jnp.float32))                # (1, O)

    n_seq = 0 if n_layers == 1 else (1 if n_layers == 2 else 2)
    scratch = [pltpu.VMEM((TB, 8 * H), jnp.float32)]               # fused gate projections
    for _ in range(n_seq):                                         # ping-pong layer outputs
        scratch.append(pltpu.VMEM((TB, 2 * H), jnp.float32))

    kernel = make_fused_kernel(T=T, Bp=Bp, E=E, H=H, O=O,
                               n_layers=n_layers, n_seq=n_seq)
    out = pl.pallas_call(
        kernel,
        out_shape=jax.ShapeDtypeStruct((Bp, O), jnp.float32),
        scratch_shapes=scratch,
        compiler_params=pltpu.CompilerParams(vmem_limit_bytes=32 * 1024 * 1024),
    )(*args)
    return out[:B, 0]                                  # squeeze(1) -> (B,)


def init_params(key, vocab_size, embedding_dim, hidden_dim, output_dim, n_layers):
    keys = jax.random.split(key, 2 + n_layers * 2 * 4 + 2)
    ki = iter(keys)
    scale = 0.1
    params = {}
    params["embedding"] = scale * jax.random.normal(
        next(ki), (vocab_size, embedding_dim), jnp.float32)
    layers = []
    for l in range(n_layers):
        in_dim = embedding_dim if l == 0 else 2 * hidden_dim
        layer = {}
        for d in ("fwd", "bwd"):
            w_ih = scale * jax.random.normal(
                next(ki), (in_dim, 4 * hidden_dim), jnp.float32)
            w_hh = scale * jax.random.normal(
                next(ki), (hidden_dim, 4 * hidden_dim), jnp.float32)
            b_ih = scale * jax.random.normal(next(ki), (1, 4 * hidden_dim), jnp.float32)
            b_hh = scale * jax.random.normal(next(ki), (1, 4 * hidden_dim), jnp.float32)
            layer[d] = {"w_ih": w_ih, "w_hh": w_hh, "b": b_ih + b_hh}
        layers.append(layer)
    params["lstm"] = layers
    params["fc_w"] = scale * jax.random.normal(
        next(ki), (2 * hidden_dim, output_dim), jnp.float32)
    params["fc_b"] = scale * jax.random.normal(next(ki), (1, output_dim), jnp.float32)
    return params


if __name__ == "__main__":
    vocab_size = 50
    embedding_dim = 16
    hidden_dim = 32
    output_dim = 1
    n_layers = 2
    B, T = 2, 8

    key = jax.random.PRNGKey(0)
    k_param, k_tok = jax.random.split(key)
    params = init_params(k_param, vocab_size, embedding_dim, hidden_dim,
                         output_dim, n_layers)

    x_tokens = jax.random.randint(k_tok, (B, T), 0, vocab_size, dtype=jnp.int32)
    lengths = jnp.array([8, 5], dtype=jnp.int32)   # second sequence is padded

    out = text_classifier_lstm_forward(params, x_tokens, lengths)
    out = jax.block_until_ready(out)
    assert out.shape == (B,)
    assert bool(jnp.all(jnp.isfinite(out)))
    print("KERNEL_OK")
</pallas_src>

<mosaic_0001>
module attributes {stable_mosaic.version = 11 : i64} {
  func.func @kernel(%arg0: memref<8x16x1xf32, #tpu.memory_space<vmem>>, %arg1: memref<64x16xbf16, #tpu.memory_space<vmem>>, %arg2: memref<16x256xbf16, #tpu.memory_space<vmem>>, %arg3: memref<1x256xf32, #tpu.memory_space<vmem>>, %arg4: memref<32x128xf32, #tpu.memory_space<vmem>>, %arg5: memref<32x128xf32, #tpu.memory_space<vmem>>, %arg6: memref<64x256xbf16, #tpu.memory_space<vmem>>, %arg7: memref<1x256xf32, #tpu.memory_space<vmem>>, %arg8: memref<32x128xf32, #tpu.memory_space<vmem>>, %arg9: memref<32x128xf32, #tpu.memory_space<vmem>>, %arg10: memref<32x1xf32, #tpu.memory_space<vmem>>, %arg11: memref<32x1xf32, #tpu.memory_space<vmem>>, %arg12: memref<1x1xf32, #tpu.memory_space<vmem>>, %arg13: memref<8x1xf32, #tpu.memory_space<vmem>>, %arg14: memref<64x256xf32, #tpu.memory_space<vmem>>, %arg15: memref<64x64xf32, #tpu.memory_space<vmem>>) attributes {dimension_semantics = [], scalar_prefetch = 0 : i64, scratch_operands = 2 : i64, tpu.core_type = #tpu.core_type<tc>} {
    %c0 = arith.constant 0 : index
    %c0_0 = arith.constant 0 : index
    %0 = vector.load %arg1[%c0, %c0_0] : memref<64x16xbf16, #tpu.memory_space<vmem>>, vector<64x16xbf16>
    %c0_1 = arith.constant 0 : index
    %c0_2 = arith.constant 0 : index
    %1 = vector.load %arg2[%c0_1, %c0_2] : memref<16x256xbf16, #tpu.memory_space<vmem>>, vector<16x256xbf16>
    %cst = arith.constant dense<0.000000e+00> : vector<64x256xf32>
    %2 = tpu.matmul %0, %1, %cst {dimension_numbers = #tpu.dot_dimension_numbers<[1], [0], [0], [1], [0, 0, 1, 1], [], []>} : vector<64x16xbf16>, vector<16x256xbf16>, vector<64x256xf32> -> vector<64x256xf32>
    %c0_3 = arith.constant 0 : index
    %c0_4 = arith.constant 0 : index
    %3 = vector.load %arg3[%c0_3, %c0_4] : memref<1x256xf32, #tpu.memory_space<vmem>>, vector<1x256xf32>
    %4 = vector.broadcast %3 : vector<1x256xf32> to vector<64x256xf32>
    %5 = arith.addf %2, %4 : vector<64x256xf32>
    %c0_5 = arith.constant 0 : index
    %c0_6 = arith.constant 0 : index
    %6 = vector.load %arg14[%c0_5, %c0_6] : memref<64x256xf32, #tpu.memory_space<vmem>>, vector<64x256xf32>
    tpu.vector_store %arg14[%c0_5, %c0_6], %5 {strides = array<i32>} : memref<64x256xf32, #tpu.memory_space<vmem>>, vector<64x256xf32>,
    %c0_7 = arith.constant 0 : index
    %c0_8 = arith.constant 0 : index
    %7 = vector.load %arg4[%c0_7, %c0_8] : memref<32x128xf32, #tpu.memory_space<vmem>>, vector<32x128xf32>
    %c0_9 = arith.constant 0 : index
    %c0_10 = arith.constant 0 : index
    %8 = vector.load %arg5[%c0_9, %c0_10] : memref<32x128xf32, #tpu.memory_space<vmem>>, vector<32x128xf32>
    %cst_11 = arith.constant 0.000000e+00 : f32
    %9 = vector.broadcast %cst_11 : f32 to vector<16x32xf32>
    %cst_12 = arith.constant 0.000000e+00 : f32
    %10 = vector.broadcast %cst_12 : f32 to vector<16x32xf32>
    %11 = vector.extract_strided_slice %9 {offsets = [0, 0], sizes = [8, 32], strides = [1, 1]} : vector<16x32xf32> to vector<8x32xf32>
    %cst_13 = arith.constant dense<0.000000e+00> : vector<8x128xf32>
    %12 = tpu.matmul %11, %7, %cst_13 {dimension_numbers = #tpu.dot_dimension_numbers<[1], [0], [0], [1], [0, 0, 1, 1], [], []>} : vector<8x32xf32>, vector<32x128xf32>, vector<8x128xf32> -> vector<8x128xf32>
    %13 = vector.extract_strided_slice %9 {offsets = [8, 0], sizes = [8, 32], strides = [1, 1]} : vector<16x32xf32> to vector<8x32xf32>
    %cst_14 = arith.constant dense<0.000000e+00> : vector<8x128xf32>
    %14 = tpu.matmul %13, %8, %cst_14 {dimension_numbers = #tpu.dot_dimension_numbers<[1], [0], [0], [1], [0, 0, 1, 1], [], []>} : vector<8x32xf32>, vector<32x128xf32>, vector<8x128xf32> -> vector<8x128xf32>
    %c0_15 = arith.constant 0 : index
    %c0_16 = arith.constant 0 : index
    %15 = vector.load %arg14[%c0_15, %c0_16] : memref<64x256xf32, #tpu.memory_space<vmem>>, vector<8x128xf32>
    %16 = arith.addf %15, %12 : vector<8x128xf32>
    %c56 = arith.constant 56 : index
    %c128 = arith.constant 128 : index
    %17 = vector.load %arg14[%c56, %c128] : memref<64x256xf32, #tpu.memory_space<vmem>>, vector<8x128xf32>
    %18 = arith.addf %17, %14 : vector<8x128xf32>
    %19 = tpu.concatenate %16, %18 in 0 : vector<8x128xf32>, vector<8x128xf32> -> vector<16x128xf32>
    %c0_17 = arith.constant 0 : index
    %c0_18 = arith.constant 0 : index
    %c0_19 = arith.constant 0 : index
    %20 = vector.load %arg0[%c0_17, %c0_18, %c0_19] : memref<8x16x1xf32, #tpu.memory_space<vmem>>, vector<1x16x1xf32>
    %21 = vector.shape_cast %20 : vector<1x16x1xf32> to vector<16x1xf32>
    %22 = vector.shape_cast %21 : vector<16x1xf32> to vector<16x1xf32>
    %23 = vector.broadcast %22 : vector<16x1xf32> to vector<16x32xf32>
    %cst_20 = arith.constant 1.000000e+00 : f32
    %24 = vector.broadcast %cst_20 : f32 to vector<16x32xf32>
    %25 = arith.subf %24, %23 : vector<16x32xf32>
    %26 = vector.extract_strided_slice %19 {offsets = [0, 0], sizes = [16, 96], strides = [1, 1]} : vector<16x128xf32> to vector<16x96xf32>
    %27 = arith.negf %26 : vector<16x96xf32>
    %28 = math.exp %27 : vector<16x96xf32>
    %cst_21 = arith.constant 1.000000e+00 : f32
    %29 = vector.broadcast %cst_21 : f32 to vector<16x96xf32>
    %30 = arith.addf %29, %28 : vector<16x96xf32>
    %31 = arith.divf %29, %30 : vector<16x96xf32>
    %32 = vector.extract_strided_slice %31 {offsets = [0, 0], sizes = [16, 32], strides = [1, 1]} : vector<16x96xf32> to vector<16x32xf32>
    %33 = vector.extract_strided_slice %31 {offsets = [0, 32], sizes = [16, 32], strides = [1, 1]} : vector<16x96xf32> to vector<16x32xf32>
    %34 = vector.extract_strided_slice %31 {offsets = [0, 64], sizes = [16, 32], strides = [1, 1]} : vector<16x96xf32> to vector<16x32xf32>
    %35 = vector.extract_strided_slice %19 {offsets = [0, 96], sizes = [16, 32], strides = [1, 1]} : vector<16x128xf32> to vector<16x32xf32>
    %36 = math.tanh %35 : vector<16x32xf32>
    %37 = arith.mulf %33, %10 : vector<16x32xf32>
    %38 = arith.mulf %32, %36 : vector<16x32xf32>
    %39 = arith.addf %37, %38 : vector<16x32xf32>
    %40 = math.tanh %39 : vector<16x32xf32>
    %41 = arith.mulf %34, %40 : vector<16x32xf32>
    %42 = arith.mulf %23, %41 : vector<16x32xf32>
    %43 = arith.mulf %25, %9 : vector<16x32xf32>
    %44 = arith.addf %42, %43 : vector<16x32xf32>
    %45 = arith.mulf %23, %39 : vector<16x32xf32>
    %46 = arith.mulf %25, %10 : vector<16x32xf32>
    %47 = arith.addf %45, %46 : vector<16x32xf32>
    %48 = vector.extract_strided_slice %42 {offsets = [0, 0], sizes = [8, 32], strides = [1, 1]} : vector<16x32xf32> to vector<8x32xf32>
    %c0_22 = arith.constant 0 : index
    %c0_23 = arith.constant 0 : index
    %49 = vector.load %arg15[%c0_22, %c0_23] : memref<64x64xf32, #tpu.memory_space<vmem>>, vector<8x32xf32>
    tpu.vector_store %arg15[%c0_22, %c0_23], %48 {strides = array<i32>} : memref<64x64xf32, #tpu.memory_space<vmem>>, vector<8x32xf32>,
    %50 = vector.extract_strided_slice %42 {offsets = [8, 0], sizes = [8, 32], strides = [1, 1]} : vector<16x32xf32> to vector<8x32xf32>
    %c56_24 = arith.constant 56 : index
    %c32 = arith.constant 32 : index
    %51 = vector.load %arg15[%c56_24, %c32] : memref<64x64xf32, #tpu.memory_space<vmem>>, vector<8x32xf32>
    tpu.vector_store %arg15[%c56_24, %c32], %50 {strides = array<i32>} : memref<64x64xf32, #tpu.memory_space<vmem>>, vector<8x32xf32>,
    %52 = vector.extract_strided_slice %44 {offsets = [0, 0], sizes = [8, 32], strides = [1, 1]} : vector<16x32xf32> to vector<8x32xf32>
    %cst_25 = arith.constant dense<0.000000e+00> : vector<8x128xf32>
    %53 = tpu.matmul %52, %7, %cst_25 {dimension_numbers = #tpu.dot_dimension_numbers<[1], [0], [0], [1], [0, 0, 1, 1], [], []>} : vector<8x32xf32>, vector<32x128xf32>, vector<8x128xf32> -> vector<8x128xf32>
    %54 = vector.extract_strided_slice %44 {offsets = [8, 0], sizes = [8, 32], strides = [1, 1]} : vector<16x32xf32> to vector<8x32xf32>
    %cst_26 = arith.constant dense<0.000000e+00> : vector<8x128xf32>
    %55 = tpu.matmul %54, %8, %cst_26 {dimension_numbers = #tpu.dot_dimension_numbers<[1], [0], [0], [1], [0, 0, 1, 1], [], []>} : vector<8x32xf32>, vector<32x128xf32>, vector<8x128xf32> -> vector<8x128xf32>
    %c8 = arith.constant 8 : index
    %c0_27 = arith.constant 0 : index
    %56 = vector.load %arg14[%c8, %c0_27] : memref<64x256xf32, #tpu.memory_space<vmem>>, vector<8x128xf32>
    %57 = arith.addf %56, %53 : vector<8x128xf32>
    %c48 = arith.constant 48 : index
    %c128_28 = arith.constant 128 : index
    %58 = vector.load %arg14[%c48, %c128_28] : memref<64x256xf32, #tpu.memory_space<vmem>>, vector<8x128xf32>
    %59 = arith.addf %58, %55 : vector<8x128xf32>
    %60 = tpu.concatenate %57, %59 in 0 : vector<8x128xf32>, vector<8x128xf32> -> vector<16x128xf32>
    %c1 = arith.constant 1 : index
    %c0_29 = arith.constant 0 : index
    %c0_30 = arith.constant 0 : index
    %61 = vector.load %arg0[%c1, %c0_29, %c0_30] : memref<8x16x1xf32, #tpu.memory_space<vmem>>, vector<1x16x1xf32>
    %62 = vector.shape_cast %61 : vector<1x16x1xf32> to vector<16x1xf32>
    %63 = vector.shape_cast %62 : vector<16x1xf32> to vector<16x1xf32>
    %64 = vector.broadcast %63 : vector<16x1xf32> to vector<16x32xf32>
    %cst_31 = arith.constant 1.000000e+00 : f32
    %65 = vector.broadcast %cst_31 : f32 to vector<16x32xf32>
    %66 = arith.subf %65, %64 : vector<16x32xf32>
    %67 = vector.extract_strided_slice %60 {offsets = [0, 0], sizes = [16, 96], strides = [1, 1]} : vector<16x128xf32> to vector<16x96xf32>
    %68 = arith.negf %67 : vector<16x96xf32>
    %69 = math.exp %68 : vector<16x96xf32>
    %cst_32 = arith.constant 1.000000e+00 : f32
    %70 = vector.broadcast %cst_32 : f32 to vector<16x96xf32>
    %71 = arith.addf %70, %69 : vector<16x96xf32>
    %72 = arith.divf %70, %71 : vector<16x96xf32>
    %73 = vector.extract_strided_slice %72 {offsets = [0, 0], sizes = [16, 32], strides = [1, 1]} : vector<16x96xf32> to vector<16x32xf32>
    %74 = vector.extract_strided_slice %72 {offsets = [0, 32], sizes = [16, 32], strides = [1, 1]} : vector<16x96xf32> to vector<16x32xf32>
    %75 = vector.extract_strided_slice %72 {offsets = [0, 64], sizes = [16, 32], strides = [1, 1]} : vector<16x96xf32> to vector<16x32xf32>
    %76 = vector.extract_strided_slice %60 {offsets = [0, 96], sizes = [16, 32], strides = [1, 1]} : vector<16x128xf32> to vector<16x32xf32>
    %77 = math.tanh %76 : vector<16x32xf32>
    %78 = arith.mulf %74, %47 : vector<16x32xf32>
    %79 = arith.mulf %73, %77 : vector<16x32xf32>
    %80 = arith.addf %78, %79 : vector<16x32xf32>
    %81 = math.tanh %80 : vector<16x32xf32>
    %82 = arith.mulf %75, %81 : vector<16x32xf32>
    %83 = arith.mulf %64, %82 : vector<16x32xf32>
    %84 = arith.mulf %66, %44 : vector<16x32xf32>
    %85 = arith.addf %83, %84 : vector<16x32xf32>
    %86 = arith.mulf %64, %80 : vector<16x32xf32>
    %87 = arith.mulf %66, %47 : vector<16x32xf32>
    %88 = arith.addf %86, %87 : vector<16x32xf32>
    %89 = vector.extract_strided_slice %83 {offsets = [0, 0], sizes = [8, 32], strides = [1, 1]} : vector<16x32xf32> to vector<8x32xf32>
    %c8_33 = arith.constant 8 : index
    %c0_34 = arith.constant 0 : index
    %90 = vector.load %arg15[%c8_33, %c0_34] : memref<64x64xf32, #tpu.memory_space<vmem>>, vector<8x32xf32>
    tpu.vector_store %arg15[%c8_33, %c0_34], %89 {strides = array<i32>} : memref<64x64xf32, #tpu.memory_space<vmem>>, vector<8x32xf32>,
    %91 = vector.extract_strided_slice %83 {offsets = [8, 0], sizes = [8, 32], strides = [1, 1]} : vector<16x32xf32> to vector<8x32xf32>
    %c48_35 = arith.constant 48 : index
    %c32_36 = arith.constant 32 : index
    %92 = vector.load %arg15[%c48_35, %c32_36] : memref<64x64xf32, #tpu.memory_space<vmem>>, vector<8x32xf32>
    tpu.vector_store %arg15[%c48_35, %c32_36], %91 {strides = array<i32>} : memref<64x64xf32, #tpu.memory_space<vmem>>, vector<8x32xf32>,
    %93 = vector.extract_strided_slice %85 {offsets = [0, 0], sizes = [8, 32], strides = [1, 1]} : vector<16x32xf32> to vector<8x32xf32>
    %cst_37 = arith.constant dense<0.000000e+00> : vector<8x128xf32>
    %94 = tpu.matmul %93, %7, %cst_37 {dimension_numbers = #tpu.dot_dimension_numbers<[1], [0], [0], [1], [0, 0, 1, 1], [], []>} : vector<8x32xf32>, vector<32x128xf32>, vector<8x128xf32> -> vector<8x128xf32>
    %95 = vector.extract_strided_slice %85 {offsets = [8, 0], sizes = [8, 32], strides = [1, 1]} : vector<16x32xf32> to vector<8x32xf32>
    %cst_38 = arith.constant dense<0.000000e+00> : vector<8x128xf32>
    %96 = tpu.matmul %95, %8, %cst_38 {dimension_numbers = #tpu.dot_dimension_numbers<[1], [0], [0], [1], [0, 0, 1, 1], [], []>} : vector<8x32xf32>, vector<32x128xf32>, vector<8x128xf32> -> vector<8x128xf32>
    %c16 = arith.constant 16 : index
    %c0_39 = arith.constant 0 : index
    %97 = vector.load %arg14[%c16, %c0_39] : memref<64x256xf32, #tpu.memory_space<vmem>>, vector<8x128xf32>
    %98 = arith.addf %97, %94 : vector<8x128xf32>
    %c40 = arith.constant 40 : index
    %c128_40 = arith.constant 128 : index
    %99 = vector.load %arg14[%c40, %c128_40] : memref<64x256xf32, #tpu.memory_space<vmem>>, vector<8x128xf32>
    %100 = arith.addf %99, %96 : vector<8x128xf32>
    %101 = tpu.concatenate %98, %100 in 0 : vector<8x128xf32>, vector<8x128xf32> -> vector<16x128xf32>
    %c2 = arith.constant 2 : index
    %c0_41 = arith.constant 0 : index
    %c0_42 = arith.constant 0 : index
    %102 = vector.load %arg0[%c2, %c0_41, %c0_42] : memref<8x16x1xf32, #tpu.memory_space<vmem>>, vector<1x16x1xf32>
    %103 = vector.shape_cast %102 : vector<1x16x1xf32> to vector<16x1xf32>
    %104 = vector.shape_cast %103 : vector<16x1xf32> to vector<16x1xf32>
    %105 = vector.broadcast %104 : vector<16x1xf32> to vector<16x32xf32>
    %cst_43 = arith.constant 1.000000e+00 : f32
    %106 = vector.broadcast %cst_43 : f32 to vector<16x32xf32>
    %107 = arith.subf %106, %105 : vector<16x32xf32>
    %108 = vector.extract_strided_slice %101 {offsets = [0, 0], sizes = [16, 96], strides = [1, 1]} : vector<16x128xf32> to vector<16x96xf32>
    %109 = arith.negf %108 : vector<16x96xf32>
    %110 = math.exp %109 : vector<16x96xf32>
    %cst_44 = arith.constant 1.000000e+00 : f32
    %111 = vector.broadcast %cst_44 : f32 to vector<16x96xf32>
    %112 = arith.addf %111, %110 : vector<16x96xf32>
    %113 = arith.divf %111, %112 : vector<16x96xf32>
    %114 = vector.extract_strided_slice %113 {offsets = [0, 0], sizes = [16, 32], strides = [1, 1]} : vector<16x96xf32> to vector<16x32xf32>
    %115 = vector.extract_strided_slice %113 {offsets = [0, 32], sizes = [16, 32], strides = [1, 1]} : vector<16x96xf32> to vector<16x32xf32>
    %116 = vector.extract_strided_slice %113 {offsets = [0, 64], sizes = [16, 32], strides = [1, 1]} : vector<16x96xf32> to vector<16x32xf32>
    %117 = vector.extract_strided_slice %101 {offsets = [0, 96], sizes = [16, 32], strides = [1, 1]} : vector<16x128xf32> to vector<16x32xf32>
    %118 = math.tanh %117 : vector<16x32xf32>
    %119 = arith.mulf %115, %88 : vector<16x32xf32>
    %120 = arith.mulf %114, %118 : vector<16x32xf32>
    %121 = arith.addf %119, %120 : vector<16x32xf32>
    %122 = math.tanh %121 : vector<16x32xf32>
    %123 = arith.mulf %116, %122 : vector<16x32xf32>
    %124 = arith.mulf %105, %123 : vector<16x32xf32>
    %125 = arith.mulf %107, %85 : vector<16x32xf32>
    %126 = arith.addf %124, %125 : vector<16x32xf32>
    %127 = arith.mulf %105, %121 : vector<16x32xf32>
    %128 = arith.mulf %107, %88 : vector<16x32xf32>
    %129 = arith.addf %127, %128 : vector<16x32xf32>
    %130 = vector.extract_strided_slice %124 {offsets = [0, 0], sizes = [8, 32], strides = [1, 1]} : vector<16x32xf32> to vector<8x32xf32>
    %c16_45 = arith.constant 16 : index
    %c0_46 = arith.constant 0 : index
    %131 = vector.load %arg15[%c16_45, %c0_46] : memref<64x64xf32, #tpu.memory_space<vmem>>, vector<8x32xf32>
    tpu.vector_store %arg15[%c16_45, %c0_46], %130 {strides = array<i32>} : memref<64x64xf32, #tpu.memory_space<vmem>>, vector<8x32xf32>,
    %132 = vector.extract_strided_slice %124 {offsets = [8, 0], sizes = [8, 32], strides = [1, 1]} : vector<16x32xf32> to vector<8x32xf32>
    %c40_47 = arith.constant 40 : index
    %c32_48 = arith.constant 32 : index
    %133 = vector.load %arg15[%c40_47, %c32_48] : memref<64x64xf32, #tpu.memory_space<vmem>>, vector<8x32xf32>
    tpu.vector_store %arg15[%c40_47, %c32_48], %132 {strides = array<i32>} : memref<64x64xf32, #tpu.memory_space<vmem>>, vector<8x32xf32>,
    %134 = vector.extract_strided_slice %126 {offsets = [0, 0], sizes = [8, 32], strides = [1, 1]} : vector<16x32xf32> to vector<8x32xf32>
    %cst_49 = arith.constant dense<0.000000e+00> : vector<8x128xf32>
    %135 = tpu.matmul %134, %7, %cst_49 {dimension_numbers = #tpu.dot_dimension_numbers<[1], [0], [0], [1], [0, 0, 1, 1], [], []>} : vector<8x32xf32>, vector<32x128xf32>, vector<8x128xf32> -> vector<8x128xf32>
    %136 = vector.extract_strided_slice %126 {offsets = [8, 0], sizes = [8, 32], strides = [1, 1]} : vector<16x32xf32> to vector<8x32xf32>
    %cst_50 = arith.constant dense<0.000000e+00> : vector<8x128xf32>
    %137 = tpu.matmul %136, %8, %cst_50 {dimension_numbers = #tpu.dot_dimension_numbers<[1], [0], [0], [1], [0, 0, 1, 1], [], []>} : vector<8x32xf32>, vector<32x128xf32>, vector<8x128xf32> -> vector<8x128xf32>
    %c24 = arith.constant 24 : index
    %c0_51 = arith.constant 0 : index
    %138 = vector.load %arg14[%c24, %c0_51] : memref<64x256xf32, #tpu.memory_space<vmem>>, vector<8x128xf32>
    %139 = arith.addf %138, %135 : vector<8x128xf32>
    %c32_52 = arith.constant 32 : index
    %c128_53 = arith.constant 128 : index
    %140 = vector.load %arg14[%c32_52, %c128_53] : memref<64x256xf32, #tpu.memory_space<vmem>>, vector<8x128xf32>
    %141 = arith.addf %140, %137 : vector<8x128xf32>
    %142 = tpu.concatenate %139, %141 in 0 : vector<8x128xf32>, vector<8x128xf32> -> vector<16x128xf32>
    %c3 = arith.constant 3 : index
    %c0_54 = arith.constant 0 : index
    %c0_55 = arith.constant 0 : index
    %143 = vector.load %arg0[%c3, %c0_54, %c0_55] : memref<8x16x1xf32, #tpu.memory_space<vmem>>, vector<1x16x1xf32>
    %144 = vector.shape_cast %143 : vector<1x16x1xf32> to vector<16x1xf32>
    %145 = vector.shape_cast %144 : vector<16x1xf32> to vector<16x1xf32>
    %146 = vector.broadcast %145 : vector<16x1xf32> to vector<16x32xf32>
    %cst_56 = arith.constant 1.000000e+00 : f32
    %147 = vector.broadcast %cst_56 : f32 to vector<16x32xf32>
    %148 = arith.subf %147, %146 : vector<16x32xf32>
    %149 = vector.extract_strided_slice %142 {offsets = [0, 0], sizes = [16, 96], strides = [1, 1]} : vector<16x128xf32> to vector<16x96xf32>
    %150 = arith.negf %149 : vector<16x96xf32>
    %151 = math.exp %150 : vector<16x96xf32>
    %cst_57 = arith.constant 1.000000e+00 : f32
    %152 = vector.broadcast %cst_57 : f32 to vector<16x96xf32>
    %153 = arith.addf %152, %151 : vector<16x96xf32>
    %154 = arith.divf %152, %153 : vector<16x96xf32>
    %155 = vector.extract_strided_slice %154 {offsets = [0, 0], sizes = [16, 32], strides = [1, 1]} : vector<16x96xf32> to vector<16x32xf32>
    %156 = vector.extract_strided_slice %154 {offsets = [0, 32], sizes = [16, 32], strides = [1, 1]} : vector<16x96xf32> to vector<16x32xf32>
    %157 = vector.extract_strided_slice %154 {offsets = [0, 64], sizes = [16, 32], strides = [1, 1]} : vector<16x96xf32> to vector<16x32xf32>
    %158 = vector.extract_strided_slice %142 {offsets = [0, 96], sizes = [16, 32], strides = [1, 1]} : vector<16x128xf32> to vector<16x32xf32>
    %159 = math.tanh %158 : vector<16x32xf32>
    %160 = arith.mulf %156, %129 : vector<16x32xf32>
    %161 = arith.mulf %155, %159 : vector<16x32xf32>
    %162 = arith.addf %160, %161 : vector<16x32xf32>
    %163 = math.tanh %162 : vector<16x32xf32>
    %164 = arith.mulf %157, %163 : vector<16x32xf32>
    %165 = arith.mulf %146, %164 : vector<16x32xf32>
    %166 = arith.mulf %148, %126 : vector<16x32xf32>
    %167 = arith.addf %165, %166 : vector<16x32xf32>
    %168 = arith.mulf %146, %162 : vector<16x32xf32>
    %169 = arith.mulf %148, %129 : vector<16x32xf32>
    %170 = arith.addf %168, %169 : vector<16x32xf32>
    %171 = vector.extract_strided_slice %165 {offsets = [0, 0], sizes = [8, 32], strides = [1, 1]} : vector<16x32xf32> to vector<8x32xf32>
    %c24_58 = arith.constant 24 : index
    %c0_59 = arith.constant 0 : index
    %172 = vector.load %arg15[%c24_58, %c0_59] : memref<64x64xf32, #tpu.memory_space<vmem>>, vector<8x32xf32>
    tpu.vector_store %arg15[%c24_58, %c0_59], %171 {strides = array<i32>} : memref<64x64xf32, #tpu.memory_space<vmem>>, vector<8x32xf32>,
    %173 = vector.extract_strided_slice %165 {offsets = [8, 0], sizes = [8, 32], strides = [1, 1]} : vector<16x32xf32> to vector<8x32xf32>
    %c32_60 = arith.constant 32 : index
    %c32_61 = arith.constant 32 : index
    %174 = vector.load %arg15[%c32_60, %c32_61] : memref<64x64xf32, #tpu.memory_space<vmem>>, vector<8x32xf32>
    tpu.vector_store %arg15[%c32_60, %c32_61], %173 {strides = array<i32>} : memref<64x64xf32, #tpu.memory_space<vmem>>, vector<8x32xf32>,
    %175 = vector.extract_strided_slice %167 {offsets = [0, 0], sizes = [8, 32], strides = [1, 1]} : vector<16x32xf32> to vector<8x32xf32>
    %cst_62 = arith.constant dense<0.000000e+00> : vector<8x128xf32>
    %176 = tpu.matmul %175, %7, %cst_62 {dimension_numbers = #tpu.dot_dimension_numbers<[1], [0], [0], [1], [0, 0, 1, 1], [], []>} : vector<8x32xf32>, vector<32x128xf32>, vector<8x128xf32> -> vector<8x128xf32>
    %177 = vector.extract_strided_slice %167 {offsets = [8, 0], sizes = [8, 32], strides = [1, 1]} : vector<16x32xf32> to vector<8x32xf32>
    %cst_63 = arith.constant dense<0.000000e+00> : vector<8x128xf32>
    %178 = tpu.matmul %177, %8, %cst_63 {dimension_numbers = #tpu.dot_dimension_numbers<[1], [0], [0], [1], [0, 0, 1, 1], [], []>} : vector<8x32xf32>, vector<32x128xf32>, vector<8x128xf32> -> vector<8x128xf32>
    %c32_64 = arith.constant 32 : index
    %c0_65 = arith.constant 0 : index
    %179 = vector.load %arg14[%c32_64, %c0_65] : memref<64x256xf32, #tpu.memory_space<vmem>>, vector<8x128xf32>
    %180 = arith.addf %179, %176 : vector<8x128xf32>
    %c24_66 = arith.constant 24 : index
    %c128_67 = arith.constant 128 : index
    %181 = vector.load %arg14[%c24_66, %c128_67] : memref<64x256xf32, #tpu.memory_space<vmem>>, vector<8x128xf32>
    %182 = arith.addf %181, %178 : vector<8x128xf32>
    %183 = tpu.concatenate %180, %182 in 0 : vector<8x128xf32>, vector<8x128xf32> -> vector<16x128xf32>
    %c4 = arith.constant 4 : index
    %c0_68 = arith.constant 0 : index
    %c0_69 = arith.constant 0 : index
    %184 = vector.load %arg0[%c4, %c0_68, %c0_69] : memref<8x16x1xf32, #tpu.memory_space<vmem>>, vector<1x16x1xf32>
    %185 = vector.shape_cast %184 : vector<1x16x1xf32> to vector<16x1xf32>
    %186 = vector.shape_cast %185 : vector<16x1xf32> to vector<16x1xf32>
    %187 = vector.broadcast %186 : vector<16x1xf32> to vector<16x32xf32>
    %cst_70 = arith.constant 1.000000e+00 : f32
    %188 = vector.broadcast %cst_70 : f32 to vector<16x32xf32>
    %189 = arith.subf %188, %187 : vector<16x32xf32>
    %190 = vector.extract_strided_slice %183 {offsets = [0, 0], sizes = [16, 96], strides = [1, 1]} : vector<16x128xf32> to vector<16x96xf32>
    %191 = arith.negf %190 : vector<16x96xf32>
    %192 = math.exp %191 : vector<16x96xf32>
    %cst_71 = arith.constant 1.000000e+00 : f32
    %193 = vector.broadcast %cst_71 : f32 to vector<16x96xf32>
    %194 = arith.addf %193, %192 : vector<16x96xf32>
    %195 = arith.divf %193, %194 : vector<16x96xf32>
    %196 = vector.extract_strided_slice %195 {offsets = [0, 0], sizes = [16, 32], strides = [1, 1]} : vector<16x96xf32> to vector<16x32xf32>
    %197 = vector.extract_strided_slice %195 {offsets = [0, 32], sizes = [16, 32], strides = [1, 1]} : vector<16x96xf32> to vector<16x32xf32>
    %198 = vector.extract_strided_slice %195 {offsets = [0, 64], sizes = [16, 32], strides = [1, 1]} : vector<16x96xf32> to vector<16x32xf32>
    %199 = vector.extract_strided_slice %183 {offsets = [0, 96], sizes = [16, 32], strides = [1, 1]} : vector<16x128xf32> to vector<16x32xf32>
    %200 = math.tanh %199 : vector<16x32xf32>
    %201 = arith.mulf %197, %170 : vector<16x32xf32>
    %202 = arith.mulf %196, %200 : vector<16x32xf32>
    %203 = arith.addf %201, %202 : vector<16x32xf32>
    %204 = math.tanh %203 : vector<16x32xf32>
    %205 = arith.mulf %198, %204 : vector<16x32xf32>
    %206 = arith.mulf %187, %205 : vector<16x32xf32>
    %207 = arith.mulf %189, %167 : vector<16x32xf32>
    %208 = arith.addf %206, %207 : vector<16x32xf32>
    %209 = arith.mulf %187, %203 : vector<16x32xf32>
    %210 = arith.mulf %189, %170 : vector<16x32xf32>
    %211 = arith.addf %209, %210 : vector<16x32xf32>
    %212 = vector.extract_strided_slice %206 {offsets = [0, 0], sizes = [8, 32], strides = [1, 1]} : vector<16x32xf32> to vector<8x32xf32>
    %c32_72 = arith.constant 32 : index
    %c0_73 = arith.constant 0 : index
    %213 = vector.load %arg15[%c32_72, %c0_73] : memref<64x64xf32, #tpu.memory_space<vmem>>, vector<8x32xf32>
    tpu.vector_store %arg15[%c32_72, %c0_73], %212 {strides = array<i32>} : memref<64x64xf32, #tpu.memory_space<vmem>>, vector<8x32xf32>,
    %214 = vector.extract_strided_slice %206 {offsets = [8, 0], sizes = [8, 32], strides = [1, 1]} : vector<16x32xf32> to vector<8x32xf32>
    %c24_74 = arith.constant 24 : index
    %c32_75 = arith.constant 32 : index
    %215 = vector.load %arg15[%c24_74, %c32_75] : memref<64x64xf32, #tpu.memory_space<vmem>>, vector<8x32xf32>
    tpu.vector_store %arg15[%c24_74, %c32_75], %214 {strides = array<i32>} : memref<64x64xf32, #tpu.memory_space<vmem>>, vector<8x32xf32>,
    %216 = vector.extract_strided_slice %208 {offsets = [0, 0], sizes = [8, 32], strides = [1, 1]} : vector<16x32xf32> to vector<8x32xf32>
    %cst_76 = arith.constant dense<0.000000e+00> : vector<8x128xf32>
    %217 = tpu.matmul %216, %7, %cst_76 {dimension_numbers = #tpu.dot_dimension_numbers<[1], [0], [0], [1], [0, 0, 1, 1], [], []>} : vector<8x32xf32>, vector<32x128xf32>, vector<8x128xf32> -> vector<8x128xf32>
    %218 = vector.extract_strided_slice %208 {offsets = [8, 0], sizes = [8, 32], strides = [1, 1]} : vector<16x32xf32> to vector<8x32xf32>
    %cst_77 = arith.constant dense<0.000000e+00> : vector<8x128xf32>
    %219 = tpu.matmul %218, %8, %cst_77 {dimension_numbers = #tpu.dot_dimension_numbers<[1], [0], [0], [1], [0, 0, 1, 1], [], []>} : vector<8x32xf32>, vector<32x128xf32>, vector<8x128xf32> -> vector<8x128xf32>
    %c40_78 = arith.constant 40 : index
    %c0_79 = arith.constant 0 : index
    %220 = vector.load %arg14[%c40_78, %c0_79] : memref<64x256xf32, #tpu.memory_space<vmem>>, vector<8x128xf32>
    %221 = arith.addf %220, %217 : vector<8x128xf32>
    %c16_80 = arith.constant 16 : index
    %c128_81 = arith.constant 128 : index
    %222 = vector.load %arg14[%c16_80, %c128_81] : memref<64x256xf32, #tpu.memory_space<vmem>>, vector<8x128xf32>
    %223 = arith.addf %222, %219 : vector<8x128xf32>
    %224 = tpu.concatenate %221, %223 in 0 : vector<8x128xf32>, vector<8x128xf32> -> vector<16x128xf32>
    %c5 = arith.constant 5 : index
    %c0_82 = arith.constant 0 : index
    %c0_83 = arith.constant 0 : index
    %225 = vector.load %arg0[%c5, %c0_82, %c0_83] : memref<8x16x1xf32, #tpu.memory_space<vmem>>, vector<1x16x1xf32>
    %226 = vector.shape_cast %225 : vector<1x16x1xf32> to vector<16x1xf32>
    %227 = vector.shape_cast %226 : vector<16x1xf32> to vector<16x1xf32>
    %228 = vector.broadcast %227 : vector<16x1xf32> to vector<16x32xf32>
    %cst_84 = arith.constant 1.000000e+00 : f32
    %229 = vector.broadcast %cst_84 : f32 to vector<16x32xf32>
    %230 = arith.subf %229, %228 : vector<16x32xf32>
    %231 = vector.extract_strided_slice %224 {offsets = [0, 0], sizes = [16, 96], strides = [1, 1]} : vector<16x128xf32> to vector<16x96xf32>
    %232 = arith.negf %231 : vector<16x96xf32>
    %233 = math.exp %232 : vector<16x96xf32>
    %cst_85 = arith.constant 1.000000e+00 : f32
    %234 = vector.broadcast %cst_85 : f32 to vector<16x96xf32>
    %235 = arith.addf %234, %233 : vector<16x96xf32>
    %236 = arith.divf %234, %235 : vector<16x96xf32>
    %237 = vector.extract_strided_slice %236 {offsets = [0, 0], sizes = [16, 32], strides = [1, 1]} : vector<16x96xf32> to vector<16x32xf32>
    %238 = vector.extract_strided_slice %236 {offsets = [0, 32], sizes = [16, 32], strides = [1, 1]} : vector<16x96xf32> to vector<16x32xf32>
    %239 = vector.extract_strided_slice %236 {offsets = [0, 64], sizes = [16, 32], strides = [1, 1]} : vector<16x96xf32> to vector<16x32xf32>
    %240 = vector.extract_strided_slice %224 {offsets = [0, 96], sizes = [16, 32], strides = [1, 1]} : vector<16x128xf32> to vector<16x32xf32>
    %241 = math.tanh %240 : vector<16x32xf32>
    %242 = arith.mulf %238, %211 : vector<16x32xf32>
    %243 = arith.mulf %237, %241 : vector<16x32xf32>
    %244 = arith.addf %242, %243 : vector<16x32xf32>
    %245 = math.tanh %244 : vector<16x32xf32>
    %246 = arith.mulf %239, %245 : vector<16x32xf32>
    %247 = arith.mulf %228, %246 : vector<16x32xf32>
    %248 = arith.mulf %230, %208 : vector<16x32xf32>
    %249 = arith.addf %247, %248 : vector<16x32xf32>
    %250 = arith.mulf %228, %244 : vector<16x32xf32>
    %251 = arith.mulf %230, %211 : vector<16x32xf32>
    %252 = arith.addf %250, %251 : vector<16x32xf32>
    %253 = vector.extract_strided_slice %247 {offsets = [0, 0], sizes = [8, 32], strides = [1, 1]} : vector<16x32xf32> to vector<8x32xf32>
    %c40_86 = arith.constant 40 : index
    %c0_87 = arith.constant 0 : index
    %254 = vector.load %arg15[%c40_86, %c0_87] : memref<64x64xf32, #tpu.memory_space<vmem>>, vector<8x32xf32>
    tpu.vector_store %arg15[%c40_86, %c0_87], %253 {strides = array<i32>} : memref<64x64xf32, #tpu.memory_space<vmem>>, vector<8x32xf32>,
    %255 = vector.extract_strided_slice %247 {offsets = [8, 0], sizes = [8, 32], strides = [1, 1]} : vector<16x32xf32> to vector<8x32xf32>
    %c16_88 = arith.constant 16 : index
    %c32_89 = arith.constant 32 : index
    %256 = vector.load %arg15[%c16_88, %c32_89] : memref<64x64xf32, #tpu.memory_space<vmem>>, vector<8x32xf32>
    tpu.vector_store %arg15[%c16_88, %c32_89], %255 {strides = array<i32>} : memref<64x64xf32, #tpu.memory_space<vmem>>, vector<8x32xf32>,
    %257 = vector.extract_strided_slice %249 {offsets = [0, 0], sizes = [8, 32], strides = [1, 1]} : vector<16x32xf32> to vector<8x32xf32>
    %cst_90 = arith.constant dense<0.000000e+00> : vector<8x128xf32>
    %258 = tpu.matmul %257, %7, %cst_90 {dimension_numbers = #tpu.dot_dimension_numbers<[1], [0], [0], [1], [0, 0, 1, 1], [], []>} : vector<8x32xf32>, vector<32x128xf32>, vector<8x128xf32> -> vector<8x128xf32>
    %259 = vector.extract_strided_slice %249 {offsets = [8, 0], sizes = [8, 32], strides = [1, 1]} : vector<16x32xf32> to vector<8x32xf32>
    %cst_91 = arith.constant dense<0.000000e+00> : vector<8x128xf32>
    %260 = tpu.matmul %259, %8, %cst_91 {dimension_numbers = #tpu.dot_dimension_numbers<[1], [0], [0], [1], [0, 0, 1, 1], [], []>} : vector<8x32xf32>, vector<32x128xf32>, vector<8x128xf32> -> vector<8x128xf32>
    %c48_92 = arith.constant 48 : index
    %c0_93 = arith.constant 0 : index
    %261 = vector.load %arg14[%c48_92, %c0_93] : memref<64x256xf32, #tpu.memory_space<vmem>>, vector<8x128xf32>
    %262 = arith.addf %261, %258 : vector<8x128xf32>
    %c8_94 = arith.constant 8 : index
    %c128_95 = arith.constant 128 : index
    %263 = vector.load %arg14[%c8_94, %c128_95] : memref<64x256xf32, #tpu.memory_space<vmem>>, vector<8x128xf32>
    %264 = arith.addf %263, %260 : vector<8x128xf32>
    %265 = tpu.concatenate %262, %264 in 0 : vector<8x128xf32>, vector<8x128xf32> -> vector<16x128xf32>
    %c6 = arith.constant 6 : index
    %c0_96 = arith.constant 0 : index
    %c0_97 = arith.constant 0 : index
    %266 = vector.load %arg0[%c6, %c0_96, %c0_97] : memref<8x16x1xf32, #tpu.memory_space<vmem>>, vector<1x16x1xf32>
    %267 = vector.shape_cast %266 : vector<1x16x1xf32> to vector<16x1xf32>
    %268 = vector.shape_cast %267 : vector<16x1xf32> to vector<16x1xf32>
    %269 = vector.broadcast %268 : vector<16x1xf32> to vector<16x32xf32>
    %cst_98 = arith.constant 1.000000e+00 : f32
    %270 = vector.broadcast %cst_98 : f32 to vector<16x32xf32>
    %271 = arith.subf %270, %269 : vector<16x32xf32>
    %272 = vector.extract_strided_slice %265 {offsets = [0, 0], sizes = [16, 96], strides = [1, 1]} : vector<16x128xf32> to vector<16x96xf32>
    %273 = arith.negf %272 : vector<16x96xf32>
    %274 = math.exp %273 : vector<16x96xf32>
    %cst_99 = arith.constant 1.000000e+00 : f32
    %275 = vector.broadcast %cst_99 : f32 to vector<16x96xf32>
    %276 = arith.addf %275, %274 : vector<16x96xf32>
    %277 = arith.divf %275, %276 : vector<16x96xf32>
    %278 = vector.extract_strided_slice %277 {offsets = [0, 0], sizes = [16, 32], strides = [1, 1]} : vector<16x96xf32> to vector<16x32xf32>
    %279 = vector.extract_strided_slice %277 {offsets = [0, 32], sizes = [16, 32], strides = [1, 1]} : vector<16x96xf32> to vector<16x32xf32>
    %280 = vector.extract_strided_slice %277 {offsets = [0, 64], sizes = [16, 32], strides = [1, 1]} : vector<16x96xf32> to vector<16x32xf32>
    %281 = vector.extract_strided_slice %265 {offsets = [0, 96], sizes = [16, 32], strides = [1, 1]} : vector<16x128xf32> to vector<16x32xf32>
    %282 = math.tanh %281 : vector<16x32xf32>
    %283 = arith.mulf %279, %252 : vector<16x32xf32>
    %284 = arith.mulf %278, %282 : vector<16x32xf32>
    %285 = arith.addf %283, %284 : vector<16x32xf32>
    %286 = math.tanh %285 : vector<16x32xf32>
    %287 = arith.mulf %280, %286 : vector<16x32xf32>
    %288 = arith.mulf %269, %287 : vector<16x32xf32>
    %289 = arith.mulf %271, %249 : vector<16x32xf32>
    %290 = arith.addf %288, %289 : vector<16x32xf32>
    %291 = arith.mulf %269, %285 : vector<16x32xf32>
    %292 = arith.mulf %271, %252 : vector<16x32xf32>
    %293 = arith.addf %291, %292 : vector<16x32xf32>
    %294 = vector.extract_strided_slice %288 {offsets = [0, 0], sizes = [8, 32], strides = [1, 1]} : vector<16x32xf32> to vector<8x32xf32>
    %c48_100 = arith.constant 48 : index
    %c0_101 = arith.constant 0 : index
    %295 = vector.load %arg15[%c48_100, %c0_101] : memref<64x64xf32, #tpu.memory_space<vmem>>, vector<8x32xf32>
    tpu.vector_store %arg15[%c48_100, %c0_101], %294 {strides = array<i32>} : memref<64x64xf32, #tpu.memory_space<vmem>>, vector<8x32xf32>,
    %296 = vector.extract_strided_slice %288 {offsets = [8, 0], sizes = [8, 32], strides = [1, 1]} : vector<16x32xf32> to vector<8x32xf32>
    %c8_102 = arith.constant 8 : index
    %c32_103 = arith.constant 32 : index
    %297 = vector.load %arg15[%c8_102, %c32_103] : memref<64x64xf32, #tpu.memory_space<vmem>>, vector<8x32xf32>
    tpu.vector_store %arg15[%c8_102, %c32_103], %296 {strides = array<i32>} : memref<64x64xf32, #tpu.memory_space<vmem>>, vector<8x32xf32>,
    %298 = vector.extract_strided_slice %290 {offsets = [0, 0], sizes = [8, 32], strides = [1, 1]} : vector<16x32xf32> to vector<8x32xf32>
    %cst_104 = arith.constant dense<0.000000e+00> : vector<8x128xf32>
    %299 = tpu.matmul %298, %7, %cst_104 {dimension_numbers = #tpu.dot_dimension_numbers<[1], [0], [0], [1], [0, 0, 1, 1], [], []>} : vector<8x32xf32>, vector<32x128xf32>, vector<8x128xf32> -> vector<8x128xf32>
    %300 = vector.extract_strided_slice %290 {offsets = [8, 0], sizes = [8, 32], strides = [1, 1]} : vector<16x32xf32> to vector<8x32xf32>
    %cst_105 = arith.constant dense<0.000000e+00> : vector<8x128xf32>
    %301 = tpu.matmul %300, %8, %cst_105 {dimension_numbers = #tpu.dot_dimension_numbers<[1], [0], [0], [1], [0, 0, 1, 1], [], []>} : vector<8x32xf32>, vector<32x128xf32>, vector<8x128xf32> -> vector<8x128xf32>
    %c56_106 = arith.constant 56 : index
    %c0_107 = arith.constant 0 : index
    %302 = vector.load %arg14[%c56_106, %c0_107] : memref<64x256xf32, #tpu.memory_space<vmem>>, vector<8x128xf32>
    %303 = arith.addf %302, %299 : vector<8x128xf32>
    %c0_108 = arith.constant 0 : index
    %c128_109 = arith.constant 128 : index
    %304 = vector.load %arg14[%c0_108, %c128_109] : memref<64x256xf32, #tpu.memory_space<vmem>>, vector<8x128xf32>
    %305 = arith.addf %304, %301 : vector<8x128xf32>
    %306 = tpu.concatenate %303, %305 in 0 : vector<8x128xf32>, vector<8x128xf32> -> vector<16x128xf32>
    %c7 = arith.constant 7 : index
    %c0_110 = arith.constant 0 : index
    %c0_111 = arith.constant 0 : index
    %307 = vector.load %arg0[%c7, %c0_110, %c0_111] : memref<8x16x1xf32, #tpu.memory_space<vmem>>, vector<1x16x1xf32>
    %308 = vector.shape_cast %307 : vector<1x16x1xf32> to vector<16x1xf32>
    %309 = vector.shape_cast %308 : vector<16x1xf32> to vector<16x1xf32>
    %310 = vector.broadcast %309 : vector<16x1xf32> to vector<16x32xf32>
    %311 = vector.extract_strided_slice %306 {offsets = [0, 0], sizes = [16, 96], strides = [1, 1]} : vector<16x128xf32> to vector<16x96xf32>
    %312 = arith.negf %311 : vector<16x96xf32>
    %313 = math.exp %312 : vector<16x96xf32>
    %cst_112 = arith.constant 1.000000e+00 : f32
    %314 = vector.broadcast %cst_112 : f32 to vector<16x96xf32>
    %315 = arith.addf %314, %313 : vector<16x96xf32>
    %316 = arith.divf %314, %315 : vector<16x96xf32>
    %317 = vector.extract_strided_slice %316 {offsets = [0, 0], sizes = [16, 32], strides = [1, 1]} : vector<16x96xf32> to vector<16x32xf32>
    %318 = vector.extract_strided_slice %316 {offsets = [0, 32], sizes = [16, 32], strides = [1, 1]} : vector<16x96xf32> to vector<16x32xf32>
    %319 = vector.extract_strided_slice %316 {offsets = [0, 64], sizes = [16, 32], strides = [1, 1]} : vector<16x96xf32> to vector<16x32xf32>
    %320 = vector.extract_strided_slice %306 {offsets = [0, 96], sizes = [16, 32], strides = [1, 1]} : vector<16x128xf32> to vector<16x32xf32>
    %321 = math.tanh %320 : vector<16x32xf32>
    %322 = arith.mulf %318, %293 : vector<16x32xf32>
    %323 = arith.mulf %317, %321 : vector<16x32xf32>
    %324 = arith.addf %322, %323 : vector<16x32xf32>
    %325 = math.tanh %324 : vector<16x32xf32>
    %326 = arith.mulf %319, %325 : vector<16x32xf32>
    %327 = arith.mulf %310, %326 : vector<16x32xf32>
    %328 = vector.extract_strided_slice %327 {offsets = [0, 0], sizes = [8, 32], strides = [1, 1]} : vector<16x32xf32> to vector<8x32xf32>
    %c56_113 = arith.constant 56 : index
    %c0_114 = arith.constant 0 : index
    %329 = vector.load %arg15[%c56_113, %c0_114] : memref<64x64xf32, #tpu.memory_space<vmem>>, vector<8x32xf32>
    tpu.vector_store %arg15[%c56_113, %c0_114], %328 {strides = array<i32>} : memref<64x64xf32, #tpu.memory_space<vmem>>, vector<8x32xf32>,
    %330 = vector.extract_strided_slice %327 {offsets = [8, 0], sizes = [8, 32], strides = [1, 1]} : vector<16x32xf32> to vector<8x32xf32>
    %c0_115 = arith.constant 0 : index
    %c32_116 = arith.constant 32 : index
    %331 = vector.load %arg15[%c0_115, %c32_116] : memref<64x64xf32, #tpu.memory_space<vmem>>, vector<8x32xf32>
    tpu.vector_store %arg15[%c0_115, %c32_116], %330 {strides = array<i32>} : memref<64x64xf32, #tpu.memory_space<vmem>>, vector<8x32xf32>,
    %c0_117 = arith.constant 0 : index
    %c0_118 = arith.constant 0 : index
    %332 = vector.load %arg15[%c0_117, %c0_118] : memref<64x64xf32, #tpu.memory_space<vmem>>, vector<64x64xf32>
    %333 = arith.truncf %332 : vector<64x64xf32> to vector<64x64xbf16>
    %c0_119 = arith.constant 0 : index
    %c0_120 = arith.constant 0 : index
    %334 = vector.load %arg6[%c0_119, %c0_120] : memref<64x256xbf16, #tpu.memory_space<vmem>>, vector<64x256xbf16>
    %cst_121 = arith.constant dense<0.000000e+00> : vector<64x256xf32>
    %335 = tpu.matmul %333, %334, %cst_121 {dimension_numbers = #tpu.dot_dimension_numbers<[1], [0], [0], [1], [0, 0, 1, 1], [], []>} : vector<64x64xbf16>, vector<64x256xbf16>, vector<64x256xf32> -> vector<64x256xf32>
    %c0_122 = arith.constant 0 : index
    %c0_123 = arith.constant 0 : index
    %336 = vector.load %arg7[%c0_122, %c0_123] : memref<1x256xf32, #tpu.memory_space<vmem>>, vector<1x256xf32>
    %337 = vector.broadcast %336 : vector<1x256xf32> to vector<64x256xf32>
    %338 = arith.addf %335, %337 : vector<64x256xf32>
    %c0_124 = arith.constant 0 : index
    %c0_125 = arith.constant 0 : index
    %339 = vector.load %arg14[%c0_124, %c0_125] : memref<64x256xf32, #tpu.memory_space<vmem>>, vector<64x256xf32>
    tpu.vector_store %arg14[%c0_124, %c0_125], %338 {strides = array<i32>} : memref<64x256xf32, #tpu.memory_space<vmem>>, vector<64x256xf32>,
    %c0_126 = arith.constant 0 : index
    %c0_127 = arith.constant 0 : index
    %340 = vector.load %arg8[%c0_126, %c0_127] : memref<32x128xf32, #tpu.memory_space<vmem>>, vector<32x128xf32>
    %c0_128 = arith.constant 0 : index
    %c0_129 = arith.constant 0 : index
    %341 = vector.load %arg9[%c0_128, %c0_129] : memref<32x128xf32, #tpu.memory_space<vmem>>, vector<32x128xf32>
    %cst_130 = arith.constant 0.000000e+00 : f32
    %342 = vector.broadcast %cst_130 : f32 to vector<16x32xf32>
    %cst_131 = arith.constant 0.000000e+00 : f32
    %343 = vector.broadcast %cst_131 : f32 to vector<16x32xf32>
    %344 = vector.extract_strided_slice %342 {offsets = [0, 0], sizes = [8, 32], strides = [1, 1]} : vector<16x32xf32> to vector<8x32xf32>
    %cst_132 = arith.constant dense<0.000000e+00> : vector<8x128xf32>
    %345 = tpu.matmul %344, %340, %cst_132 {dimension_numbers = #tpu.dot_dimension_numbers<[1], [0], [0], [1], [0, 0, 1, 1], [], []>} : vector<8x32xf32>, vector<32x128xf32>, vector<8x128xf32> -> vector<8x128xf32>
    %346 = vector.extract_strided_slice %342 {offsets = [8, 0], sizes = [8, 32], strides = [1, 1]} : vector<16x32xf32> to vector<8x32xf32>
    %cst_133 = arith.constant dense<0.000000e+00> : vector<8x128xf32>
    %347 = tpu.matmul %346, %341, %cst_133 {dimension_numbers = #tpu.dot_dimension_numbers<[1], [0], [0], [1], [0, 0, 1, 1], [], []>} : vector<8x32xf32>, vector<32x128xf32>, vector<8x128xf32> -> vector<8x128xf32>
    %c0_134 = arith.constant 0 : index
    %c0_135 = arith.constant 0 : index
    %348 = vector.load %arg14[%c0_134, %c0_135] : memref<64x256xf32, #tpu.memory_space<vmem>>, vector<8x128xf32>
    %349 = arith.addf %348, %345 : vector<8x128xf32>
    %c56_136 = arith.constant 56 : index
    %c128_137 = arith.constant 128 : index
    %350 = vector.load %arg14[%c56_136, %c128_137] : memref<64x256xf32, #tpu.memory_space<vmem>>, vector<8x128xf32>
    %351 = arith.addf %350, %347 : vector<8x128xf32>
    %352 = tpu.concatenate %349, %351 in 0 : vector<8x128xf32>, vector<8x128xf32> -> vector<16x128xf32>
    %c0_138 = arith.constant 0 : index
    %c0_139 = arith.constant 0 : index
    %c0_140 = arith.constant 0 : index
    %353 = vector.load %arg0[%c0_138, %c0_139, %c0_140] : memref<8x16x1xf32, #tpu.memory_space<vmem>>, vector<1x16x1xf32>
    %354 = vector.shape_cast %353 : vector<1x16x1xf32> to vector<16x1xf32>
    %355 = vector.shape_cast %354 : vector<16x1xf32> to vector<16x1xf32>
    %356 = vector.broadcast %355 : vector<16x1xf32> to vector<16x32xf32>
    %cst_141 = arith.constant 1.000000e+00 : f32
    %357 = vector.broadcast %cst_141 : f32 to vector<16x32xf32>
    %358 = arith.subf %357, %356 : vector<16x32xf32>
    %359 = vector.extract_strided_slice %352 {offsets = [0, 0], sizes = [16, 96], strides = [1, 1]} : vector<16x128xf32> to vector<16x96xf32>
    %360 = arith.negf %359 : vector<16x96xf32>
    %361 = math.exp %360 : vector<16x96xf32>
    %cst_142 = arith.constant 1.000000e+00 : f32
    %362 = vector.broadcast %cst_142 : f32 to vector<16x96xf32>
    %363 = arith.addf %362, %361 : vector<16x96xf32>
    %364 = arith.divf %362, %363 : vector<16x96xf32>
    %365 = vector.extract_strided_slice %364 {offsets = [0, 0], sizes = [16, 32], strides = [1, 1]} : vector<16x96xf32> to vector<16x32xf32>
    %366 = vector.extract_strided_slice %364 {offsets = [0, 32], sizes = [16, 32], strides = [1, 1]} : vector<16x96xf32> to vector<16x32xf32>
    %367 = vector.extract_strided_slice %364 {offsets = [0, 64], sizes = [16, 32], strides = [1, 1]} : vector<16x96xf32> to vector<16x32xf32>
    %368 = vector.extract_strided_slice %352 {offsets = [0, 96], sizes = [16, 32], strides = [1, 1]} : vector<16x128xf32> to vector<16x32xf32>
    %369 = math.tanh %368 : vector<16x32xf32>
    %370 = arith.mulf %366, %343 : vector<16x32xf32>
    %371 = arith.mulf %365, %369 : vector<16x32xf32>
    %372 = arith.addf %370, %371 : vector<16x32xf32>
    %373 = math.tanh %372 : vector<16x32xf32>
    %374 = arith.mulf %367, %373 : vector<16x32xf32>
    %375 = arith.mulf %356, %374 : vector<16x32xf32>
    %376 = arith.mulf %358, %342 : vector<16x32xf32>
    %377 = arith.addf %375, %376 : vector<16x32xf32>
    %378 = arith.mulf %356, %372 : vector<16x32xf32>
    %379 = arith.mulf %358, %343 : vector<16x32xf32>
    %380 = arith.addf %378, %379 : vector<16x32xf32>
    %381 = vector.extract_strided_slice %377 {offsets = [0, 0], sizes = [8, 32], strides = [1, 1]} : vector<16x32xf32> to vector<8x32xf32>
    %cst_143 = arith.constant dense<0.000000e+00> : vector<8x128xf32>
    %382 = tpu.matmul %381, %340, %cst_143 {dimension_numbers = #tpu.dot_dimension_numbers<[1], [0], [0], [1], [0, 0, 1, 1], [], []>} : vector<8x32xf32>, vector<32x128xf32>, vector<8x128xf32> -> vector<8x128xf32>
    %383 = vector.extract_strided_slice %377 {offsets = [8, 0], sizes = [8, 32], strides = [1, 1]} : vector<16x32xf32> to vector<8x32xf32>
    %cst_144 = arith.constant dense<0.000000e+00> : vector<8x128xf32>
    %384 = tpu.matmul %383, %341, %cst_144 {dimension_numbers = #tpu.dot_dimension_numbers<[1], [0], [0], [1], [0, 0, 1, 1], [], []>} : vector<8x32xf32>, vector<32x128xf32>, vector<8x128xf32> -> vector<8x128xf32>
    %c8_145 = arith.constant 8 : index
    %c0_146 = arith.constant 0 : index
    %385 = vector.load %arg14[%c8_145, %c0_146] : memref<64x256xf32, #tpu.memory_space<vmem>>, vector<8x128xf32>
    %386 = arith.addf %385, %382 : vector<8x128xf32>
    %c48_147 = arith.constant 48 : index
    %c128_148 = arith.constant 128 : index
    %387 = vector.load %arg14[%c48_147, %c128_148] : memref<64x256xf32, #tpu.memory_space<vmem>>, vector<8x128xf32>
    %388 = arith.addf %387, %384 : vector<8x128xf32>
    %389 = tpu.concatenate %386, %388 in 0 : vector<8x128xf32>, vector<8x128xf32> -> vector<16x128xf32>
    %c1_149 = arith.constant 1 : index
    %c0_150 = arith.constant 0 : index
    %c0_151 = arith.constant 0 : index
    %390 = vector.load %arg0[%c1_149, %c0_150, %c0_151] : memref<8x16x1xf32, #tpu.memory_space<vmem>>, vector<1x16x1xf32>
    %391 = vector.shape_cast %390 : vector<1x16x1xf32> to vector<16x1xf32>
    %392 = vector.shape_cast %391 : vector<16x1xf32> to vector<16x1xf32>
    %393 = vector.broadcast %392 : vector<16x1xf32> to vector<16x32xf32>
    %cst_152 = arith.constant 1.000000e+00 : f32
    %394 = vector.broadcast %cst_152 : f32 to vector<16x32xf32>
    %395 = arith.subf %394, %393 : vector<16x32xf32>
    %396 = vector.extract_strided_slice %389 {offsets = [0, 0], sizes = [16, 96], strides = [1, 1]} : vector<16x128xf32> to vector<16x96xf32>
    %397 = arith.negf %396 : vector<16x96xf32>
    %398 = math.exp %397 : vector<16x96xf32>
    %cst_153 = arith.constant 1.000000e+00 : f32
    %399 = vector.broadcast %cst_153 : f32 to vector<16x96xf32>
    %400 = arith.addf %399, %398 : vector<16x96xf32>
    %401 = arith.divf %399, %400 : vector<16x96xf32>
    %402 = vector.extract_strided_slice %401 {offsets = [0, 0], sizes = [16, 32], strides = [1, 1]} : vector<16x96xf32> to vector<16x32xf32>
    %403 = vector.extract_strided_slice %401 {offsets = [0, 32], sizes = [16, 32], strides = [1, 1]} : vector<16x96xf32> to vector<16x32xf32>
    %404 = vector.extract_strided_slice %401 {offsets = [0, 64], sizes = [16, 32], strides = [1, 1]} : vector<16x96xf32> to vector<16x32xf32>
    %405 = vector.extract_strided_slice %389 {offsets = [0, 96], sizes = [16, 32], strides = [1, 1]} : vector<16x128xf32> to vector<16x32xf32>
    %406 = math.tanh %405 : vector<16x32xf32>
    %407 = arith.mulf %403, %380 : vector<16x32xf32>
    %408 = arith.mulf %402, %406 : vector<16x32xf32>
    %409 = arith.addf %407, %408 : vector<16x32xf32>
    %410 = math.tanh %409 : vector<16x32xf32>
    %411 = arith.mulf %404, %410 : vector<16x32xf32>
    %412 = arith.mulf %393, %411 : vector<16x32xf32>
    %413 = arith.mulf %395, %377 : vector<16x32xf32>
    %414 = arith.addf %412, %413 : vector<16x32xf32>
    %415 = arith.mulf %393, %409 : vector<16x32xf32>
    %416 = arith.mulf %395, %380 : vector<16x32xf32>
    %417 = arith.addf %415, %416 : vector<16x32xf32>
    %418 = vector.extract_strided_slice %414 {offsets = [0, 0], sizes = [8, 32], strides = [1, 1]} : vector<16x32xf32> to vector<8x32xf32>
    %cst_154 = arith.constant dense<0.000000e+00> : vector<8x128xf32>
    %419 = tpu.matmul %418, %340, %cst_154 {dimension_numbers = #tpu.dot_dimension_numbers<[1], [0], [0], [1], [0, 0, 1, 1], [], []>} : vector<8x32xf32>, vector<32x128xf32>, vector<8x128xf32> -> vector<8x128xf32>
    %420 = vector.extract_strided_slice %414 {offsets = [8, 0], sizes = [8, 32], strides = [1, 1]} : vector<16x32xf32> to vector<8x32xf32>
    %cst_155 = arith.constant dense<0.000000e+00> : vector<8x128xf32>
    %421 = tpu.matmul %420, %341, %cst_155 {dimension_numbers = #tpu.dot_dimension_numbers<[1], [0], [0], [1], [0, 0, 1, 1], [], []>} : vector<8x32xf32>, vector<32x128xf32>, vector<8x128xf32> -> vector<8x128xf32>
    %c16_156 = arith.constant 16 : index
    %c0_157 = arith.constant 0 : index
    %422 = vector.load %arg14[%c16_156, %c0_157] : memref<64x256xf32, #tpu.memory_space<vmem>>, vector<8x128xf32>
    %423 = arith.addf %422, %419 : vector<8x128xf32>
    %c40_158 = arith.constant 40 : index
    %c128_159 = arith.constant 128 : index
    %424 = vector.load %arg14[%c40_158, %c128_159] : memref<64x256xf32, #tpu.memory_space<vmem>>, vector<8x128xf32>
    %425 = arith.addf %424, %421 : vector<8x128xf32>
    %426 = tpu.concatenate %423, %425 in 0 : vector<8x128xf32>, vector<8x128xf32> -> vector<16x128xf32>
    %c2_160 = arith.constant 2 : index
    %c0_161 = arith.constant 0 : index
    %c0_162 = arith.constant 0 : index
    %427 = vector.load %arg0[%c2_160, %c0_161, %c0_162] : memref<8x16x1xf32, #tpu.memory_space<vmem>>, vector<1x16x1xf32>
    %428 = vector.shape_cast %427 : vector<1x16x1xf32> to vector<16x1xf32>
    %429 = vector.shape_cast %428 : vector<16x1xf32> to vector<16x1xf32>
    %430 = vector.broadcast %429 : vector<16x1xf32> to vector<16x32xf32>
    %cst_163 = arith.constant 1.000000e+00 : f32
    %431 = vector.broadcast %cst_163 : f32 to vector<16x32xf32>
    %432 = arith.subf %431, %430 : vector<16x32xf32>
    %433 = vector.extract_strided_slice %426 {offsets = [0, 0], sizes = [16, 96], strides = [1, 1]} : vector<16x128xf32> to vector<16x96xf32>
    %434 = arith.negf %433 : vector<16x96xf32>
    %435 = math.exp %434 : vector<16x96xf32>
    %cst_164 = arith.constant 1.000000e+00 : f32
    %436 = vector.broadcast %cst_164 : f32 to vector<16x96xf32>
    %437 = arith.addf %436, %435 : vector<16x96xf32>
    %438 = arith.divf %436, %437 : vector<16x96xf32>
    %439 = vector.extract_strided_slice %438 {offsets = [0, 0], sizes = [16, 32], strides = [1, 1]} : vector<16x96xf32> to vector<16x32xf32>
    %440 = vector.extract_strided_slice %438 {offsets = [0, 32], sizes = [16, 32], strides = [1, 1]} : vector<16x96xf32> to vector<16x32xf32>
    %441 = vector.extract_strided_slice %438 {offsets = [0, 64], sizes = [16, 32], strides = [1, 1]} : vector<16x96xf32> to vector<16x32xf32>
    %442 = vector.extract_strided_slice %426 {offsets = [0, 96], sizes = [16, 32], strides = [1, 1]} : vector<16x128xf32> to vector<16x32xf32>
    %443 = math.tanh %442 : vector<16x32xf32>
    %444 = arith.mulf %440, %417 : vector<16x32xf32>
    %445 = arith.mulf %439, %443 : vector<16x32xf32>
    %446 = arith.addf %444, %445 : vector<16x32xf32>
    %447 = math.tanh %446 : vector<16x32xf32>
    %448 = arith.mulf %441, %447 : vector<16x32xf32>
    %449 = arith.mulf %430, %448 : vector<16x32xf32>
    %450 = arith.mulf %432, %414 : vector<16x32xf32>
    %451 = arith.addf %449, %450 : vector<16x32xf32>
    %452 = arith.mulf %430, %446 : vector<16x32xf32>
    %453 = arith.mulf %432, %417 : vector<16x32xf32>
    %454 = arith.addf %452, %453 : vector<16x32xf32>
    %455 = vector.extract_strided_slice %451 {offsets = [0, 0], sizes = [8, 32], strides = [1, 1]} : vector<16x32xf32> to vector<8x32xf32>
    %cst_165 = arith.constant dense<0.000000e+00> : vector<8x128xf32>
    %456 = tpu.matmul %455, %340, %cst_165 {dimension_numbers = #tpu.dot_dimension_numbers<[1], [0], [0], [1], [0, 0, 1, 1], [], []>} : vector<8x32xf32>, vector<32x128xf32>, vector<8x128xf32> -> vector<8x128xf32>
    %457 = vector.extract_strided_slice %451 {offsets = [8, 0], sizes = [8, 32], strides = [1, 1]} : vector<16x32xf32> to vector<8x32xf32>
    %cst_166 = arith.constant dense<0.000000e+00> : vector<8x128xf32>
    %458 = tpu.matmul %457, %341, %cst_166 {dimension_numbers = #tpu.dot_dimension_numbers<[1], [0], [0], [1], [0, 0, 1, 1], [], []>} : vector<8x32xf32>, vector<32x128xf32>, vector<8x128xf32> -> vector<8x128xf32>
    %c24_167 = arith.constant 24 : index
    %c0_168 = arith.constant 0 : index
    %459 = vector.load %arg14[%c24_167, %c0_168] : memref<64x256xf32, #tpu.memory_space<vmem>>, vector<8x128xf32>
    %460 = arith.addf %459, %456 : vector<8x128xf32>
    %c32_169 = arith.constant 32 : index
    %c128_170 = arith.constant 128 : index
    %461 = vector.load %arg14[%c32_169, %c128_170] : memref<64x256xf32, #tpu.memory_space<vmem>>, vector<8x128xf32>
    %462 = arith.addf %461, %458 : vector<8x128xf32>
    %463 = tpu.concatenate %460, %462 in 0 : vector<8x128xf32>, vector<8x128xf32> -> vector<16x128xf32>
    %c3_171 = arith.constant 3 : index
    %c0_172 = arith.constant 0 : index
    %c0_173 = arith.constant 0 : index
    %464 = vector.load %arg0[%c3_171, %c0_172, %c0_173] : memref<8x16x1xf32, #tpu.memory_space<vmem>>, vector<1x16x1xf32>
    %465 = vector.shape_cast %464 : vector<1x16x1xf32> to vector<16x1xf32>
    %466 = vector.shape_cast %465 : vector<16x1xf32> to vector<16x1xf32>
    %467 = vector.broadcast %466 : vector<16x1xf32> to vector<16x32xf32>
    %cst_174 = arith.constant 1.000000e+00 : f32
    %468 = vector.broadcast %cst_174 : f32 to vector<16x32xf32>
    %469 = arith.subf %468, %467 : vector<16x32xf32>
    %470 = vector.extract_strided_slice %463 {offsets = [0, 0], sizes = [16, 96], strides = [1, 1]} : vector<16x128xf32> to vector<16x96xf32>
    %471 = arith.negf %470 : vector<16x96xf32>
    %472 = math.exp %471 : vector<16x96xf32>
    %cst_175 = arith.constant 1.000000e+00 : f32
    %473 = vector.broadcast %cst_175 : f32 to vector<16x96xf32>
    %474 = arith.addf %473, %472 : vector<16x96xf32>
    %475 = arith.divf %473, %474 : vector<16x96xf32>
    %476 = vector.extract_strided_slice %475 {offsets = [0, 0], sizes = [16, 32], strides = [1, 1]} : vector<16x96xf32> to vector<16x32xf32>
    %477 = vector.extract_strided_slice %475 {offsets = [0, 32], sizes = [16, 32], strides = [1, 1]} : vector<16x96xf32> to vector<16x32xf32>
    %478 = vector.extract_strided_slice %475 {offsets = [0, 64], sizes = [16, 32], strides = [1, 1]} : vector<16x96xf32> to vector<16x32xf32>
    %479 = vector.extract_strided_slice %463 {offsets = [0, 96], sizes = [16, 32], strides = [1, 1]} : vector<16x128xf32> to vector<16x32xf32>
    %480 = math.tanh %479 : vector<16x32xf32>
    %481 = arith.mulf %477, %454 : vector<16x32xf32>
    %482 = arith.mulf %476, %480 : vector<16x32xf32>
    %483 = arith.addf %481, %482 : vector<16x32xf32>
    %484 = math.tanh %483 : vector<16x32xf32>
    %485 = arith.mulf %478, %484 : vector<16x32xf32>
    %486 = arith.mulf %467, %485 : vector<16x32xf32>
    %487 = arith.mulf %469, %451 : vector<16x32xf32>
    %488 = arith.addf %486, %487 : vector<16x32xf32>
    %489 = arith.mulf %467, %483 : vector<16x32xf32>
    %490 = arith.mulf %469, %454 : vector<16x32xf32>
    %491 = arith.addf %489, %490 : vector<16x32xf32>
    %492 = vector.extract_strided_slice %488 {offsets = [0, 0], sizes = [8, 32], strides = [1, 1]} : vector<16x32xf32> to vector<8x32xf32>
    %cst_176 = arith.constant dense<0.000000e+00> : vector<8x128xf32>
    %493 = tpu.matmul %492, %340, %cst_176 {dimension_numbers = #tpu.dot_dimension_numbers<[1], [0], [0], [1], [0, 0, 1, 1], [], []>} : vector<8x32xf32>, vector<32x128xf32>, vector<8x128xf32> -> vector<8x128xf32>
    %494 = vector.extract_strided_slice %488 {offsets = [8, 0], sizes = [8, 32], strides = [1, 1]} : vector<16x32xf32> to vector<8x32xf32>
    %cst_177 = arith.constant dense<0.000000e+00> : vector<8x128xf32>
    %495 = tpu.matmul %494, %341, %cst_177 {dimension_numbers = #tpu.dot_dimension_numbers<[1], [0], [0], [1], [0, 0, 1, 1], [], []>} : vector<8x32xf32>, vector<32x128xf32>, vector<8x128xf32> -> vector<8x128xf32>
    %c32_178 = arith.constant 32 : index
    %c0_179 = arith.constant 0 : index
    %496 = vector.load %arg14[%c32_178, %c0_179] : memref<64x256xf32, #tpu.memory_space<vmem>>, vector<8x128xf32>
    %497 = arith.addf %496, %493 : vector<8x128xf32>
    %c24_180 = arith.constant 24 : index
    %c128_181 = arith.constant 128 : index
    %498 = vector.load %arg14[%c24_180, %c128_181] : memref<64x256xf32, #tpu.memory_space<vmem>>, vector<8x128xf32>
    %499 = arith.addf %498, %495 : vector<8x128xf32>
    %500 = tpu.concatenate %497, %499 in 0 : vector<8x128xf32>, vector<8x128xf32> -> vector<16x128xf32>
    %c4_182 = arith.constant 4 : index
    %c0_183 = arith.constant 0 : index
    %c0_184 = arith.constant 0 : index
    %501 = vector.load %arg0[%c4_182, %c0_183, %c0_184] : memref<8x16x1xf32, #tpu.memory_space<vmem>>, vector<1x16x1xf32>
    %502 = vector.shape_cast %501 : vector<1x16x1xf32> to vector<16x1xf32>
    %503 = vector.shape_cast %502 : vector<16x1xf32> to vector<16x1xf32>
    %504 = vector.broadcast %503 : vector<16x1xf32> to vector<16x32xf32>
    %cst_185 = arith.constant 1.000000e+00 : f32
    %505 = vector.broadcast %cst_185 : f32 to vector<16x32xf32>
    %506 = arith.subf %505, %504 : vector<16x32xf32>
    %507 = vector.extract_strided_slice %500 {offsets = [0, 0], sizes = [16, 96], strides = [1, 1]} : vector<16x128xf32> to vector<16x96xf32>
    %508 = arith.negf %507 : vector<16x96xf32>
    %509 = math.exp %508 : vector<16x96xf32>
    %cst_186 = arith.constant 1.000000e+00 : f32
    %510 = vector.broadcast %cst_186 : f32 to vector<16x96xf32>
    %511 = arith.addf %510, %509 : vector<16x96xf32>
    %512 = arith.divf %510, %511 : vector<16x96xf32>
    %513 = vector.extract_strided_slice %512 {offsets = [0, 0], sizes = [16, 32], strides = [1, 1]} : vector<16x96xf32> to vector<16x32xf32>
    %514 = vector.extract_strided_slice %512 {offsets = [0, 32], sizes = [16, 32], strides = [1, 1]} : vector<16x96xf32> to vector<16x32xf32>
    %515 = vector.extract_strided_slice %512 {offsets = [0, 64], sizes = [16, 32], strides = [1, 1]} : vector<16x96xf32> to vector<16x32xf32>
    %516 = vector.extract_strided_slice %500 {offsets = [0, 96], sizes = [16, 32], strides = [1, 1]} : vector<16x128xf32> to vector<16x32xf32>
    %517 = math.tanh %516 : vector<16x32xf32>
    %518 = arith.mulf %514, %491 : vector<16x32xf32>
    %519 = arith.mulf %513, %517 : vector<16x32xf32>
    %520 = arith.addf %518, %519 : vector<16x32xf32>
    %521 = math.tanh %520 : vector<16x32xf32>
    %522 = arith.mulf %515, %521 : vector<16x32xf32>
    %523 = arith.mulf %504, %522 : vector<16x32xf32>
    %524 = arith.mulf %506, %488 : vector<16x32xf32>
    %525 = arith.addf %523, %524 : vector<16x32xf32>
    %526 = arith.mulf %504, %520 : vector<16x32xf32>
    %527 = arith.mulf %506, %491 : vector<16x32xf32>
    %528 = arith.addf %526, %527 : vector<16x32xf32>
    %529 = vector.extract_strided_slice %525 {offsets = [0, 0], sizes = [8, 32], strides = [1, 1]} : vector<16x32xf32> to vector<8x32xf32>
    %cst_187 = arith.constant dense<0.000000e+00> : vector<8x128xf32>
    %530 = tpu.matmul %529, %340, %cst_187 {dimension_numbers = #tpu.dot_dimension_numbers<[1], [0], [0], [1], [0, 0, 1, 1], [], []>} : vector<8x32xf32>, vector<32x128xf32>, vector<8x128xf32> -> vector<8x128xf32>
    %531 = vector.extract_strided_slice %525 {offsets = [8, 0], sizes = [8, 32], strides = [1, 1]} : vector<16x32xf32> to vector<8x32xf32>
    %cst_188 = arith.constant dense<0.000000e+00> : vector<8x128xf32>
    %532 = tpu.matmul %531, %341, %cst_188 {dimension_numbers = #tpu.dot_dimension_numbers<[1], [0], [0], [1], [0, 0, 1, 1], [], []>} : vector<8x32xf32>, vector<32x128xf32>, vector<8x128xf32> -> vector<8x128xf32>
    %c40_189 = arith.constant 40 : index
    %c0_190 = arith.constant 0 : index
    %533 = vector.load %arg14[%c40_189, %c0_190] : memref<64x256xf32, #tpu.memory_space<vmem>>, vector<8x128xf32>
    %534 = arith.addf %533, %530 : vector<8x128xf32>
    %c16_191 = arith.constant 16 : index
    %c128_192 = arith.constant 128 : index
    %535 = vector.load %arg14[%c16_191, %c128_192] : memref<64x256xf32, #tpu.memory_space<vmem>>, vector<8x128xf32>
    %536 = arith.addf %535, %532 : vector<8x128xf32>
    %537 = tpu.concatenate %534, %536 in 0 : vector<8x128xf32>, vector<8x128xf32> -> vector<16x128xf32>
    %c5_193 = arith.constant 5 : index
    %c0_194 = arith.constant 0 : index
    %c0_195 = arith.constant 0 : index
    %538 = vector.load %arg0[%c5_193, %c0_194, %c0_195] : memref<8x16x1xf32, #tpu.memory_space<vmem>>, vector<1x16x1xf32>
    %539 = vector.shape_cast %538 : vector<1x16x1xf32> to vector<16x1xf32>
    %540 = vector.shape_cast %539 : vector<16x1xf32> to vector<16x1xf32>
    %541 = vector.broadcast %540 : vector<16x1xf32> to vector<16x32xf32>
    %cst_196 = arith.constant 1.000000e+00 : f32
    %542 = vector.broadcast %cst_196 : f32 to vector<16x32xf32>
    %543 = arith.subf %542, %541 : vector<16x32xf32>
    %544 = vector.extract_strided_slice %537 {offsets = [0, 0], sizes = [16, 96], strides = [1, 1]} : vector<16x128xf32> to vector<16x96xf32>
    %545 = arith.negf %544 : vector<16x96xf32>
    %546 = math.exp %545 : vector<16x96xf32>
    %cst_197 = arith.constant 1.000000e+00 : f32
    %547 = vector.broadcast %cst_197 : f32 to vector<16x96xf32>
    %548 = arith.addf %547, %546 : vector<16x96xf32>
    %549 = arith.divf %547, %548 : vector<16x96xf32>
    %550 = vector.extract_strided_slice %549 {offsets = [0, 0], sizes = [16, 32], strides = [1, 1]} : vector<16x96xf32> to vector<16x32xf32>
    %551 = vector.extract_strided_slice %549 {offsets = [0, 32], sizes = [16, 32], strides = [1, 1]} : vector<16x96xf32> to vector<16x32xf32>
    %552 = vector.extract_strided_slice %549 {offsets = [0, 64], sizes = [16, 32], strides = [1, 1]} : vector<16x96xf32> to vector<16x32xf32>
    %553 = vector.extract_strided_slice %537 {offsets = [0, 96], sizes = [16, 32], strides = [1, 1]} : vector<16x128xf32> to vector<16x32xf32>
    %554 = math.tanh %553 : vector<16x32xf32>
    %555 = arith.mulf %551, %528 : vector<16x32xf32>
    %556 = arith.mulf %550, %554 : vector<16x32xf32>
    %557 = arith.addf %555, %556 : vector<16x32xf32>
    %558 = math.tanh %557 : vector<16x32xf32>
    %559 = arith.mulf %552, %558 : vector<16x32xf32>
    %560 = arith.mulf %541, %559 : vector<16x32xf32>
    %561 = arith.mulf %543, %525 : vector<16x32xf32>
    %562 = arith.addf %560, %561 : vector<16x32xf32>
    %563 = arith.mulf %541, %557 : vector<16x32xf32>
    %564 = arith.mulf %543, %528 : vector<16x32xf32>
    %565 = arith.addf %563, %564 : vector<16x32xf32>
    %566 = vector.extract_strided_slice %562 {offsets = [0, 0], sizes = [8, 32], strides = [1, 1]} : vector<16x32xf32> to vector<8x32xf32>
    %cst_198 = arith.constant dense<0.000000e+00> : vector<8x128xf32>
    %567 = tpu.matmul %566, %340, %cst_198 {dimension_numbers = #tpu.dot_dimension_numbers<[1], [0], [0], [1], [0, 0, 1, 1], [], []>} : vector<8x32xf32>, vector<32x128xf32>, vector<8x128xf32> -> vector<8x128xf32>
    %568 = vector.extract_strided_slice %562 {offsets = [8, 0], sizes = [8, 32], strides = [1, 1]} : vector<16x32xf32> to vector<8x32xf32>
    %cst_199 = arith.constant dense<0.000000e+00> : vector<8x128xf32>
    %569 = tpu.matmul %568, %341, %cst_199 {dimension_numbers = #tpu.dot_dimension_numbers<[1], [0], [0], [1], [0, 0, 1, 1], [], []>} : vector<8x32xf32>, vector<32x128xf32>, vector<8x128xf32> -> vector<8x128xf32>
    %c48_200 = arith.constant 48 : index
    %c0_201 = arith.constant 0 : index
    %570 = vector.load %arg14[%c48_200, %c0_201] : memref<64x256xf32, #tpu.memory_space<vmem>>, vector<8x128xf32>
    %571 = arith.addf %570, %567 : vector<8x128xf32>
    %c8_202 = arith.constant 8 : index
    %c128_203 = arith.constant 128 : index
    %572 = vector.load %arg14[%c8_202, %c128_203] : memref<64x256xf32, #tpu.memory_space<vmem>>, vector<8x128xf32>
    %573 = arith.addf %572, %569 : vector<8x128xf32>
    %574 = tpu.concatenate %571, %573 in 0 : vector<8x128xf32>, vector<8x128xf32> -> vector<16x128xf32>
    %c6_204 = arith.constant 6 : index
    %c0_205 = arith.constant 0 : index
    %c0_206 = arith.constant 0 : index
    %575 = vector.load %arg0[%c6_204, %c0_205, %c0_206] : memref<8x16x1xf32, #tpu.memory_space<vmem>>, vector<1x16x1xf32>
    %576 = vector.shape_cast %575 : vector<1x16x1xf32> to vector<16x1xf32>
    %577 = vector.shape_cast %576 : vector<16x1xf32> to vector<16x1xf32>
    %578 = vector.broadcast %577 : vector<16x1xf32> to vector<16x32xf32>
    %cst_207 = arith.constant 1.000000e+00 : f32
    %579 = vector.broadcast %cst_207 : f32 to vector<16x32xf32>
    %580 = arith.subf %579, %578 : vector<16x32xf32>
    %581 = vector.extract_strided_slice %574 {offsets = [0, 0], sizes = [16, 96], strides = [1, 1]} : vector<16x128xf32> to vector<16x96xf32>
    %582 = arith.negf %581 : vector<16x96xf32>
    %583 = math.exp %582 : vector<16x96xf32>
    %cst_208 = arith.constant 1.000000e+00 : f32
    %584 = vector.broadcast %cst_208 : f32 to vector<16x96xf32>
    %585 = arith.addf %584, %583 : vector<16x96xf32>
    %586 = arith.divf %584, %585 : vector<16x96xf32>
    %587 = vector.extract_strided_slice %586 {offsets = [0, 0], sizes = [16, 32], strides = [1, 1]} : vector<16x96xf32> to vector<16x32xf32>
    %588 = vector.extract_strided_slice %586 {offsets = [0, 32], sizes = [16, 32], strides = [1, 1]} : vector<16x96xf32> to vector<16x32xf32>
    %589 = vector.extract_strided_slice %586 {offsets = [0, 64], sizes = [16, 32], strides = [1, 1]} : vector<16x96xf32> to vector<16x32xf32>
    %590 = vector.extract_strided_slice %574 {offsets = [0, 96], sizes = [16, 32], strides = [1, 1]} : vector<16x128xf32> to vector<16x32xf32>
    %591 = math.tanh %590 : vector<16x32xf32>
    %592 = arith.mulf %588, %565 : vector<16x32xf32>
    %593 = arith.mulf %587, %591 : vector<16x32xf32>
    %594 = arith.addf %592, %593 : vector<16x32xf32>
    %595 = math.tanh %594 : vector<16x32xf32>
    %596 = arith.mulf %589, %595 : vector<16x32xf32>
    %597 = arith.mulf %578, %596 : vector<16x32xf32>
    %598 = arith.mulf %580, %562 : vector<16x32xf32>
    %599 = arith.addf %597, %598 : vector<16x32xf32>
    %600 = arith.mulf %578, %594 : vector<16x32xf32>
    %601 = arith.mulf %580, %565 : vector<16x32xf32>
    %602 = arith.addf %600, %601 : vector<16x32xf32>
    %603 = vector.extract_strided_slice %599 {offsets = [0, 0], sizes = [8, 32], strides = [1, 1]} : vector<16x32xf32> to vector<8x32xf32>
    %cst_209 = arith.constant dense<0.000000e+00> : vector<8x128xf32>
    %604 = tpu.matmul %603, %340, %cst_209 {dimension_numbers = #tpu.dot_dimension_numbers<[1], [0], [0], [1], [0, 0, 1, 1], [], []>} : vector<8x32xf32>, vector<32x128xf32>, vector<8x128xf32> -> vector<8x128xf32>
    %605 = vector.extract_strided_slice %599 {offsets = [8, 0], sizes = [8, 32], strides = [1, 1]} : vector<16x32xf32> to vector<8x32xf32>
    %cst_210 = arith.constant dense<0.000000e+00> : vector<8x128xf32>
    %606 = tpu.matmul %605, %341, %cst_210 {dimension_numbers = #tpu.dot_dimension_numbers<[1], [0], [0], [1], [0, 0, 1, 1], [], []>} : vector<8x32xf32>, vector<32x128xf32>, vector<8x128xf32> -> vector<8x128xf32>
    %c56_211 = arith.constant 56 : index
    %c0_212 = arith.constant 0 : index
    %607 = vector.load %arg14[%c56_211, %c0_212] : memref<64x256xf32, #tpu.memory_space<vmem>>, vector<8x128xf32>
    %608 = arith.addf %607, %604 : vector<8x128xf32>
    %c0_213 = arith.constant 0 : index
    %c128_214 = arith.constant 128 : index
    %609 = vector.load %arg14[%c0_213, %c128_214] : memref<64x256xf32, #tpu.memory_space<vmem>>, vector<8x128xf32>
    %610 = arith.addf %609, %606 : vector<8x128xf32>
    %611 = tpu.concatenate %608, %610 in 0 : vector<8x128xf32>, vector<8x128xf32> -> vector<16x128xf32>
    %c7_215 = arith.constant 7 : index
    %c0_216 = arith.constant 0 : index
    %c0_217 = arith.constant 0 : index
    %612 = vector.load %arg0[%c7_215, %c0_216, %c0_217] : memref<8x16x1xf32, #tpu.memory_space<vmem>>, vector<1x16x1xf32>
    %613 = vector.shape_cast %612 : vector<1x16x1xf32> to vector<16x1xf32>
    %614 = vector.shape_cast %613 : vector<16x1xf32> to vector<16x1xf32>
    %615 = vector.broadcast %614 : vector<16x1xf32> to vector<16x32xf32>
    %cst_218 = arith.constant 1.000000e+00 : f32
    %616 = vector.broadcast %cst_218 : f32 to vector<16x32xf32>
    %617 = arith.subf %616, %615 : vector<16x32xf32>
    %618 = vector.extract_strided_slice %611 {offsets = [0, 0], sizes = [16, 96], strides = [1, 1]} : vector<16x128xf32> to vector<16x96xf32>
    %619 = arith.negf %618 : vector<16x96xf32>
    %620 = math.exp %619 : vector<16x96xf32>
    %cst_219 = arith.constant 1.000000e+00 : f32
    %621 = vector.broadcast %cst_219 : f32 to vector<16x96xf32>
    %622 = arith.addf %621, %620 : vector<16x96xf32>
    %623 = arith.divf %621, %622 : vector<16x96xf32>
    %624 = vector.extract_strided_slice %623 {offsets = [0, 0], sizes = [16, 32], strides = [1, 1]} : vector<16x96xf32> to vector<16x32xf32>
    %625 = vector.extract_strided_slice %623 {offsets = [0, 32], sizes = [16, 32], strides = [1, 1]} : vector<16x96xf32> to vector<16x32xf32>
    %626 = vector.extract_strided_slice %623 {offsets = [0, 64], sizes = [16, 32], strides = [1, 1]} : vector<16x96xf32> to vector<16x32xf32>
    %627 = vector.extract_strided_slice %611 {offsets = [0, 96], sizes = [16, 32], strides = [1, 1]} : vector<16x128xf32> to vector<16x32xf32>
    %628 = math.tanh %627 : vector<16x32xf32>
    %629 = arith.mulf %625, %602 : vector<16x32xf32>
    %630 = arith.mulf %624, %628 : vector<16x32xf32>
    %631 = arith.addf %629, %630 : vector<16x32xf32>
    %632 = math.tanh %631 : vector<16x32xf32>
    %633 = arith.mulf %626, %632 : vector<16x32xf32>
    %634 = arith.mulf %615, %633 : vector<16x32xf32>
    %635 = arith.mulf %617, %599 : vector<16x32xf32>
    %636 = arith.addf %634, %635 : vector<16x32xf32>
    %637 = vector.extract_strided_slice %636 {offsets = [0, 0], sizes = [8, 32], strides = [1, 1]} : vector<16x32xf32> to vector<8x32xf32>
    %638 = vector.extract_strided_slice %636 {offsets = [8, 0], sizes = [8, 32], strides = [1, 1]} : vector<16x32xf32> to vector<8x32xf32>
    %c0_220 = arith.constant 0 : index
    %c0_221 = arith.constant 0 : index
    %639 = vector.load %arg10[%c0_220, %c0_221] : memref<32x1xf32, #tpu.memory_space<vmem>>, vector<32x1xf32>
    %cst_222 = arith.constant dense<0.000000e+00> : vector<8x1xf32>
    %640 = tpu.matmul %637, %639, %cst_222 {dimension_numbers = #tpu.dot_dimension_numbers<[1], [0], [0], [1], [0, 0, 1, 1], [], []>} : vector<8x32xf32>, vector<32x1xf32>, vector<8x1xf32> -> vector<8x1xf32>
    %c0_223 = arith.constant 0 : index
    %c0_224 = arith.constant 0 : index
    %641 = vector.load %arg11[%c0_223, %c0_224] : memref<32x1xf32, #tpu.memory_space<vmem>>, vector<32x1xf32>
    %cst_225 = arith.constant dense<0.000000e+00> : vector<8x1xf32>
    %642 = tpu.matmul %638, %641, %cst_225 {dimension_numbers = #tpu.dot_dimension_numbers<[1], [0], [0], [1], [0, 0, 1, 1], [], []>} : vector<8x32xf32>, vector<32x1xf32>, vector<8x1xf32> -> vector<8x1xf32>
    %643 = arith.addf %640, %642 : vector<8x1xf32>
    %c0_226 = arith.constant 0 : index
    %c0_227 = arith.constant 0 : index
    %644 = vector.load %arg12[%c0_226, %c0_227] : memref<1x1xf32, #tpu.memory_space<vmem>>, vector<1x1xf32>
    %645 = vector.broadcast %644 : vector<1x1xf32> to vector<8x1xf32>
    %646 = arith.addf %643, %645 : vector<8x1xf32>
    %647 = arith.negf %646 : vector<8x1xf32>
    %648 = math.exp %647 : vector<8x1xf32>
    %cst_228 = arith.constant 1.000000e+00 : f32
    %649 = vector.broadcast %cst_228 : f32 to vector<8x1xf32>
    %650 = arith.addf %649, %648 : vector<8x1xf32>
    %651 = arith.divf %649, %650 : vector<8x1xf32>
    %c0_229 = arith.constant 0 : index
    %c0_230 = arith.constant 0 : index
    %652 = vector.load %arg13[%c0_229, %c0_230] : memref<8x1xf32, #tpu.memory_space<vmem>>, vector<8x1xf32>
    tpu.vector_store %arg13[%c0_229, %c0_230], %651 {strides = array<i32>} : memref<8x1xf32, #tpu.memory_space<vmem>>, vector<8x1xf32>,
    return
  }
}

</mosaic_0001>

<llo_original>
// kernel: tpu_custom_call.1
$region0: #{tpu_custom_call.1}
  #allocation0 [shape = 'u32[]', space=smem, size = 0x4, offset = 0x4, fixed_abs, tag = 'smem constant byte address 0x4 - core index']
  #allocation1 [shape = 'u32[144,128]{1,0:T(1,128)}', space=vmem, size = 0x12000, scoped, tag = 'internal scratch']
  #allocation2 [shape = 'f32[64,256]{1,0:T(8,128)}', space=vmem, size = 0x10000, scoped, tag = 'scratch operand']
  #allocation3 [shape = 'f32[64,64]{1,0:T(8,128)}', space=vmem, size = 0x8000, scoped, tag = 'scratch operand']
  #allocation4 [shape = 'f32[1,1]{1,0:T(1,128)S(1)}', space=vmem, size = 0x200, scoped, tag = 'scoped memory for tpu_custom_call.1']
  %s0 = inlined_call_operand.vmem [shape: f32[8,16,1], index: 0, kind: input, shape index: {}]
  %s1 = inlined_call_operand.vmem [shape: bf16[64,16], index: 1, kind: input, shape index: {}]
  %s2 = inlined_call_operand.vmem [shape: bf16[16,256], index: 2, kind: input, shape index: {}]
  %s3 = inlined_call_operand.vmem [shape: f32[1,256], index: 3, kind: input, shape index: {}]
  %s4 = inlined_call_operand.vmem [shape: f32[32,128], index: 4, kind: input, shape index: {}]
  %s5 = inlined_call_operand.vmem [shape: f32[32,128], index: 5, kind: input, shape index: {}]
  %s6 = inlined_call_operand.vmem [shape: bf16[64,256], index: 6, kind: input, shape index: {}]
  %s7 = inlined_call_operand.vmem [shape: f32[1,256], index: 7, kind: input, shape index: {}]
  %s8 = inlined_call_operand.vmem [shape: f32[32,128], index: 8, kind: input, shape index: {}]
  %s9 = inlined_call_operand.vmem [shape: f32[32,128], index: 9, kind: input, shape index: {}]
  %s10 = inlined_call_operand.vmem [shape: f32[32,1], index: 10, kind: input, shape index: {}]
  %s11 = inlined_call_operand.vmem [shape: f32[32,1], index: 11, kind: input, shape index: {}]
  %s12 = inlined_call_operand.<no memory space> [shape: f32[1,1], index: 12, kind: input, shape index: {}]
  %s13 = inlined_call_operand.vmem [shape: f32[8,1], index: 13, kind: output, shape index: {}]
  %s14 = sld [smem:[#allocation0]]
  $region62: #{tpu_custom_call.1} parent=0
    _
  %s16 = ssub.s32 1, %s14
  %s17 = scalar_select 0, %s16, %s14
  %v18 = vstv %s12
  %19 = vst [vmem:[#allocation4] sm:$0x1] %v18
  // Predicated region
  $region2: #{tpu_custom_call.1} parent=0 // pred_check
    _
  $region3: #{tpu_custom_call.1} parent=0 // pred_check_branch
    %21 = sbr.rel (0) target = $region5
  $region4: #{tpu_custom_call.1} parent=0 // pred_region
    _
  $region5: #{tpu_custom_call.1} parent=0 // pred_fallthru
    _
  // Predicated region
  $region6: #{tpu_custom_call.1} parent=0 // pred_check
    _
  $region7: #{tpu_custom_call.1} parent=0 // pred_check_branch
    %23 = sbr.rel (0) target = $region9
  $region8: #{tpu_custom_call.1} parent=0 // pred_region
    _
  $region9: #{tpu_custom_call.1} parent=0 // pred_fallthru
    _
  // Predicated region
  $region10: #{tpu_custom_call.1} parent=0 // pred_check
    _
  $region11: #{tpu_custom_call.1} parent=0 // pred_check_branch
    %25 = sbr.rel (0) target = $region13
  $region12: #{tpu_custom_call.1} parent=0 // pred_region
    _
  $region13: #{tpu_custom_call.1} parent=0 // pred_fallthru
    _
  // Predicated region
  $region14: #{tpu_custom_call.1} parent=0 // pred_check
    _
  $region15: #{tpu_custom_call.1} parent=0 // pred_check_branch
    %27 = sbr.rel (0) target = $region17
  $region16: #{tpu_custom_call.1} parent=0 // pred_region
    _
  $region17: #{tpu_custom_call.1} parent=0 // pred_fallthru
    _
  // Predicated region
  $region18: #{tpu_custom_call.1} parent=0 // pred_check
    _
  $region19: #{tpu_custom_call.1} parent=0 // pred_check_branch
    %29 = sbr.rel (0) target = $region21
  $region20: #{tpu_custom_call.1} parent=0 // pred_region
    _
  $region21: #{tpu_custom_call.1} parent=0 // pred_fallthru
    _
  // Predicated region
  $region22: #{tpu_custom_call.1} parent=0 // pred_check
    _
  $region23: #{tpu_custom_call.1} parent=0 // pred_check_branch
    %31 = sbr.rel (0) target = $region25
  $region24: #{tpu_custom_call.1} parent=0 // pred_region
    _
  $region25: #{tpu_custom_call.1} parent=0 // pred_fallthru
    _
  // Predicated region
  $region26: #{tpu_custom_call.1} parent=0 // pred_check
    _
  $region27: #{tpu_custom_call.1} parent=0 // pred_check_branch
    %33 = sbr.rel (0) target = $region29
  $region28: #{tpu_custom_call.1} parent=0 // pred_region
    _
  $region29: #{tpu_custom_call.1} parent=0 // pred_fallthru
    _
  // Predicated region
  $region30: #{tpu_custom_call.1} parent=0 // pred_check
    _
  $region31: #{tpu_custom_call.1} parent=0 // pred_check_branch
    %35 = sbr.rel (0) target = $region33
  $region32: #{tpu_custom_call.1} parent=0 // pred_region
    _
  $region33: #{tpu_custom_call.1} parent=0 // pred_fallthru
    _
  // Predicated region
  $region34: #{tpu_custom_call.1} parent=0 // pred_check
    _
  $region35: #{tpu_custom_call.1} parent=0 // pred_check_branch
    %37 = sbr.rel (0) target = $region37
  $region36: #{tpu_custom_call.1} parent=0 // pred_region
    _
  $region37: #{tpu_custom_call.1} parent=0 // pred_fallthru
    _
  // Predicated region
  $region38: #{tpu_custom_call.1} parent=0 // pred_check
    _
  $region39: #{tpu_custom_call.1} parent=0 // pred_check_branch
    %39 = sbr.rel (0) target = $region41
  $region40: #{tpu_custom_call.1} parent=0 // pred_region
    _
  $region41: #{tpu_custom_call.1} parent=0 // pred_fallthru
    _
  // Predicated region
  $region42: #{tpu_custom_call.1} parent=0 // pred_check
    _
  $region43: #{tpu_custom_call.1} parent=0 // pred_check_branch
    %41 = sbr.rel (0) target = $region45
  $region44: #{tpu_custom_call.1} parent=0 // pred_region
    _
  $region45: #{tpu_custom_call.1} parent=0 // pred_fallthru
    _
  // Predicated region
  $region46: #{tpu_custom_call.1} parent=0 // pred_check
    _
  $region47: #{tpu_custom_call.1} parent=0 // pred_check_branch
    %43 = sbr.rel (0) target = $region49
  $region48: #{tpu_custom_call.1} parent=0 // pred_region
    _
  $region49: #{tpu_custom_call.1} parent=0 // pred_fallthru
    _
  // Predicated region
  $region50: #{tpu_custom_call.1} parent=0 // pred_check
    _
  $region51: #{tpu_custom_call.1} parent=0 // pred_check_branch
    %45 = sbr.rel (0) target = $region53
  $region52: #{tpu_custom_call.1} parent=0 // pred_region
    _
  $region53: #{tpu_custom_call.1} parent=0 // pred_fallthru
    _
  %v47 = vld [vmem:[%s1] sm:$0xf]
  %v48 = vld [vmem:[%s1 + $0x4] sm:$0xf]
  %v49 = vld [vmem:[%s1 + $0x8] sm:$0xf]
  %v50 = vld [vmem:[%s1 + $0xc] sm:$0xf]
  %v51 = vld [vmem:[%s1 + $0x10] sm:$0xf]
  %v52 = vld [vmem:[%s1 + $0x14] sm:$0xf]
  %v53 = vld [vmem:[%s1 + $0x18] sm:$0xf]
  %v54 = vld [vmem:[%s1 + $0x1c] sm:$0xf]
  %v55 = vld [vmem:[%s2] sm:$0xff]
  %v56 = vld [vmem:[%s2 + $0x8] sm:$0xff]
  %v57 = vld [vmem:[%s3] sm:$0x3]
  %v59 = vlaneseq
  %v60 = vshrl.u32 %v59, 7
  %v61 = vsub.s32 0, %v60
  %v62 = vrot.slane %v57, %v61
  %v63 = vlaneseq
  %v64 = vshrl.u32 %v63, 7
  %v65 = vsub.s32 1, %v64
  %v66 = vrot.slane %v57, %v65
  %v77 = vunpack.c.l.b16 %v47
  %v78 = vunpack.c.l.b16 %v48
  %v79 = vunpack.c.l.b16 %v49
  %v80 = vunpack.c.l.b16 %v50
  %v81 = vunpack.c.l.b16 %v51
  %v82 = vunpack.c.l.b16 %v52
  %v83 = vunpack.c.l.b16 %v53
  %v84 = vunpack.c.l.b16 %v54
  %v85 = vpack.c.b16 %v78, %v77
  %v86 = vpack.c.b16 %v80, %v79
  %v87 = vpack.c.b16 %v82, %v81
  %v88 = vpack.c.b16 %v84, %v83
  %v91 = vunpack.c.l.b16 %v55
  %v92 = vunpack.c.h.b16 %v55
  %v93 = vunpack.c.l.b16 %v56
  %v94 = vunpack.c.h.b16 %v56
  %v95 = vpack.c.b16 %v93, %v91
  %v96 = vpack.c.b16 %v94, %v92
  %vm99 = vcmask 130048
  %v101 = vsel %vm99, %v85, 0
  %v104 = vsel %vm99, %v86, 0
  %v107 = vsel %vm99, %v87, 0
  %v110 = vsel %vm99, %v88, 0
  %112 = vmatprep.subr.bf16.mxu0 %v96
  %113 = vmatpush1.bf16.msra.mxu0 %v95
  %114 = vmatprep.subr.bf16.mxu0 0
  %115 = vmatpush1.bf16.msra.mxu0 0
  %116 = vmatprep.subr.bf16.mxu0 0
  %117 = vmatpush1.bf16.msra.mxu0 0
  %118 = vmatprep.subr.bf16.mxu0 0
  %119 = vmatpush1.bf16.msra.mxu0 0
  %120 = vmatprep.subr.bf16.mxu0 0
  %121 = vmatpush1.bf16.msra.mxu0 0
  %122 = vmatprep.subr.bf16.mxu0 0
  %123 = vmatpush1.bf16.msra.mxu0 0
  %124 = vmatprep.subr.bf16.mxu0 0
  %125 = vmatpush1.bf16.msra.mxu0 0
  %126 = vmatprep.subr.bf16.mxu0 0
  %127 = vmatpush1.bf16.msra.mxu0 0
  %128 = vmatprep.subr.bf16.mxu0 0
  %129 = vmatpush1.bf16.msra.mxu0 0
  %130 = vmatprep.subr.bf16.mxu0 0
  %131 = vmatpush1.bf16.msra.mxu0 0
  %132 = vmatprep.subr.bf16.mxu0 0
  %133 = vmatpush1.bf16.msra.mxu0 0
  %134 = vmatprep.subr.bf16.mxu0 0
  %135 = vmatpush1.bf16.msra.mxu0 0
  %136 = vmatprep.subr.bf16.mxu0 0
  %137 = vmatpush1.bf16.msra.mxu0 0
  %138 = vmatprep.subr.bf16.mxu0 0
  %139 = vmatpush1.bf16.msra.mxu0 0
  %140 = vmatprep.subr.bf16.mxu0 0
  %141 = vmatpush1.bf16.msra.mxu0 0
  %142 = vmatprep.subr.bf16.mxu0 0
  %143 = vmatpush1.bf16.msra.mxu0 0
  %144 = vmatprep.mubr.bf16.mxu0 0
  %145 = vmatmul.mubr.bf16.gmra.mrb[0].mxu0 %v101
  %v146 = vpop.f32.mrb[0].mxu0
  %v147 = vadd.f32 %v62, %v146
  %v148 = vpop.f32.mrb[0].mxu0
  %v149 = vadd.f32 %v66, %v148
  %v150 = vpop.f32.mrb[0].mxu0
  %v151 = vadd.f32 %v62, %v150
  %v152 = vpop.f32.mrb[0].mxu0
  %v153 = vadd.f32 %v66, %v152
  %154 = vmatprep.mubr.bf16.mxu0 0
  %155 = vmatmul.mubr.bf16.gmra.mrb[0].mxu0 %v104
  %v156 = vpop.f32.mrb[0].mxu0
  %v157 = vadd.f32 %v62, %v156
  %v158 = vpop.f32.mrb[0].mxu0
  %v159 = vadd.f32 %v66, %v158
  %v160 = vpop.f32.mrb[0].mxu0
  %v161 = vadd.f32 %v62, %v160
  %v162 = vpop.f32.mrb[0].mxu0
  %v163 = vadd.f32 %v66, %v162
  %164 = vmatprep.mubr.bf16.mxu0 0
  %165 = vmatmul.mubr.bf16.gmra.mrb[0].mxu0 %v107
  %v166 = vpop.f32.mrb[0].mxu0
  %v167 = vadd.f32 %v62, %v166
  %v168 = vpop.f32.mrb[0].mxu0
  %v169 = vadd.f32 %v66, %v168
  %v170 = vpop.f32.mrb[0].mxu0
  %v171 = vadd.f32 %v62, %v170
  %v172 = vpop.f32.mrb[0].mxu0
  %v173 = vadd.f32 %v66, %v172
  %174 = vmatprep.mubr.bf16.mxu0 0
  %175 = vmatmul.mubr.bf16.gmra.mrb[0].mxu0 %v110
  %v176 = vpop.f32.mrb[0].mxu0
  %v177 = vadd.f32 %v62, %v176
  %v178 = vpop.f32.mrb[0].mxu0
  %v179 = vadd.f32 %v66, %v178
  %v180 = vpop.f32.mrb[0].mxu0
  %v181 = vadd.f32 %v62, %v180
  %v182 = vpop.f32.mrb[0].mxu0
  %v183 = vadd.f32 %v66, %v182
  %184 = vdwg.mxu0
  %185 = vst [vmem:[#allocation2] sm:$0xff] %v147
  %186 = vst [vmem:[#allocation2 + $0x8] sm:$0xff] %v149
  %187 = vst [vmem:[#allocation2 + $0x10] sm:$0xff] %v151
  %188 = vst [vmem:[#allocation2 + $0x18] sm:$0xff] %v153
  %189 = vst [vmem:[#allocation2 + $0x20] sm:$0xff] %v157
  %190 = vst [vmem:[#allocation2 + $0x28] sm:$0xff] %v159
  %191 = vst [vmem:[#allocation2 + $0x30] sm:$0xff] %v161
  %192 = vst [vmem:[#allocation2 + $0x38] sm:$0xff] %v163
  %193 = vst [vmem:[#allocation2 + $0x40] sm:$0xff] %v167
  %194 = vst [vmem:[#allocation2 + $0x48] sm:$0xff] %v169
  %195 = vst [vmem:[#allocation2 + $0x50] sm:$0xff] %v171
  %196 = vst [vmem:[#allocation2 + $0x58] sm:$0xff] %v173
  %197 = vst [vmem:[#allocation2 + $0x60] sm:$0xff] %v177
  %198 = vst [vmem:[#allocation2 + $0x68] sm:$0xff] %v179
  %199 = vst [vmem:[#allocation2 + $0x70] sm:$0xff] %v181
  %200 = vst [vmem:[#allocation2 + $0x78] sm:$0xff] %v183
  %v201 = vld [vmem:[%s4] sm:$0xff]
  %v202 = vld [vmem:[%s4 + $0x8] sm:$0xff]
  %v203 = vld [vmem:[%s4 + $0x10] sm:$0xff]
  %v204 = vld [vmem:[%s4 + $0x18] sm:$0xff]
  %v205 = vld [vmem:[%s5] sm:$0xff]
  %v206 = vld [vmem:[%s5 + $0x8] sm:$0xff]
  %v207 = vld [vmem:[%s5 + $0x10] sm:$0xff]
  %v208 = vld [vmem:[%s5 + $0x18] sm:$0xff]
  %vm209 = vcmask 261120
  %v211 = vsel %vm209, 0.0, 0
  %213 = vmatprep.subr.mxu0 0.0
  %214 = vmatpush1.msra.mxu0 %v201
  %215 = vmatprep.subr.mxu0 0.0
  %216 = vmatpush1.msra.mxu0 %v202
  %217 = vmatprep.subr.mxu0 0.0
  %218 = vmatpush1.msra.mxu0 %v203
  %219 = vmatprep.subr.mxu0 0.0
  %220 = vmatpush1.msra.mxu0 %v204
  %221 = vmatprep.subr.mxu0 0.0
  %222 = vmatpush1.msra.mxu0 0.0
  %223 = vmatprep.subr.mxu0 0.0
  %224 = vmatpush1.msra.mxu0 0.0
  %225 = vmatprep.subr.mxu0 0.0
  %226 = vmatpush1.msra.mxu0 0.0
  %227 = vmatprep.subr.mxu0 0.0
  %228 = vmatpush1.msra.mxu0 0.0
  %229 = vmatprep.subr.mxu0 0.0
  %230 = vmatpush1.msra.mxu0 0.0
  %231 = vmatprep.subr.mxu0 0.0
  %232 = vmatpush1.msra.mxu0 0.0
  %233 = vmatprep.subr.mxu0 0.0
  %234 = vmatpush1.msra.mxu0 0.0
  %235 = vmatprep.subr.mxu0 0.0
  %236 = vmatpush1.msra.mxu0 0.0
  %237 = vmatprep.subr.mxu0 0.0
  %238 = vmatpush1.msra.mxu0 0.0
  %239 = vmatprep.subr.mxu0 0.0
  %240 = vmatpush1.msra.mxu0 0.0
  %241 = vmatprep.subr.mxu0 0.0
  %242 = vmatpush1.msra.mxu0 0.0
  %243 = vmatprep.subr.mxu0 0.0
  %244 = vmatpush1.msra.mxu0 0.0
  %245 = vmatprep.subr.mxu0 0.0
  %246 = vmatpush1.msra.mxu0 0.0
  %247 = vmatprep.subr.mxu0 0.0
  %248 = vmatpush1.msra.mxu0 0.0
  %249 = vmatprep.subr.mxu0 0.0
  %250 = vmatpush1.msra.mxu0 0.0
  %251 = vmatprep.subr.mxu0 0.0
  %252 = vmatpush1.msra.mxu0 0.0
  %253 = vmatprep.subr.mxu0 0.0
  %254 = vmatpush1.msra.mxu0 0.0
  %255 = vmatprep.subr.mxu0 0.0
  %256 = vmatpush1.msra.mxu0 0.0
  %257 = vmatprep.subr.mxu0 0.0
  %258 = vmatpush1.msra.mxu0 0.0
  %259 = vmatprep.subr.mxu0 0.0
  %260 = vmatpush1.msra.mxu0 0.0
  %261 = vmatprep.subr.mxu0 0.0
  %262 = vmatpush1.msra.mxu0 0.0
  %263 = vmatprep.subr.mxu0 0.0
  %264 = vmatpush1.msra.mxu0 0.0
  %265 = vmatprep.subr.mxu0 0.0
  %266 = vmatpush1.msra.mxu0 0.0
  %267 = vmatprep.subr.mxu0 0.0
  %268 = vmatpush1.msra.mxu0 0.0
  %269 = vmatprep.subr.mxu0 0.0
  %270 = vmatpush1.msra.mxu0 0.0
  %271 = vmatprep.subr.mxu0 0.0
  %272 = vmatpush1.msra.mxu0 0.0
  %273 = vmatprep.subr.mxu0 0.0
  %274 = vmatpush1.msra.mxu0 0.0
  %275 = vmatprep.subr.mxu0 0.0
  %276 = vmatpush1.msra.mxu0 0.0
  %277 = vmatprep.mubr.f32.mxu0 0.0
  %278 = vmatmul.mubr.f32.gmra.mrb[0].mxu0 %v211
  %v279 = vpop.f32.mrb[0].mxu0
  %v280 = vadd.f32 0.0, %v279
  %v281 = vpop.f32.mrb[0].mxu0
  %282 = vdwg.mxu0
  %283 = vmatprep.subr.mxu0 0.0
  %284 = vmatpush1.msra.mxu0 %v205
  %285 = vmatprep.subr.mxu0 0.0
  %286 = vmatpush1.msra.mxu0 %v206
  %287 = vmatprep.subr.mxu0 0.0
  %288 = vmatpush1.msra.mxu0 %v207
  %289 = vmatprep.subr.mxu0 0.0
  %290 = vmatpush1.msra.mxu0 %v208
  %291 = vmatprep.subr.mxu0 0.0
  %292 = vmatpush1.msra.mxu0 0.0
  %293 = vmatprep.subr.mxu0 0.0
  %294 = vmatpush1.msra.mxu0 0.0
  %295 = vmatprep.subr.mxu0 0.0
  %296 = vmatpush1.msra.mxu0 0.0
  %297 = vmatprep.subr.mxu0 0.0
  %298 = vmatpush1.msra.mxu0 0.0
  %299 = vmatprep.subr.mxu0 0.0
  %300 = vmatpush1.msra.mxu0 0.0
  %301 = vmatprep.subr.mxu0 0.0
  %302 = vmatpush1.msra.mxu0 0.0
  %303 = vmatprep.subr.mxu0 0.0
  %304 = vmatpush1.msra.mxu0 0.0
  %305 = vmatprep.subr.mxu0 0.0
  %306 = vmatpush1.msra.mxu0 0.0
  %307 = vmatprep.subr.mxu0 0.0
  %308 = vmatpush1.msra.mxu0 0.0
  %309 = vmatprep.subr.mxu0 0.0
  %310 = vmatpush1.msra.mxu0 0.0
  %311 = vmatprep.subr.mxu0 0.0
  %312 = vmatpush1.msra.mxu0 0.0
  %313 = vmatprep.subr.mxu0 0.0
  %314 = vmatpush1.msra.mxu0 0.0
  %315 = vmatprep.subr.mxu0 0.0
  %316 = vmatpush1.msra.mxu0 0.0
  %317 = vmatprep.subr.mxu0 0.0
  %318 = vmatpush1.msra.mxu0 0.0
  %319 = vmatprep.subr.mxu0 0.0
  %320 = vmatpush1.msra.mxu0 0.0
  %321 = vmatprep.subr.mxu0 0.0
  %322 = vmatpush1.msra.mxu0 0.0
  %323 = vmatprep.subr.mxu0 0.0
  %324 = vmatpush1.msra.mxu0 0.0
  %325 = vmatprep.subr.mxu0 0.0
  %326 = vmatpush1.msra.mxu0 0.0
  %327 = vmatprep.subr.mxu0 0.0
  %328 = vmatpush1.msra.mxu0 0.0
  %329 = vmatprep.subr.mxu0 0.0
  %330 = vmatpush1.msra.mxu0 0.0
  %331 = vmatprep.subr.mxu0 0.0
  %332 = vmatpush1.msra.mxu0 0.0
  %333 = vmatprep.subr.mxu0 0.0
  %334 = vmatpush1.msra.mxu0 0.0
  %335 = vmatprep.subr.mxu0 0.0
  %336 = vmatpush1.msra.mxu0 0.0
  %337 = vmatprep.subr.mxu0 0.0
  %338 = vmatpush1.msra.mxu0 0.0
  %339 = vmatprep.subr.mxu0 0.0
  %340 = vmatpush1.msra.mxu0 0.0
  %341 = vmatprep.subr.mxu0 0.0
  %342 = vmatpush1.msra.mxu0 0.0
  %343 = vmatprep.subr.mxu0 0.0
  %344 = vmatpush1.msra.mxu0 0.0
  %345 = vmatprep.subr.mxu0 0.0
  %346 = vmatpush1.msra.mxu0 0.0
  %347 = vmatprep.mubr.f32.mxu0 0.0
  %348 = vmatmul.mubr.f32.gmra.mrb[0].mxu0 %v211
  %v349 = vpop.f32.mrb[0].mxu0
  %v350 = vadd.f32 0.0, %v349
  %v351 = vpop.f32.mrb[0].mxu0
  %352 = vdwg.mxu0
  %v353 = vld [vmem:[#allocation2] sm:$0xff]
  %v354 = vadd.f32 %v353, %v280
  %v355 = vld [vmem:[#allocation2 + $0x78] sm:$0xff]
  %v356 = vadd.f32 %v355, %v350
  %v357 = vld [vmem:[%s0] sm:$0xff]
  %v358 = vld [vmem:[%s0 + $0x8] sm:$0xff]
  %360 = vset.pattern.permute.xlu0 0
  %361 = vperm.xlu0 %360, %v357
  %v362 = vpop.permute.xlu0 %361
  %365 = vset.pattern.permute.xlu0 0
  %366 = vperm.xlu0 %365, %v358
  %v367 = vpop.permute.xlu0 %366
  %v369 = vsub.f32 1.0, %v362
  %v370 = vsub.f32 1.0, %v367
  %v371 = vxor.u32 %v354, 2147483648
  %v372 = vxor.u32 %v356, 2147483648
  %v373 = vmul.f32 %v371, 1.442695
  %v374 = vpow.pop %v373
  %v375 = vmul.f32 %v372, 1.442695
  %v376 = vpow.pop %v375
  %v377 = vadd.f32 %v374, 1.0
  %v378 = vadd.f32 %v376, 1.0
  %v379 = vrcp.pop %v377
  %v380 = vmul.f32 1.0, %v379
  %v381 = vrcp.pop %v378
  %v382 = vmul.f32 1.0, %v381
  %v383 = vtanh.pop %v354
  %v384 = vtanh.pop %v356
  %v385 = vmul.f32 %v380, 0.0
  %v386 = vmul.f32 %v382, 0.0
  %389 = vrot.lane.b32.xlu0 %v383, 32
  %v390 = vpop.permute.xlu0 %389
  %391 = vrot.lane.b32.xlu0 %v384, 32
  %v392 = vpop.permute.xlu0 %391
  %v395 = vmul.f32 %v380, %v390
  %v396 = vmul.f32 %v382, %v392
  %399 = vrot.lane.b32.xlu0 %v395, 32
  %v400 = vpop.permute.xlu0 %399
  %401 = vrot.lane.b32.xlu0 %v396, 32
  %v402 = vpop.permute.xlu0 %401
  %v405 = vadd.f32 %v385, %v400
  %v406 = vadd.f32 %v386, %v402
  %v407 = vtanh.pop %v405
  %v408 = vtanh.pop %v406
  %411 = vrot.lane.b32.xlu0 %v407, 32
  %v412 = vpop.permute.xlu0 %411
  %413 = vrot.lane.b32.xlu0 %v408, 32
  %v414 = vpop.permute.xlu0 %413
  %v417 = vmul.f32 %v380, %v412
  %v418 = vmul.f32 %v382, %v414
  %v419 = vmul.f32 %v362, %v417
  %v420 = vmul.f32 %v367, %v418
  %v421 = vmul.f32 %v369, 0.0
  %v422 = vmul.f32 %v370, 0.0
  %v423 = vadd.f32 %v419, %v421
  %v424 = vadd.f32 %v420, %v422
  %v425 = vmul.f32 %v362, %v405
  %v426 = vmul.f32 %v367, %v406
  %v427 = vadd.f32 %v425, %v421
  %v428 = vadd.f32 %v426, %v422
  %430 = vrot.lane.b32.xlu0 %v419, 64
  %v431 = vpop.permute.xlu0 %430
  %433 = vst.msk [vmem:[#allocation3] sm:$0xff] %vm209, %v431
  %435 = vrot.lane.b32.xlu0 %v420, 96
  %v436 = vpop.permute.xlu0 %435
  %vm438 = vcmask 523520
  %439 = vst.msk [vmem:[#allocation3 + $0x38] sm:$0xff] %vm438, %v436
  %441 = vrot.lane.b32.xlu0 %v423, 64
  %v442 = vpop.permute.xlu0 %441
  %v443 = vsel %vm209, %v442, 0
  %445 = vmatprep.subr.mxu0 0.0
  %446 = vmatpush1.msra.mxu0 %v201
  %447 = vmatprep.subr.mxu0 0.0
  %448 = vmatpush1.msra.mxu0 %v202
  %449 = vmatprep.subr.mxu0 0.0
  %450 = vmatpush1.msra.mxu0 %v203
  %451 = vmatprep.subr.mxu0 0.0
  %452 = vmatpush1.msra.mxu0 %v204
  %453 = vmatprep.subr.mxu0 0.0
  %454 = vmatpush1.msra.mxu0 0.0
  %455 = vmatprep.subr.mxu0 0.0
  %456 = vmatpush1.msra.mxu0 0.0
  %457 = vmatprep.subr.mxu0 0.0
  %458 = vmatpush1.msra.mxu0 0.0
  %459 = vmatprep.subr.mxu0 0.0
  %460 = vmatpush1.msra.mxu0 0.0
  %461 = vmatprep.subr.mxu0 0.0
  %462 = vmatpush1.msra.mxu0 0.0
  %463 = vmatprep.subr.mxu0 0.0
  %464 = vmatpush1.msra.mxu0 0.0
  %465 = vmatprep.subr.mxu0 0.0
  %466 = vmatpush1.msra.mxu0 0.0
  %467 = vmatprep.subr.mxu0 0.0
  %468 = vmatpush1.msra.mxu0 0.0
  %469 = vmatprep.subr.mxu0 0.0
  %470 = vmatpush1.msra.mxu0 0.0
  %471 = vmatprep.subr.mxu0 0.0
  %472 = vmatpush1.msra.mxu0 0.0
  %473 = vmatprep.subr.mxu0 0.0
  %474 = vmatpush1.msra.mxu0 0.0
  %475 = vmatprep.subr.mxu0 0.0
  %476 = vmatpush1.msra.mxu0 0.0
  %477 = vmatprep.subr.mxu0 0.0
  %478 = vmatpush1.msra.mxu0 0.0
  %479 = vmatprep.subr.mxu0 0.0
  %480 = vmatpush1.msra.mxu0 0.0
  %481 = vmatprep.subr.mxu0 0.0
  %482 = vmatpush1.msra.mxu0 0.0
  %483 = vmatprep.subr.mxu0 0.0
  %484 = vmatpush1.msra.mxu0 0.0
  %485 = vmatprep.subr.mxu0 0.0
  %486 = vmatpush1.msra.mxu0 0.0
  %487 = vmatprep.subr.mxu0 0.0
  %488 = vmatpush1.msra.mxu0 0.0
  %489 = vmatprep.subr.mxu0 0.0
  %490 = vmatpush1.msra.mxu0 0.0
  %491 = vmatprep.subr.mxu0 0.0
  %492 = vmatpush1.msra.mxu0 0.0
  %493 = vmatprep.subr.mxu0 0.0
  %494 = vmatpush1.msra.mxu0 0.0
  %495 = vmatprep.subr.mxu0 0.0
  %496 = vmatpush1.msra.mxu0 0.0
  %497 = vmatprep.subr.mxu0 0.0
  %498 = vmatpush1.msra.mxu0 0.0
  %499 = vmatprep.subr.mxu0 0.0
  %500 = vmatpush1.msra.mxu0 0.0
  %501 = vmatprep.subr.mxu0 0.0
  %502 = vmatpush1.msra.mxu0 0.0
  %503 = vmatprep.subr.mxu0 0.0
  %504 = vmatpush1.msra.mxu0 0.0
  %505 = vmatprep.subr.mxu0 0.0
  %506 = vmatpush1.msra.mxu0 0.0
  %507 = vmatprep.subr.mxu0 0.0
  %508 = vmatpush1.msra.mxu0 0.0
  %509 = vmatprep.mubr.f32.mxu0 0.0
  %510 = vmatmul.mubr.f32.gmra.mrb[0].mxu0 %v443
  %v511 = vpop.f32.mrb[0].mxu0
  %v512 = vadd.f32 0.0, %v511
  %v513 = vpop.f32.mrb[0].mxu0
  %514 = vdwg.mxu0
  %516 = vrot.lane.b32.xlu0 %v424, 64
  %v517 = vpop.permute.xlu0 %516
  %v518 = vsel %vm209, %v517, 0
  %520 = vmatprep.subr.mxu0 0.0
  %521 = vmatpush1.msra.mxu0 %v205
  %522 = vmatprep.subr.mxu0 0.0
  %523 = vmatpush1.msra.mxu0 %v206
  %524 = vmatprep.subr.mxu0 0.0
  %525 = vmatpush1.msra.mxu0 %v207
  %526 = vmatprep.subr.mxu0 0.0
  %527 = vmatpush1.msra.mxu0 %v208
  %528 = vmatprep.subr.mxu0 0.0
  %529 = vmatpush1.msra.mxu0 0.0
  %530 = vmatprep.subr.mxu0 0.0
  %531 = vmatpush1.msra.mxu0 0.0
  %532 = vmatprep.subr.mxu0 0.0
  %533 = vmatpush1.msra.mxu0 0.0
  %534 = vmatprep.subr.mxu0 0.0
  %535 = vmatpush1.msra.mxu0 0.0
  %536 = vmatprep.subr.mxu0 0.0
  %537 = vmatpush1.msra.mxu0 0.0
  %538 = vmatprep.subr.mxu0 0.0
  %539 = vmatpush1.msra.mxu0 0.0
  %540 = vmatprep.subr.mxu0 0.0
  %541 = vmatpush1.msra.mxu0 0.0
  %542 = vmatprep.subr.mxu0 0.0
  %543 = vmatpush1.msra.mxu0 0.0
  %544 = vmatprep.subr.mxu0 0.0
  %545 = vmatpush1.msra.mxu0 0.0
  %546 = vmatprep.subr.mxu0 0.0
  %547 = vmatpush1.msra.mxu0 0.0
  %548 = vmatprep.subr.mxu0 0.0
  %549 = vmatpush1.msra.mxu0 0.0
  %550 = vmatprep.subr.mxu0 0.0
  %551 = vmatpush1.msra.mxu0 0.0
  %552 = vmatprep.subr.mxu0 0.0
  %553 = vmatpush1.msra.mxu0 0.0
  %554 = vmatprep.subr.mxu0 0.0
  %555 = vmatpush1.msra.mxu0 0.0
  %556 = vmatprep.subr.mxu0 0.0
  %557 = vmatpush1.msra.mxu0 0.0
  %558 = vmatprep.subr.mxu0 0.0
  %559 = vmatpush1.msra.mxu0 0.0
  %560 = vmatprep.subr.mxu0 0.0
  %561 = vmatpush1.msra.mxu0 0.0
  %562 = vmatprep.subr.mxu0 0.0
  %563 = vmatpush1.msra.mxu0 0.0
  %564 = vmatprep.subr.mxu0 0.0
  %565 = vmatpush1.msra.mxu0 0.0
  %566 = vmatprep.subr.mxu0 0.0
  %567 = vmatpush1.msra.mxu0 0.0
  %568 = vmatprep.subr.mxu0 0.0
  %569 = vmatpush1.msra.mxu0 0.0
  %570 = vmatprep.subr.mxu0 0.0
  %571 = vmatpush1.msra.mxu0 0.0
  %572 = vmatprep.subr.mxu0 0.0
  %573 = vmatpush1.msra.mxu0 0.0
  %574 = vmatprep.subr.mxu0 0.0
  %575 = vmatpush1.msra.mxu0 0.0
  %576 = vmatprep.subr.mxu0 0.0
  %577 = vmatpush1.msra.mxu0 0.0
  %578 = vmatprep.subr.mxu0 0.0
  %579 = vmatpush1.msra.mxu0 0.0
  %580 = vmatprep.subr.mxu0 0.0
  %581 = vmatpush1.msra.mxu0 0.0
  %582 = vmatprep.subr.mxu0 0.0
  %583 = vmatpush1.msra.mxu0 0.0
  %584 = vmatprep.mubr.f32.mxu0 0.0
  %585 = vmatmul.mubr.f32.gmra.mrb[0].mxu0 %v518
  %v586 = vpop.f32.mrb[0].mxu0
  %v587 = vadd.f32 0.0, %v586
  %v588 = vpop.f32.mrb[0].mxu0
  %589 = vdwg.mxu0
  %v590 = vld [vmem:[#allocation2 + $0x10] sm:$0xff]
  %v591 = vadd.f32 %v590, %v512
  %v592 = vld [vmem:[#allocation2 + $0x68] sm:$0xff]
  %v593 = vadd.f32 %v592, %v587
  %s594 = scalar_lea.vmem %s0, 16
  %v595 = vld [vmem:[%s594] sm:$0xff]
  %v596 = vld [vmem:[%s594 + $0x8] sm:$0xff]
  %598 = vset.pattern.permute.xlu0 0
  %599 = vperm.xlu0 %598, %v595
  %v600 = vpop.permute.xlu0 %599
  %603 = vset.pattern.permute.xlu0 0
  %604 = vperm.xlu0 %603, %v596
  %v605 = vpop.permute.xlu0 %604
  %v607 = vsub.f32 1.0, %v600
  %v608 = vsub.f32 1.0, %v605
  %v609 = vxor.u32 %v591, 2147483648
  %v610 = vxor.u32 %v593, 2147483648
  %v611 = vmul.f32 %v609, 1.442695
  %v612 = vpow.pop %v611
  %v613 = vmul.f32 %v610, 1.442695
  %v614 = vpow.pop %v613
  %v615 = vadd.f32 %v612, 1.0
  %v616 = vadd.f32 %v614, 1.0
  %v617 = vrcp.pop %v615
  %v618 = vmul.f32 1.0, %v617
  %v619 = vrcp.pop %v616
  %v620 = vmul.f32 1.0, %v619
  %v621 = vtanh.pop %v591
  %v622 = vtanh.pop %v593
  %v623 = vmul.f32 %v618, %v427
  %v624 = vmul.f32 %v620, %v428
  %627 = vrot.lane.b32.xlu0 %v621, 32
  %v628 = vpop.permute.xlu0 %627
  %629 = vrot.lane.b32.xlu0 %v622, 32
  %v630 = vpop.permute.xlu0 %629
  %v633 = vmul.f32 %v618, %v628
  %v634 = vmul.f32 %v620, %v630
  %637 = vrot.lane.b32.xlu0 %v633, 32
  %v638 = vpop.permute.xlu0 %637
  %639 = vrot.lane.b32.xlu0 %v634, 32
  %v640 = vpop.permute.xlu0 %639
  %v643 = vadd.f32 %v623, %v638
  %v644 = vadd.f32 %v624, %v640
  %v645 = vtanh.pop %v643
  %v646 = vtanh.pop %v644
  %649 = vrot.lane.b32.xlu0 %v645, 32
  %v650 = vpop.permute.xlu0 %649
  %651 = vrot.lane.b32.xlu0 %v646, 32
  %v652 = vpop.permute.xlu0 %651
  %v655 = vmul.f32 %v618, %v650
  %v656 = vmul.f32 %v620, %v652
  %v657 = vmul.f32 %v600, %v655
  %v658 = vmul.f32 %v605, %v656
  %v659 = vmul.f32 %v607, %v423
  %v660 = vmul.f32 %v608, %v424
  %v661 = vadd.f32 %v657, %v659
  %v662 = vadd.f32 %v658, %v660
  %v663 = vmul.f32 %v600, %v643
  %v664 = vmul.f32 %v605, %v644
  %v665 = vmul.f32 %v607, %v427
  %v666 = vmul.f32 %v608, %v428
  %v667 = vadd.f32 %v663, %v665
  %v668 = vadd.f32 %v664, %v666
  %670 = vrot.lane.b32.xlu0 %v657, 64
  %v671 = vpop.permute.xlu0 %670
  %673 = vst.msk [vmem:[#allocation3 + $0x8] sm:$0xff] %vm209, %v671
  %675 = vrot.lane.b32.xlu0 %v658, 96
  %v676 = vpop.permute.xlu0 %675
  %678 = vst.msk [vmem:[#allocation3 + $0x30] sm:$0xff] %vm438, %v676
  %680 = vrot.lane.b32.xlu0 %v661, 64
  %v681 = vpop.permute.xlu0 %680
  %v682 = vsel %vm209, %v681, 0
  %684 = vmatprep.subr.mxu0 0.0
  %685 = vmatpush1.msra.mxu0 %v201
  %686 = vmatprep.subr.mxu0 0.0
  %687 = vmatpush1.msra.mxu0 %v202
  %688 = vmatprep.subr.mxu0 0.0
  %689 = vmatpush1.msra.mxu0 %v203
  %690 = vmatprep.subr.mxu0 0.0
  %691 = vmatpush1.msra.mxu0 %v204
  %692 = vmatprep.subr.mxu0 0.0
  %693 = vmatpush1.msra.mxu0 0.0
  %694 = vmatprep.subr.mxu0 0.0
  %695 = vmatpush1.msra.mxu0 0.0
  %696 = vmatprep.subr.mxu0 0.0
  %697 = vmatpush1.msra.mxu0 0.0
  %698 = vmatprep.subr.mxu0 0.0
  %699 = vmatpush1.msra.mxu0 0.0
  %700 = vmatprep.subr.mxu0 0.0
  %701 = vmatpush1.msra.mxu0 0.0
  %702 = vmatprep.subr.mxu0 0.0
  %703 = vmatpush1.msra.mxu0 0.0
  %704 = vmatprep.subr.mxu0 0.0
  %705 = vmatpush1.msra.mxu0 0.0
  %706 = vmatprep.subr.mxu0 0.0
  %707 = vmatpush1.msra.mxu0 0.0
  %708 = vmatprep.subr.mxu0 0.0
  %709 = vmatpush1.msra.mxu0 0.0
  %710 = vmatprep.subr.mxu0 0.0
  %711 = vmatpush1.msra.mxu0 0.0
  %712 = vmatprep.subr.mxu0 0.0
  %713 = vmatpush1.msra.mxu0 0.0
  %714 = vmatprep.subr.mxu0 0.0
  %715 = vmatpush1.msra.mxu0 0.0
  %716 = vmatprep.subr.mxu0 0.0
  %717 = vmatpush1.msra.mxu0 0.0
  %718 = vmatprep.subr.mxu0 0.0
  %719 = vmatpush1.msra.mxu0 0.0
  %720 = vmatprep.subr.mxu0 0.0
  %721 = vmatpush1.msra.mxu0 0.0
  %722 = vmatprep.subr.mxu0 0.0
  %723 = vmatpush1.msra.mxu0 0.0
  %724 = vmatprep.subr.mxu0 0.0
  %725 = vmatpush1.msra.mxu0 0.0
  %726 = vmatprep.subr.mxu0 0.0
  %727 = vmatpush1.msra.mxu0 0.0
  %728 = vmatprep.subr.mxu0 0.0
  %729 = vmatpush1.msra.mxu0 0.0
  %730 = vmatprep.subr.mxu0 0.0
  %731 = vmatpush1.msra.mxu0 0.0
  %732 = vmatprep.subr.mxu0 0.0
  %733 = vmatpush1.msra.mxu0 0.0
  %734 = vmatprep.subr.mxu0 0.0
  %735 = vmatpush1.msra.mxu0 0.0
  %736 = vmatprep.subr.mxu0 0.0
  %737 = vmatpush1.msra.mxu0 0.0
  %738 = vmatprep.subr.mxu0 0.0
  %739 = vmatpush1.msra.mxu0 0.0
  %740 = vmatprep.subr.mxu0 0.0
  %741 = vmatpush1.msra.mxu0 0.0
  %742 = vmatprep.subr.mxu0 0.0
  %743 = vmatpush1.msra.mxu0 0.0
  %744 = vmatprep.subr.mxu0 0.0
  %745 = vmatpush1.msra.mxu0 0.0
  %746 = vmatprep.subr.mxu0 0.0
  %747 = vmatpush1.msra.mxu0 0.0
  %748 = vmatprep.mubr.f32.mxu0 0.0
  %749 = vmatmul.mubr.f32.gmra.mrb[0].mxu0 %v682
  %v750 = vpop.f32.mrb[0].mxu0
  %v751 = vadd.f32 0.0, %v750
  %v752 = vpop.f32.mrb[0].mxu0
  %753 = vdwg.mxu0
  %755 = vrot.lane.b32.xlu0 %v662, 64
  %v756 = vpop.permute.xlu0 %755
  %v757 = vsel %vm209, %v756, 0
  %759 = vmatprep.subr.mxu0 0.0
  %760 = vmatpush1.msra.mxu0 %v205
  %761 = vmatprep.subr.mxu0 0.0
  %762 = vmatpush1.msra.mxu0 %v206
  %763 = vmatprep.subr.mxu0 0.0
  %764 = vmatpush1.msra.mxu0 %v207
  %765 = vmatprep.subr.mxu0 0.0
  %766 = vmatpush1.msra.mxu0 %v208
  %767 = vmatprep.subr.mxu0 0.0
  %768 = vmatpush1.msra.mxu0 0.0
  %769 = vmatprep.subr.mxu0 0.0
  %770 = vmatpush1.msra.mxu0 0.0
  %771 = vmatprep.subr.mxu0 0.0
  %772 = vmatpush1.msra.mxu0 0.0
  %773 = vmatprep.subr.mxu0 0.0
  %774 = vmatpush1.msra.mxu0 0.0
  %775 = vmatprep.subr.mxu0 0.0
  %776 = vmatpush1.msra.mxu0 0.0
  %777 = vmatprep.subr.mxu0 0.0
  %778 = vmatpush1.msra.mxu0 0.0
  %779 = vmatprep.subr.mxu0 0.0
  %780 = vmatpush1.msra.mxu0 0.0
  %781 = vmatprep.subr.mxu0 0.0
  %782 = vmatpush1.msra.mxu0 0.0
  %783 = vmatprep.subr.mxu0 0.0
  %784 = vmatpush1.msra.mxu0 0.0
  %785 = vmatprep.subr.mxu0 0.0
  %786 = vmatpush1.msra.mxu0 0.0
  %787 = vmatprep.subr.mxu0 0.0
  %788 = vmatpush1.msra.mxu0 0.0
  %789 = vmatprep.subr.mxu0 0.0
  %790 = vmatpush1.msra.mxu0 0.0
  %791 = vmatprep.subr.mxu0 0.0
  %792 = vmatpush1.msra.mxu0 0.0
  %793 = vmatprep.subr.mxu0 0.0
  %794 = vmatpush1.msra.mxu0 0.0
  %795 = vmatprep.subr.mxu0 0.0
  %796 = vmatpush1.msra.mxu0 0.0
  %797 = vmatprep.subr.mxu0 0.0
  %798 = vmatpush1.msra.mxu0 0.0
  %799 = vmatprep.subr.mxu0 0.0
  %800 = vmatpush1.msra.mxu0 0.0
  %801 = vmatprep.subr.mxu0 0.0
  %802 = vmatpush1.msra.mxu0 0.0
  %803 = vmatprep.subr.mxu0 0.0
  %804 = vmatpush1.msra.mxu0 0.0
  %805 = vmatprep.subr.mxu0 0.0
  %806 = vmatpush1.msra.mxu0 0.0
  %807 = vmatprep.subr.mxu0 0.0
  %808 = vmatpush1.msra.mxu0 0.0
  %809 = vmatprep.subr.mxu0 0.0
  %810 = vmatpush1.msra.mxu0 0.0
  %811 = vmatprep.subr.mxu0 0.0
  %812 = vmatpush1.msra.mxu0 0.0
  %813 = vmatprep.subr.mxu0 0.0
  %814 = vmatpush1.msra.mxu0 0.0
  %815 = vmatprep.subr.mxu0 0.0
  %816 = vmatpush1.msra.mxu0 0.0
  %817 = vmatprep.subr.mxu0 0.0
  %818 = vmatpush1.msra.mxu0 0.0
  %819 = vmatprep.subr.mxu0 0.0
  %820 = vmatpush1.msra.mxu0 0.0
  %821 = vmatprep.subr.mxu0 0.0
  %822 = vmatpush1.msra.mxu0 0.0
  %823 = vmatprep.mubr.f32.mxu0 0.0
  %824 = vmatmul.mubr.f32.gmra.mrb[0].mxu0 %v757
  %v825 = vpop.f32.mrb[0].mxu0
  %v826 = vadd.f32 0.0, %v825
  %v827 = vpop.f32.mrb[0].mxu0
  %828 = vdwg.mxu0
  %v829 = vld [vmem:[#allocation2 + $0x20] sm:$0xff]
  %v830 = vadd.f32 %v829, %v751
  %v831 = vld [vmem:[#allocation2 + $0x58] sm:$0xff]
  %v832 = vadd.f32 %v831, %v826
  %s833 = scalar_lea.vmem %s0, 32
  %v834 = vld [vmem:[%s833] sm:$0xff]
  %v835 = vld [vmem:[%s833 + $0x8] sm:$0xff]
  %837 = vset.pattern.permute.xlu0 0
  %838 = vperm.xlu0 %837, %v834
  %v839 = vpop.permute.xlu0 %838
  %842 = vset.pattern.permute.xlu0 0
  %843 = vperm.xlu0 %842, %v835
  %v844 = vpop.permute.xlu0 %843
  %v846 = vsub.f32 1.0, %v839
  %v847 = vsub.f32 1.0, %v844
  %v848 = vxor.u32 %v830, 2147483648
  %v849 = vxor.u32 %v832, 2147483648
  %v850 = vmul.f32 %v848, 1.442695
  %v851 = vpow.pop %v850
  %v852 = vmul.f32 %v849, 1.442695
  %v853 = vpow.pop %v852
  %v854 = vadd.f32 %v851, 1.0
  %v855 = vadd.f32 %v853, 1.0
  %v856 = vrcp.pop %v854
  %v857 = vmul.f32 1.0, %v856
  %v858 = vrcp.pop %v855
  %v859 = vmul.f32 1.0, %v858
  %v860 = vtanh.pop %v830
  %v861 = vtanh.pop %v832
  %v862 = vmul.f32 %v857, %v667
  %v863 = vmul.f32 %v859, %v668
  %866 = vrot.lane.b32.xlu0 %v860, 32
  %v867 = vpop.permute.xlu0 %866
  %868 = vrot.lane.b32.xlu0 %v861, 32
  %v869 = vpop.permute.xlu0 %868
  %v872 = vmul.f32 %v857, %v867
  %v873 = vmul.f32 %v859, %v869
  %876 = vrot.lane.b32.xlu0 %v872, 32
  %v877 = vpop.permute.xlu0 %876
  %878 = vrot.lane.b32.xlu0 %v873, 32
  %v879 = vpop.permute.xlu0 %878
  %v882 = vadd.f32 %v862, %v877
  %v883 = vadd.f32 %v863, %v879
  %v884 = vtanh.pop %v882
  %v885 = vtanh.pop %v883
  %888 = vrot.lane.b32.xlu0 %v884, 32
  %v889 = vpop.permute.xlu0 %888
  %890 = vrot.lane.b32.xlu0 %v885, 32
  %v891 = vpop.permute.xlu0 %890
  %v894 = vmul.f32 %v857, %v889
  %v895 = vmul.f32 %v859, %v891
  %v896 = vmul.f32 %v839, %v894
  %v897 = vmul.f32 %v844, %v895
  %v898 = vmul.f32 %v846, %v661
  %v899 = vmul.f32 %v847, %v662
  %v900 = vadd.f32 %v896, %v898
  %v901 = vadd.f32 %v897, %v899
  %v902 = vmul.f32 %v839, %v882
  %v903 = vmul.f32 %v844, %v883
  %v904 = vmul.f32 %v846, %v667
  %v905 = vmul.f32 %v847, %v668
  %v906 = vadd.f32 %v902, %v904
  %v907 = vadd.f32 %v903, %v905
  %909 = vrot.lane.b32.xlu0 %v896, 64
  %v910 = vpop.permute.xlu0 %909
  %912 = vst.msk [vmem:[#allocation3 + $0x10] sm:$0xff] %vm209, %v910
  %914 = vrot.lane.b32.xlu0 %v897, 96
  %v915 = vpop.permute.xlu0 %914
  %917 = vst.msk [vmem:[#allocation3 + $0x28] sm:$0xff] %vm438, %v915
  %919 = vrot.lane.b32.xlu0 %v900, 64
  %v920 = vpop.permute.xlu0 %919
  %v921 = vsel %vm209, %v920, 0
  %923 = vmatprep.subr.mxu0 0.0
  %924 = vmatpush1.msra.mxu0 %v201
  %925 = vmatprep.subr.mxu0 0.0
  %926 = vmatpush1.msra.mxu0 %v202
  %927 = vmatprep.subr.mxu0 0.0
  %928 = vmatpush1.msra.mxu0 %v203
  %929 = vmatprep.subr.mxu0 0.0
  %930 = vmatpush1.msra.mxu0 %v204
  %931 = vmatprep.subr.mxu0 0.0
  %932 = vmatpush1.msra.mxu0 0.0
  %933 = vmatprep.subr.mxu0 0.0
  %934 = vmatpush1.msra.mxu0 0.0
  %935 = vmatprep.subr.mxu0 0.0
  %936 = vmatpush1.msra.mxu0 0.0
  %937 = vmatprep.subr.mxu0 0.0
  %938 = vmatpush1.msra.mxu0 0.0
  %939 = vmatprep.subr.mxu0 0.0
  %940 = vmatpush1.msra.mxu0 0.0
  %941 = vmatprep.subr.mxu0 0.0
  %942 = vmatpush1.msra.mxu0 0.0
  %943 = vmatprep.subr.mxu0 0.0
  %944 = vmatpush1.msra.mxu0 0.0
  %945 = vmatprep.subr.mxu0 0.0
  %946 = vmatpush1.msra.mxu0 0.0
  %947 = vmatprep.subr.mxu0 0.0
  %948 = vmatpush1.msra.mxu0 0.0
  %949 = vmatprep.subr.mxu0 0.0
  %950 = vmatpush1.msra.mxu0 0.0
  %951 = vmatprep.subr.mxu0 0.0
  %952 = vmatpush1.msra.mxu0 0.0
  %953 = vmatprep.subr.mxu0 0.0
  %954 = vmatpush1.msra.mxu0 0.0
  %955 = vmatprep.subr.mxu0 0.0
  %956 = vmatpush1.msra.mxu0 0.0
  %957 = vmatprep.subr.mxu0 0.0
  %958 = vmatpush1.msra.mxu0 0.0
  %959 = vmatprep.subr.mxu0 0.0
  %960 = vmatpush1.msra.mxu0 0.0
  %961 = vmatprep.subr.mxu0 0.0
  %962 = vmatpush1.msra.mxu0 0.0
  %963 = vmatprep.subr.mxu0 0.0
  %964 = vmatpush1.msra.mxu0 0.0
  %965 = vmatprep.subr.mxu0 0.0
  %966 = vmatpush1.msra.mxu0 0.0
  %967 = vmatprep.subr.mxu0 0.0
  %968 = vmatpush1.msra.mxu0 0.0
  %969 = vmatprep.subr.mxu0 0.0
  %970 = vmatpush1.msra.mxu0 0.0
  %971 = vmatprep.subr.mxu0 0.0
  %972 = vmatpush1.msra.mxu0 0.0
  %973 = vmatprep.subr.mxu0 0.0
  %974 = vmatpush1.msra.mxu0 0.0
  %975 = vmatprep.subr.mxu0 0.0
  %976 = vmatpush1.msra.mxu0 0.0
  %977 = vmatprep.subr.mxu0 0.0
  %978 = vmatpush1.msra.mxu0 0.0
  %979 = vmatprep.subr.mxu0 0.0
  %980 = vmatpush1.msra.mxu0 0.0
  %981 = vmatprep.subr.mxu0 0.0
  %982 = vmatpush1.msra.mxu0 0.0
  %983 = vmatprep.subr.mxu0 0.0
  %984 = vmatpush1.msra.mxu0 0.0
  %985 = vmatprep.subr.mxu0 0.0
  %986 = vmatpush1.msra.mxu0 0.0
  %987 = vmatprep.mubr.f32.mxu0 0.0
  %988 = vmatmul.mubr.f32.gmra.mrb[0].mxu0 %v921
  %v989 = vpop.f32.mrb[0].mxu0
  %v990 = vadd.f32 0.0, %v989
  %v991 = vpop.f32.mrb[0].mxu0
  %992 = vdwg.mxu0
  %994 = vrot.lane.b32.xlu0 %v901, 64
  %v995 = vpop.permute.xlu0 %994
  %v996 = vsel %vm209, %v995, 0
  %998 = vmatprep.subr.mxu0 0.0
  %999 = vmatpush1.msra.mxu0 %v205
  %1000 = vmatprep.subr.mxu0 0.0
  %1001 = vmatpush1.msra.mxu0 %v206
  %1002 = vmatprep.subr.mxu0 0.0
  %1003 = vmatpush1.msra.mxu0 %v207
  %1004 = vmatprep.subr.mxu0 0.0
  %1005 = vmatpush1.msra.mxu0 %v208
  %1006 = vmatprep.subr.mxu0 0.0
  %1007 = vmatpush1.msra.mxu0 0.0
  %1008 = vmatprep.subr.mxu0 0.0
  %1009 = vmatpush1.msra.mxu0 0.0
  %1010 = vmatprep.subr.mxu0 0.0
  %1011 = vmatpush1.msra.mxu0 0.0
  %1012 = vmatprep.subr.mxu0 0.0
  %1013 = vmatpush1.msra.mxu0 0.0
  %1014 = vmatprep.subr.mxu0 0.0
  %1015 = vmatpush1.msra.mxu0 0.0
  %1016 = vmatprep.subr.mxu0 0.0
  %1017 = vmatpush1.msra.mxu0 0.0
  %1018 = vmatprep.subr.mxu0 0.0
  %1019 = vmatpush1.msra.mxu0 0.0
  %1020 = vmatprep.subr.mxu0 0.0
  %1021 = vmatpush1.msra.mxu0 0.0
  %1022 = vmatprep.subr.mxu0 0.0
  %1023 = vmatpush1.msra.mxu0 0.0
  %1024 = vmatprep.subr.mxu0 0.0
  %1025 = vmatpush1.msra.mxu0 0.0
  %1026 = vmatprep.subr.mxu0 0.0
  %1027 = vmatpush1.msra.mxu0 0.0
  %1028 = vmatprep.subr.mxu0 0.0
  %1029 = vmatpush1.msra.mxu0 0.0
  %1030 = vmatprep.subr.mxu0 0.0
  %1031 = vmatpush1.msra.mxu0 0.0
  %1032 = vmatprep.subr.mxu0 0.0
  %1033 = vmatpush1.msra.mxu0 0.0
  %1034 = vmatprep.subr.mxu0 0.0
  %1035 = vmatpush1.msra.mxu0 0.0
  %1036 = vmatprep.subr.mxu0 0.0
  %1037 = vmatpush1.msra.mxu0 0.0
  %1038 = vmatprep.subr.mxu0 0.0
  %1039 = vmatpush1.msra.mxu0 0.0
  %1040 = vmatprep.subr.mxu0 0.0
  %1041 = vmatpush1.msra.mxu0 0.0
  %1042 = vmatprep.subr.mxu0 0.0
  %1043 = vmatpush1.msra.mxu0 0.0
  %1044 = vmatprep.subr.mxu0 0.0
  %1045 = vmatpush1.msra.mxu0 0.0
  %1046 = vmatprep.subr.mxu0 0.0
  %1047 = vmatpush1.msra.mxu0 0.0
  %1048 = vmatprep.subr.mxu0 0.0
  %1049 = vmatpush1.msra.mxu0 0.0
  %1050 = vmatprep.subr.mxu0 0.0
  %1051 = vmatpush1.msra.mxu0 0.0
  %1052 = vmatprep.subr.mxu0 0.0
  %1053 = vmatpush1.msra.mxu0 0.0
  %1054 = vmatprep.subr.mxu0 0.0
  %1055 = vmatpush1.msra.mxu0 0.0
  %1056 = vmatprep.subr.mxu0 0.0
  %1057 = vmatpush1.msra.mxu0 0.0
  %1058 = vmatprep.subr.mxu0 0.0
  %1059 = vmatpush1.msra.mxu0 0.0
  %1060 = vmatprep.subr.mxu0 0.0
  %1061 = vmatpush1.msra.mxu0 0.0
  %1062 = vmatprep.mubr.f32.mxu0 0.0
  %1063 = vmatmul.mubr.f32.gmra.mrb[0].mxu0 %v996
  %v1064 = vpop.f32.mrb[0].mxu0
  %v1065 = vadd.f32 0.0, %v1064
  %v1066 = vpop.f32.mrb[0].mxu0
  %1067 = vdwg.mxu0
  %v1068 = vld [vmem:[#allocation2 + $0x30] sm:$0xff]
  %v1069 = vadd.f32 %v1068, %v990
  %v1070 = vld [vmem:[#allocation2 + $0x48] sm:$0xff]
  %v1071 = vadd.f32 %v1070, %v1065
  %s1072 = scalar_lea.vmem %s0, 48
  %v1073 = vld [vmem:[%s1072] sm:$0xff]
  %v1074 = vld [vmem:[%s1072 + $0x8] sm:$0xff]
  %1076 = vset.pattern.permute.xlu0 0
  %1077 = vperm.xlu0 %1076, %v1073
  %v1078 = vpop.permute.xlu0 %1077
  %1081 = vset.pattern.permute.xlu0 0
  %1082 = vperm.xlu0 %1081, %v1074
  %v1083 = vpop.permute.xlu0 %1082
  %v1085 = vsub.f32 1.0, %v1078
  %v1086 = vsub.f32 1.0, %v1083
  %v1087 = vxor.u32 %v1069, 2147483648
  %v1088 = vxor.u32 %v1071, 2147483648
  %v1089 = vmul.f32 %v1087, 1.442695
  %v1090 = vpow.pop %v1089
  %v1091 = vmul.f32 %v1088, 1.442695
  %v1092 = vpow.pop %v1091
  %v1093 = vadd.f32 %v1090, 1.0
  %v1094 = vadd.f32 %v1092, 1.0
  %v1095 = vrcp.pop %v1093
  %v1096 = vmul.f32 1.0, %v1095
  %v1097 = vrcp.pop %v1094
  %v1098 = vmul.f32 1.0, %v1097
  %v1099 = vtanh.pop %v1069
  %v1100 = vtanh.pop %v1071
  %v1101 = vmul.f32 %v1096, %v906
  %v1102 = vmul.f32 %v1098, %v907
  %1105 = vrot.lane.b32.xlu0 %v1099, 32
  %v1106 = vpop.permute.xlu0 %1105
  %1107 = vrot.lane.b32.xlu0 %v1100, 32
  %v1108 = vpop.permute.xlu0 %1107
  %v1111 = vmul.f32 %v1096, %v1106
  %v1112 = vmul.f32 %v1098, %v1108
  %1115 = vrot.lane.b32.xlu0 %v1111, 32
  %v1116 = vpop.permute.xlu0 %1115
  %1117 = vrot.lane.b32.xlu0 %v1112, 32
  %v1118 = vpop.permute.xlu0 %1117
  %v1121 = vadd.f32 %v1101, %v1116
  %v1122 = vadd.f32 %v1102, %v1118
  %v1123 = vtanh.pop %v1121
  %v1124 = vtanh.pop %v1122
  %1127 = vrot.lane.b32.xlu0 %v1123, 32
  %v1128 = vpop.permute.xlu0 %1127
  %1129 = vrot.lane.b32.xlu0 %v1124, 32
  %v1130 = vpop.permute.xlu0 %1129
  %v1133 = vmul.f32 %v1096, %v1128
  %v1134 = vmul.f32 %v1098, %v1130
  %v1135 = vmul.f32 %v1078, %v1133
  %v1136 = vmul.f32 %v1083, %v1134
  %v1137 = vmul.f32 %v1085, %v900
  %v1138 = vmul.f32 %v1086, %v901
  %v1139 = vadd.f32 %v1135, %v1137
  %v1140 = vadd.f32 %v1136, %v1138
  %v1141 = vmul.f32 %v1078, %v1121
  %v1142 = vmul.f32 %v1083, %v1122
  %v1143 = vmul.f32 %v1085, %v906
  %v1144 = vmul.f32 %v1086, %v907
  %v1145 = vadd.f32 %v1141, %v1143
  %v1146 = vadd.f32 %v1142, %v1144
  %1148 = vrot.lane.b32.xlu0 %v1135, 64
  %v1149 = vpop.permute.xlu0 %1148
  %1151 = vst.msk [vmem:[#allocation3 + $0x18] sm:$0xff] %vm209, %v1149
  %1153 = vrot.lane.b32.xlu0 %v1136, 96
  %v1154 = vpop.permute.xlu0 %1153
  %1156 = vst.msk [vmem:[#allocation3 + $0x20] sm:$0xff] %vm438, %v1154
  %1158 = vrot.lane.b32.xlu0 %v1139, 64
  %v1159 = vpop.permute.xlu0 %1158
  %v1160 = vsel %vm209, %v1159, 0
  %1162 = vmatprep.subr.mxu0 0.0
  %1163 = vmatpush1.msra.mxu0 %v201
  %1164 = vmatprep.subr.mxu0 0.0
  %1165 = vmatpush1.msra.mxu0 %v202
  %1166 = vmatprep.subr.mxu0 0.0
  %1167 = vmatpush1.msra.mxu0 %v203
  %1168 = vmatprep.subr.mxu0 0.0
  %1169 = vmatpush1.msra.mxu0 %v204
  %1170 = vmatprep.subr.mxu0 0.0
  %1171 = vmatpush1.msra.mxu0 0.0
  %1172 = vmatprep.subr.mxu0 0.0
  %1173 = vmatpush1.msra.mxu0 0.0
  %1174 = vmatprep.subr.mxu0 0.0
  %1175 = vmatpush1.msra.mxu0 0.0
  %1176 = vmatprep.subr.mxu0 0.0
  %1177 = vmatpush1.msra.mxu0 0.0
  %1178 = vmatprep.subr.mxu0 0.0
  %1179 = vmatpush1.msra.mxu0 0.0
  %1180 = vmatprep.subr.mxu0 0.0
  %1181 = vmatpush1.msra.mxu0 0.0
  %1182 = vmatprep.subr.mxu0 0.0
  %1183 = vmatpush1.msra.mxu0 0.0
  %1184 = vmatprep.subr.mxu0 0.0
  %1185 = vmatpush1.msra.mxu0 0.0
  %1186 = vmatprep.subr.mxu0 0.0
  %1187 = vmatpush1.msra.mxu0 0.0
  %1188 = vmatprep.subr.mxu0 0.0
  %1189 = vmatpush1.msra.mxu0 0.0
  %1190 = vmatprep.subr.mxu0 0.0
  %1191 = vmatpush1.msra.mxu0 0.0
  %1192 = vmatprep.subr.mxu0 0.0
  %1193 = vmatpush1.msra.mxu0 0.0
  %1194 = vmatprep.subr.mxu0 0.0
  %1195 = vmatpush1.msra.mxu0 0.0
  %1196 = vmatprep.subr.mxu0 0.0
  %1197 = vmatpush1.msra.mxu0 0.0
  %1198 = vmatprep.subr.mxu0 0.0
  %1199 = vmatpush1.msra.mxu0 0.0
  %1200 = vmatprep.subr.mxu0 0.0
  %1201 = vmatpush1.msra.mxu0 0.0
  %1202 = vmatprep.subr.mxu0 0.0
  %1203 = vmatpush1.msra.mxu0 0.0
  %1204 = vmatprep.subr.mxu0 0.0
  %1205 = vmatpush1.msra.mxu0 0.0
  %1206 = vmatprep.subr.mxu0 0.0
  %1207 = vmatpush1.msra.mxu0 0.0
  %1208 = vmatprep.subr.mxu0 0.0
  %1209 = vmatpush1.msra.mxu0 0.0
  %1210 = vmatprep.subr.mxu0 0.0
  %1211 = vmatpush1.msra.mxu0 0.0
  %1212 = vmatprep.subr.mxu0 0.0
  %1213 = vmatpush1.msra.mxu0 0.0
  %1214 = vmatprep.subr.mxu0 0.0
  %1215 = vmatpush1.msra.mxu0 0.0
  %1216 = vmatprep.subr.mxu0 0.0
  %1217 = vmatpush1.msra.mxu0 0.0
  %1218 = vmatprep.subr.mxu0 0.0
  %1219 = vmatpush1.msra.mxu0 0.0
  %1220 = vmatprep.subr.mxu0 0.0
  %1221 = vmatpush1.msra.mxu0 0.0
  %1222 = vmatprep.subr.mxu0 0.0
  %1223 = vmatpush1.msra.mxu0 0.0
  %1224 = vmatprep.subr.mxu0 0.0
  %1225 = vmatpush1.msra.mxu0 0.0
  %1226 = vmatprep.mubr.f32.mxu0 0.0
  %1227 = vmatmul.mubr.f32.gmra.mrb[0].mxu0 %v1160
  %v1228 = vpop.f32.mrb[0].mxu0
  %v1229 = vadd.f32 0.0, %v1228
  %v1230 = vpop.f32.mrb[0].mxu0
  %1231 = vdwg.mxu0
  %1233 = vrot.lane.b32.xlu0 %v1140, 64
  %v1234 = vpop.permute.xlu0 %1233
  %v1235 = vsel %vm209, %v1234, 0
  %1237 = vmatprep.subr.mxu0 0.0
  %1238 = vmatpush1.msra.mxu0 %v205
  %1239 = vmatprep.subr.mxu0 0.0
  %1240 = vmatpush1.msra.mxu0 %v206
  %1241 = vmatprep.subr.mxu0 0.0
  %1242 = vmatpush1.msra.mxu0 %v207
  %1243 = vmatprep.subr.mxu0 0.0
  %1244 = vmatpush1.msra.mxu0 %v208
  %1245 = vmatprep.subr.mxu0 0.0
  %1246 = vmatpush1.msra.mxu0 0.0
  %1247 = vmatprep.subr.mxu0 0.0
  %1248 = vmatpush1.msra.mxu0 0.0
  %1249 = vmatprep.subr.mxu0 0.0
  %1250 = vmatpush1.msra.mxu0 0.0
  %1251 = vmatprep.subr.mxu0 0.0
  %1252 = vmatpush1.msra.mxu0 0.0
  %1253 = vmatprep.subr.mxu0 0.0
  %1254 = vmatpush1.msra.mxu0 0.0
  %1255 = vmatprep.subr.mxu0 0.0
  %1256 = vmatpush1.msra.mxu0 0.0
  %1257 = vmatprep.subr.mxu0 0.0
  %1258 = vmatpush1.msra.mxu0 0.0
  %1259 = vmatprep.subr.mxu0 0.0
  %1260 = vmatpush1.msra.mxu0 0.0
  %1261 = vmatprep.subr.mxu0 0.0
  %1262 = vmatpush1.msra.mxu0 0.0
  %1263 = vmatprep.subr.mxu0 0.0
  %1264 = vmatpush1.msra.mxu0 0.0
  %1265 = vmatprep.subr.mxu0 0.0
  %1266 = vmatpush1.msra.mxu0 0.0
  %1267 = vmatprep.subr.mxu0 0.0
  %1268 = vmatpush1.msra.mxu0 0.0
  %1269 = vmatprep.subr.mxu0 0.0
  %1270 = vmatpush1.msra.mxu0 0.0
  %1271 = vmatprep.subr.mxu0 0.0
  %1272 = vmatpush1.msra.mxu0 0.0
  %1273 = vmatprep.subr.mxu0 0.0
  %1274 = vmatpush1.msra.mxu0 0.0
  %1275 = vmatprep.subr.mxu0 0.0
  %1276 = vmatpush1.msra.mxu0 0.0
  %1277 = vmatprep.subr.mxu0 0.0
  %1278 = vmatpush1.msra.mxu0 0.0
  %1279 = vmatprep.subr.mxu0 0.0
  %1280 = vmatpush1.msra.mxu0 0.0
  %1281 = vmatprep.subr.mxu0 0.0
  %1282 = vmatpush1.msra.mxu0 0.0
  %1283 = vmatprep.subr.mxu0 0.0
  %1284 = vmatpush1.msra.mxu0 0.0
  %1285 = vmatprep.subr.mxu0 0.0
  %1286 = vmatpush1.msra.mxu0 0.0
  %1287 = vmatprep.subr.mxu0 0.0
  %1288 = vmatpush1.msra.mxu0 0.0
  %1289 = vmatprep.subr.mxu0 0.0
  %1290 = vmatpush1.msra.mxu0 0.0
  %1291 = vmatprep.subr.mxu0 0.0
  %1292 = vmatpush1.msra.mxu0 0.0
  %1293 = vmatprep.subr.mxu0 0.0
  %1294 = vmatpush1.msra.mxu0 0.0
  %1295 = vmatprep.subr.mxu0 0.0
  %1296 = vmatpush1.msra.mxu0 0.0
  %1297 = vmatprep.subr.mxu0 0.0
  %1298 = vmatpush1.msra.mxu0 0.0
  %1299 = vmatprep.subr.mxu0 0.0
  %1300 = vmatpush1.msra.mxu0 0.0
  %1301 = vmatprep.mubr.f32.mxu0 0.0
  %1302 = vmatmul.mubr.f32.gmra.mrb[0].mxu0 %v1235
  %v1303 = vpop.f32.mrb[0].mxu0
  %v1304 = vadd.f32 0.0, %v1303
  %v1305 = vpop.f32.mrb[0].mxu0
  %1306 = vdwg.mxu0
  %v1307 = vld [vmem:[#allocation2 + $0x40] sm:$0xff]
  %v1308 = vadd.f32 %v1307, %v1229
  %v1309 = vld [vmem:[#allocation2 + $0x38] sm:$0xff]
  %v1310 = vadd.f32 %v1309, %v1304
  %s1311 = scalar_lea.vmem %s0, 64
  %v1312 = vld [vmem:[%s1311] sm:$0xff]
  %v1313 = vld [vmem:[%s1311 + $0x8] sm:$0xff]
  %1315 = vset.pattern.permute.xlu0 0
  %1316 = vperm.xlu0 %1315, %v1312
  %v1317 = vpop.permute.xlu0 %1316
  %1320 = vset.pattern.permute.xlu0 0
  %1321 = vperm.xlu0 %1320, %v1313
  %v1322 = vpop.permute.xlu0 %1321
  %v1324 = vsub.f32 1.0, %v1317
  %v1325 = vsub.f32 1.0, %v1322
  %v1326 = vxor.u32 %v1308, 2147483648
  %v1327 = vxor.u32 %v1310, 2147483648
  %v1328 = vmul.f32 %v1326, 1.442695
  %v1329 = vpow.pop %v1328
  %v1330 = vmul.f32 %v1327, 1.442695
  %v1331 = vpow.pop %v1330
  %v1332 = vadd.f32 %v1329, 1.0
  %v1333 = vadd.f32 %v1331, 1.0
  %v1334 = vrcp.pop %v1332
  %v1335 = vmul.f32 1.0, %v1334
  %v1336 = vrcp.pop %v1333
  %v1337 = vmul.f32 1.0, %v1336
  %v1338 = vtanh.pop %v1308
  %v1339 = vtanh.pop %v1310
  %v1340 = vmul.f32 %v1335, %v1145
  %v1341 = vmul.f32 %v1337, %v1146
  %1344 = vrot.lane.b32.xlu0 %v1338, 32
  %v1345 = vpop.permute.xlu0 %1344
  %1346 = vrot.lane.b32.xlu0 %v1339, 32
  %v1347 = vpop.permute.xlu0 %1346
  %v1350 = vmul.f32 %v1335, %v1345
  %v1351 = vmul.f32 %v1337, %v1347
  %1354 = vrot.lane.b32.xlu0 %v1350, 32
  %v1355 = vpop.permute.xlu0 %1354
  %1356 = vrot.lane.b32.xlu0 %v1351, 32
  %v1357 = vpop.permute.xlu0 %1356
  %v1360 = vadd.f32 %v1340, %v1355
  %v1361 = vadd.f32 %v1341, %v1357
  %v1362 = vtanh.pop %v1360
  %v1363 = vtanh.pop %v1361
  %1366 = vrot.lane.b32.xlu0 %v1362, 32
  %v1367 = vpop.permute.xlu0 %1366
  %1368 = vrot.lane.b32.xlu0 %v1363, 32
  %v1369 = vpop.permute.xlu0 %1368
  %v1372 = vmul.f32 %v1335, %v1367
  %v1373 = vmul.f32 %v1337, %v1369
  %v1374 = vmul.f32 %v1317, %v1372
  %v1375 = vmul.f32 %v1322, %v1373
  %v1376 = vmul.f32 %v1324, %v1139
  %v1377 = vmul.f32 %v1325, %v1140
  %v1378 = vadd.f32 %v1374, %v1376
  %v1379 = vadd.f32 %v1375, %v1377
  %v1380 = vmul.f32 %v1317, %v1360
  %v1381 = vmul.f32 %v1322, %v1361
  %v1382 = vmul.f32 %v1324, %v1145
  %v1383 = vmul.f32 %v1325, %v1146
  %v1384 = vadd.f32 %v1380, %v1382
  %v1385 = vadd.f32 %v1381, %v1383
  %1387 = vrot.lane.b32.xlu0 %v1374, 64
  %v1388 = vpop.permute.xlu0 %1387
  %1390 = vst.msk [vmem:[#allocation3 + $0x20] sm:$0xff] %vm209, %v1388
  %1392 = vrot.lane.b32.xlu0 %v1375, 96
  %v1393 = vpop.permute.xlu0 %1392
  %1395 = vst.msk [vmem:[#allocation3 + $0x18] sm:$0xff] %vm438, %v1393
  %1397 = vrot.lane.b32.xlu0 %v1378, 64
  %v1398 = vpop.permute.xlu0 %1397
  %v1399 = vsel %vm209, %v1398, 0
  %1401 = vmatprep.subr.mxu0 0.0
  %1402 = vmatpush1.msra.mxu0 %v201
  %1403 = vmatprep.subr.mxu0 0.0
  %1404 = vmatpush1.msra.mxu0 %v202
  %1405 = vmatprep.subr.mxu0 0.0
  %1406 = vmatpush1.msra.mxu0 %v203
  %1407 = vmatprep.subr.mxu0 0.0
  %1408 = vmatpush1.msra.mxu0 %v204
  %1409 = vmatprep.subr.mxu0 0.0
  %1410 = vmatpush1.msra.mxu0 0.0
  %1411 = vmatprep.subr.mxu0 0.0
  %1412 = vmatpush1.msra.mxu0 0.0
  %1413 = vmatprep.subr.mxu0 0.0
  %1414 = vmatpush1.msra.mxu0 0.0
  %1415 = vmatprep.subr.mxu0 0.0
  %1416 = vmatpush1.msra.mxu0 0.0
  %1417 = vmatprep.subr.mxu0 0.0
  %1418 = vmatpush1.msra.mxu0 0.0
  %1419 = vmatprep.subr.mxu0 0.0
  %1420 = vmatpush1.msra.mxu0 0.0
  %1421 = vmatprep.subr.mxu0 0.0
  %1422 = vmatpush1.msra.mxu0 0.0
  %1423 = vmatprep.subr.mxu0 0.0
  %1424 = vmatpush1.msra.mxu0 0.0
  %1425 = vmatprep.subr.mxu0 0.0
  %1426 = vmatpush1.msra.mxu0 0.0
  %1427 = vmatprep.subr.mxu0 0.0
  %1428 = vmatpush1.msra.mxu0 0.0
  %1429 = vmatprep.subr.mxu0 0.0
  %1430 = vmatpush1.msra.mxu0 0.0
  %1431 = vmatprep.subr.mxu0 0.0
  %1432 = vmatpush1.msra.mxu0 0.0
  %1433 = vmatprep.subr.mxu0 0.0
  %1434 = vmatpush1.msra.mxu0 0.0
  %1435 = vmatprep.subr.mxu0 0.0
  %1436 = vmatpush1.msra.mxu0 0.0
  %1437 = vmatprep.subr.mxu0 0.0
  %1438 = vmatpush1.msra.mxu0 0.0
  %1439 = vmatprep.subr.mxu0 0.0
  %1440 = vmatpush1.msra.mxu0 0.0
  %1441 = vmatprep.subr.mxu0 0.0
  %1442 = vmatpush1.msra.mxu0 0.0
  %1443 = vmatprep.subr.mxu0 0.0
  %1444 = vmatpush1.msra.mxu0 0.0
  %1445 = vmatprep.subr.mxu0 0.0
  %1446 = vmatpush1.msra.mxu0 0.0
  %1447 = vmatprep.subr.mxu0 0.0
  %1448 = vmatpush1.msra.mxu0 0.0
  %1449 = vmatprep.subr.mxu0 0.0
  %1450 = vmatpush1.msra.mxu0 0.0
  %1451 = vmatprep.subr.mxu0 0.0
  %1452 = vmatpush1.msra.mxu0 0.0
  %1453 = vmatprep.subr.mxu0 0.0
  %1454 = vmatpush1.msra.mxu0 0.0
  %1455 = vmatprep.subr.mxu0 0.0
  %1456 = vmatpush1.msra.mxu0 0.0
  %1457 = vmatprep.subr.mxu0 0.0
  %1458 = vmatpush1.msra.mxu0 0.0
  %1459 = vmatprep.subr.mxu0 0.0
  %1460 = vmatpush1.msra.mxu0 0.0
  %1461 = vmatprep.subr.mxu0 0.0
  %1462 = vmatpush1.msra.mxu0 0.0
  %1463 = vmatprep.subr.mxu0 0.0
  %1464 = vmatpush1.msra.mxu0 0.0
  %1465 = vmatprep.mubr.f32.mxu0 0.0
  %1466 = vmatmul.mubr.f32.gmra.mrb[0].mxu0 %v1399
  %v1467 = vpop.f32.mrb[0].mxu0
  %v1468 = vadd.f32 0.0, %v1467
  %v1469 = vpop.f32.mrb[0].mxu0
  %1470 = vdwg.mxu0
  %1472 = vrot.lane.b32.xlu0 %v1379, 64
  %v1473 = vpop.permute.xlu0 %1472
  %v1474 = vsel %vm209, %v1473, 0
  %1476 = vmatprep.subr.mxu0 0.0
  %1477 = vmatpush1.msra.mxu0 %v205
  %1478 = vmatprep.subr.mxu0 0.0
  %1479 = vmatpush1.msra.mxu0 %v206
  %1480 = vmatprep.subr.mxu0 0.0
  %1481 = vmatpush1.msra.mxu0 %v207
  %1482 = vmatprep.subr.mxu0 0.0
  %1483 = vmatpush1.msra.mxu0 %v208
  %1484 = vmatprep.subr.mxu0 0.0
  %1485 = vmatpush1.msra.mxu0 0.0
  %1486 = vmatprep.subr.mxu0 0.0
  %1487 = vmatpush1.msra.mxu0 0.0
  %1488 = vmatprep.subr.mxu0 0.0
  %1489 = vmatpush1.msra.mxu0 0.0
  %1490 = vmatprep.subr.mxu0 0.0
  %1491 = vmatpush1.msra.mxu0 0.0
  %1492 = vmatprep.subr.mxu0 0.0
  %1493 = vmatpush1.msra.mxu0 0.0
  %1494 = vmatprep.subr.mxu0 0.0
  %1495 = vmatpush1.msra.mxu0 0.0
  %1496 = vmatprep.subr.mxu0 0.0
  %1497 = vmatpush1.msra.mxu0 0.0
  %1498 = vmatprep.subr.mxu0 0.0
  %1499 = vmatpush1.msra.mxu0 0.0
  %1500 = vmatprep.subr.mxu0 0.0
  %1501 = vmatpush1.msra.mxu0 0.0
  %1502 = vmatprep.subr.mxu0 0.0
  %1503 = vmatpush1.msra.mxu0 0.0
  %1504 = vmatprep.subr.mxu0 0.0
  %1505 = vmatpush1.msra.mxu0 0.0
  %1506 = vmatprep.subr.mxu0 0.0
  %1507 = vmatpush1.msra.mxu0 0.0
  %1508 = vmatprep.subr.mxu0 0.0
  %1509 = vmatpush1.msra.mxu0 0.0
  %1510 = vmatprep.subr.mxu0 0.0
  %1511 = vmatpush1.msra.mxu0 0.0
  %1512 = vmatprep.subr.mxu0 0.0
  %1513 = vmatpush1.msra.mxu0 0.0
  %1514 = vmatprep.subr.mxu0 0.0
  %1515 = vmatpush1.msra.mxu0 0.0
  %1516 = vmatprep.subr.mxu0 0.0
  %1517 = vmatpush1.msra.mxu0 0.0
  %1518 = vmatprep.subr.mxu0 0.0
  %1519 = vmatpush1.msra.mxu0 0.0
  %1520 = vmatprep.subr.mxu0 0.0
  %1521 = vmatpush1.msra.mxu0 0.0
  %1522 = vmatprep.subr.mxu0 0.0
  %1523 = vmatpush1.msra.mxu0 0.0
  %1524 = vmatprep.subr.mxu0 0.0
  %1525 = vmatpush1.msra.mxu0 0.0
  %1526 = vmatprep.subr.mxu0 0.0
  %1527 = vmatpush1.msra.mxu0 0.0
  %1528 = vmatprep.subr.mxu0 0.0
  %1529 = vmatpush1.msra.mxu0 0.0
  %1530 = vmatprep.subr.mxu0 0.0
  %1531 = vmatpush1.msra.mxu0 0.0
  %1532 = vmatprep.subr.mxu0 0.0
  %1533 = vmatpush1.msra.mxu0 0.0
  %1534 = vmatprep.subr.mxu0 0.0
  %1535 = vmatpush1.msra.mxu0 0.0
  %1536 = vmatprep.subr.mxu0 0.0
  %1537 = vmatpush1.msra.mxu0 0.0
  %1538 = vmatprep.subr.mxu0 0.0
  %1539 = vmatpush1.msra.mxu0 0.0
  %1540 = vmatprep.mubr.f32.mxu0 0.0
  %1541 = vmatmul.mubr.f32.gmra.mrb[0].mxu0 %v1474
  %v1542 = vpop.f32.mrb[0].mxu0
  %v1543 = vadd.f32 0.0, %v1542
  %v1544 = vpop.f32.mrb[0].mxu0
  %1545 = vdwg.mxu0
  %v1546 = vld [vmem:[#allocation2 + $0x50] sm:$0xff]
  %v1547 = vadd.f32 %v1546, %v1468
  %v1548 = vld [vmem:[#allocation2 + $0x28] sm:$0xff]
  %v1549 = vadd.f32 %v1548, %v1543
  %s1550 = scalar_lea.vmem %s0, 80
  %v1551 = vld [vmem:[%s1550] sm:$0xff]
  %v1552 = vld [vmem:[%s1550 + $0x8] sm:$0xff]
  %1554 = vset.pattern.permute.xlu0 0
  %1555 = vperm.xlu0 %1554, %v1551
  %v1556 = vpop.permute.xlu0 %1555
  %1559 = vset.pattern.permute.xlu0 0
  %1560 = vperm.xlu0 %1559, %v1552
  %v1561 = vpop.permute.xlu0 %1560
  %v1563 = vsub.f32 1.0, %v1556
  %v1564 = vsub.f32 1.0, %v1561
  %v1565 = vxor.u32 %v1547, 2147483648
  %v1566 = vxor.u32 %v1549, 2147483648
  %v1567 = vmul.f32 %v1565, 1.442695
  %v1568 = vpow.pop %v1567
  %v1569 = vmul.f32 %v1566, 1.442695
  %v1570 = vpow.pop %v1569
  %v1571 = vadd.f32 %v1568, 1.0
  %v1572 = vadd.f32 %v1570, 1.0
  %v1573 = vrcp.pop %v1571
  %v1574 = vmul.f32 1.0, %v1573
  %v1575 = vrcp.pop %v1572
  %v1576 = vmul.f32 1.0, %v1575
  %v1577 = vtanh.pop %v1547
  %v1578 = vtanh.pop %v1549
  %v1579 = vmul.f32 %v1574, %v1384
  %v1580 = vmul.f32 %v1576, %v1385
  %1583 = vrot.lane.b32.xlu0 %v1577, 32
  %v1584 = vpop.permute.xlu0 %1583
  %1585 = vrot.lane.b32.xlu0 %v1578, 32
  %v1586 = vpop.permute.xlu0 %1585
  %v1589 = vmul.f32 %v1574, %v1584
  %v1590 = vmul.f32 %v1576, %v1586
  %1593 = vrot.lane.b32.xlu0 %v1589, 32
  %v1594 = vpop.permute.xlu0 %1593
  %1595 = vrot.lane.b32.xlu0 %v1590, 32
  %v1596 = vpop.permute.xlu0 %1595
  %v1599 = vadd.f32 %v1579, %v1594
  %v1600 = vadd.f32 %v1580, %v1596
  %v1601 = vtanh.pop %v1599
  %v1602 = vtanh.pop %v1600
  %1605 = vrot.lane.b32.xlu0 %v1601, 32
  %v1606 = vpop.permute.xlu0 %1605
  %1607 = vrot.lane.b32.xlu0 %v1602, 32
  %v1608 = vpop.permute.xlu0 %1607
  %v1611 = vmul.f32 %v1574, %v1606
  %v1612 = vmul.f32 %v1576, %v1608
  %v1613 = vmul.f32 %v1556, %v1611
  %v1614 = vmul.f32 %v1561, %v1612
  %v1615 = vmul.f32 %v1563, %v1378
  %v1616 = vmul.f32 %v1564, %v1379
  %v1617 = vadd.f32 %v1613, %v1615
  %v1618 = vadd.f32 %v1614, %v1616
  %v1619 = vmul.f32 %v1556, %v1599
  %v1620 = vmul.f32 %v1561, %v1600
  %v1621 = vmul.f32 %v1563, %v1384
  %v1622 = vmul.f32 %v1564, %v1385
  %v1623 = vadd.f32 %v1619, %v1621
  %v1624 = vadd.f32 %v1620, %v1622
  %1626 = vrot.lane.b32.xlu0 %v1613, 64
  %v1627 = vpop.permute.xlu0 %1626
  %1629 = vst.msk [vmem:[#allocation3 + $0x28] sm:$0xff] %vm209, %v1627
  %1631 = vrot.lane.b32.xlu0 %v1614, 96
  %v1632 = vpop.permute.xlu0 %1631
  %1634 = vst.msk [vmem:[#allocation3 + $0x10] sm:$0xff] %vm438, %v1632
  %1636 = vrot.lane.b32.xlu0 %v1617, 64
  %v1637 = vpop.permute.xlu0 %1636
  %v1638 = vsel %vm209, %v1637, 0
  %1640 = vmatprep.subr.mxu0 0.0
  %1641 = vmatpush1.msra.mxu0 %v201
  %1642 = vmatprep.subr.mxu0 0.0
  %1643 = vmatpush1.msra.mxu0 %v202
  %1644 = vmatprep.subr.mxu0 0.0
  %1645 = vmatpush1.msra.mxu0 %v203
  %1646 = vmatprep.subr.mxu0 0.0
  %1647 = vmatpush1.msra.mxu0 %v204
  %1648 = vmatprep.subr.mxu0 0.0
  %1649 = vmatpush1.msra.mxu0 0.0
  %1650 = vmatprep.subr.mxu0 0.0
  %1651 = vmatpush1.msra.mxu0 0.0
  %1652 = vmatprep.subr.mxu0 0.0
  %1653 = vmatpush1.msra.mxu0 0.0
  %1654 = vmatprep.subr.mxu0 0.0
  %1655 = vmatpush1.msra.mxu0 0.0
  %1656 = vmatprep.subr.mxu0 0.0
  %1657 = vmatpush1.msra.mxu0 0.0
  %1658 = vmatprep.subr.mxu0 0.0
  %1659 = vmatpush1.msra.mxu0 0.0
  %1660 = vmatprep.subr.mxu0 0.0
  %1661 = vmatpush1.msra.mxu0 0.0
  %1662 = vmatprep.subr.mxu0 0.0
  %1663 = vmatpush1.msra.mxu0 0.0
  %1664 = vmatprep.subr.mxu0 0.0
  %1665 = vmatpush1.msra.mxu0 0.0
  %1666 = vmatprep.subr.mxu0 0.0
  %1667 = vmatpush1.msra.mxu0 0.0
  %1668 = vmatprep.subr.mxu0 0.0
  %1669 = vmatpush1.msra.mxu0 0.0
  %1670 = vmatprep.subr.mxu0 0.0
  %1671 = vmatpush1.msra.mxu0 0.0
  %1672 = vmatprep.subr.mxu0 0.0
  %1673 = vmatpush1.msra.mxu0 0.0
  %1674 = vmatprep.subr.mxu0 0.0
  %1675 = vmatpush1.msra.mxu0 0.0
  %1676 = vmatprep.subr.mxu0 0.0
  %1677 = vmatpush1.msra.mxu0 0.0
  %1678 = vmatprep.subr.mxu0 0.0
  %1679 = vmatpush1.msra.mxu0 0.0
  %1680 = vmatprep.subr.mxu0 0.0
  %1681 = vmatpush1.msra.mxu0 0.0
  %1682 = vmatprep.subr.mxu0 0.0
  %1683 = vmatpush1.msra.mxu0 0.0
  %1684 = vmatprep.subr.mxu0 0.0
  %1685 = vmatpush1.msra.mxu0 0.0
  %1686 = vmatprep.subr.mxu0 0.0
  %1687 = vmatpush1.msra.mxu0 0.0
  %1688 = vmatprep.subr.mxu0 0.0
  %1689 = vmatpush1.msra.mxu0 0.0
  %1690 = vmatprep.subr.mxu0 0.0
  %1691 = vmatpush1.msra.mxu0 0.0
  %1692 = vmatprep.subr.mxu0 0.0
  %1693 = vmatpush1.msra.mxu0 0.0
  %1694 = vmatprep.subr.mxu0 0.0
  %1695 = vmatpush1.msra.mxu0 0.0
  %1696 = vmatprep.subr.mxu0 0.0
  %1697 = vmatpush1.msra.mxu0 0.0
  %1698 = vmatprep.subr.mxu0 0.0
  %1699 = vmatpush1.msra.mxu0 0.0
  %1700 = vmatprep.subr.mxu0 0.0
  %1701 = vmatpush1.msra.mxu0 0.0
  %1702 = vmatprep.subr.mxu0 0.0
  %1703 = vmatpush1.msra.mxu0 0.0
  %1704 = vmatprep.mubr.f32.mxu0 0.0
  %1705 = vmatmul.mubr.f32.gmra.mrb[0].mxu0 %v1638
  %v1706 = vpop.f32.mrb[0].mxu0
  %v1707 = vadd.f32 0.0, %v1706
  %v1708 = vpop.f32.mrb[0].mxu0
  %1709 = vdwg.mxu0
  %1711 = vrot.lane.b32.xlu0 %v1618, 64
  %v1712 = vpop.permute.xlu0 %1711
  %v1713 = vsel %vm209, %v1712, 0
  %1715 = vmatprep.subr.mxu0 0.0
  %1716 = vmatpush1.msra.mxu0 %v205
  %1717 = vmatprep.subr.mxu0 0.0
  %1718 = vmatpush1.msra.mxu0 %v206
  %1719 = vmatprep.subr.mxu0 0.0
  %1720 = vmatpush1.msra.mxu0 %v207
  %1721 = vmatprep.subr.mxu0 0.0
  %1722 = vmatpush1.msra.mxu0 %v208
  %1723 = vmatprep.subr.mxu0 0.0
  %1724 = vmatpush1.msra.mxu0 0.0
  %1725 = vmatprep.subr.mxu0 0.0
  %1726 = vmatpush1.msra.mxu0 0.0
  %1727 = vmatprep.subr.mxu0 0.0
  %1728 = vmatpush1.msra.mxu0 0.0
  %1729 = vmatprep.subr.mxu0 0.0
  %1730 = vmatpush1.msra.mxu0 0.0
  %1731 = vmatprep.subr.mxu0 0.0
  %1732 = vmatpush1.msra.mxu0 0.0
  %1733 = vmatprep.subr.mxu0 0.0
  %1734 = vmatpush1.msra.mxu0 0.0
  %1735 = vmatprep.subr.mxu0 0.0
  %1736 = vmatpush1.msra.mxu0 0.0
  %1737 = vmatprep.subr.mxu0 0.0
  %1738 = vmatpush1.msra.mxu0 0.0
  %1739 = vmatprep.subr.mxu0 0.0
  %1740 = vmatpush1.msra.mxu0 0.0
  %1741 = vmatprep.subr.mxu0 0.0
  %1742 = vmatpush1.msra.mxu0 0.0
  %1743 = vmatprep.subr.mxu0 0.0
  %1744 = vmatpush1.msra.mxu0 0.0
  %1745 = vmatprep.subr.mxu0 0.0
  %1746 = vmatpush1.msra.mxu0 0.0
  %1747 = vmatprep.subr.mxu0 0.0
  %1748 = vmatpush1.msra.mxu0 0.0
  %1749 = vmatprep.subr.mxu0 0.0
  %1750 = vmatpush1.msra.mxu0 0.0
  %1751 = vmatprep.subr.mxu0 0.0
  %1752 = vmatpush1.msra.mxu0 0.0
  %1753 = vmatprep.subr.mxu0 0.0
  %1754 = vmatpush1.msra.mxu0 0.0
  %1755 = vmatprep.subr.mxu0 0.0
  %1756 = vmatpush1.msra.mxu0 0.0
  %1757 = vmatprep.subr.mxu0 0.0
  %1758 = vmatpush1.msra.mxu0 0.0
  %1759 = vmatprep.subr.mxu0 0.0
  %1760 = vmatpush1.msra.mxu0 0.0
  %1761 = vmatprep.subr.mxu0 0.0
  %1762 = vmatpush1.msra.mxu0 0.0
  %1763 = vmatprep.subr.mxu0 0.0
  %1764 = vmatpush1.msra.mxu0 0.0
  %1765 = vmatprep.subr.mxu0 0.0
  %1766 = vmatpush1.msra.mxu0 0.0
  %1767 = vmatprep.subr.mxu0 0.0
  %1768 = vmatpush1.msra.mxu0 0.0
  %1769 = vmatprep.subr.mxu0 0.0
  %1770 = vmatpush1.msra.mxu0 0.0
  %1771 = vmatprep.subr.mxu0 0.0
  %1772 = vmatpush1.msra.mxu0 0.0
  %1773 = vmatprep.subr.mxu0 0.0
  %1774 = vmatpush1.msra.mxu0 0.0
  %1775 = vmatprep.subr.mxu0 0.0
  %1776 = vmatpush1.msra.mxu0 0.0
  %1777 = vmatprep.subr.mxu0 0.0
  %1778 = vmatpush1.msra.mxu0 0.0
  %1779 = vmatprep.mubr.f32.mxu0 0.0
  %1780 = vmatmul.mubr.f32.gmra.mrb[0].mxu0 %v1713
  %v1781 = vpop.f32.mrb[0].mxu0
  %v1782 = vadd.f32 0.0, %v1781
  %v1783 = vpop.f32.mrb[0].mxu0
  %1784 = vdwg.mxu0
  %v1785 = vld [vmem:[#allocation2 + $0x60] sm:$0xff]
  %v1786 = vadd.f32 %v1785, %v1707
  %v1787 = vld [vmem:[#allocation2 + $0x18] sm:$0xff]
  %v1788 = vadd.f32 %v1787, %v1782
  %s1789 = scalar_lea.vmem %s0, 96
  %v1790 = vld [vmem:[%s1789] sm:$0xff]
  %v1791 = vld [vmem:[%s1789 + $0x8] sm:$0xff]
  %1793 = vset.pattern.permute.xlu0 0
  %1794 = vperm.xlu0 %1793, %v1790
  %v1795 = vpop.permute.xlu0 %1794
  %1798 = vset.pattern.permute.xlu0 0
  %1799 = vperm.xlu0 %1798, %v1791
  %v1800 = vpop.permute.xlu0 %1799
  %v1802 = vsub.f32 1.0, %v1795
  %v1803 = vsub.f32 1.0, %v1800
  %v1804 = vxor.u32 %v1786, 2147483648
  %v1805 = vxor.u32 %v1788, 2147483648
  %v1806 = vmul.f32 %v1804, 1.442695
  %v1807 = vpow.pop %v1806
  %v1808 = vmul.f32 %v1805, 1.442695
  %v1809 = vpow.pop %v1808
  %v1810 = vadd.f32 %v1807, 1.0
  %v1811 = vadd.f32 %v1809, 1.0
  %v1812 = vrcp.pop %v1810
  %v1813 = vmul.f32 1.0, %v1812
  %v1814 = vrcp.pop %v1811
  %v1815 = vmul.f32 1.0, %v1814
  %v1816 = vtanh.pop %v1786
  %v1817 = vtanh.pop %v1788
  %v1818 = vmul.f32 %v1813, %v1623
  %v1819 = vmul.f32 %v1815, %v1624
  %1822 = vrot.lane.b32.xlu0 %v1816, 32
  %v1823 = vpop.permute.xlu0 %1822
  %1824 = vrot.lane.b32.xlu0 %v1817, 32
  %v1825 = vpop.permute.xlu0 %1824
  %v1828 = vmul.f32 %v1813, %v1823
  %v1829 = vmul.f32 %v1815, %v1825
  %1832 = vrot.lane.b32.xlu0 %v1828, 32
  %v1833 = vpop.permute.xlu0 %1832
  %1834 = vrot.lane.b32.xlu0 %v1829, 32
  %v1835 = vpop.permute.xlu0 %1834
  %v1838 = vadd.f32 %v1818, %v1833
  %v1839 = vadd.f32 %v1819, %v1835
  %v1840 = vtanh.pop %v1838
  %v1841 = vtanh.pop %v1839
  %1844 = vrot.lane.b32.xlu0 %v1840, 32
  %v1845 = vpop.permute.xlu0 %1844
  %1846 = vrot.lane.b32.xlu0 %v1841, 32
  %v1847 = vpop.permute.xlu0 %1846
  %v1850 = vmul.f32 %v1813, %v1845
  %v1851 = vmul.f32 %v1815, %v1847
  %v1852 = vmul.f32 %v1795, %v1850
  %v1853 = vmul.f32 %v1800, %v1851
  %v1854 = vmul.f32 %v1802, %v1617
  %v1855 = vmul.f32 %v1803, %v1618
  %v1856 = vadd.f32 %v1852, %v1854
  %v1857 = vadd.f32 %v1853, %v1855
  %v1858 = vmul.f32 %v1795, %v1838
  %v1859 = vmul.f32 %v1800, %v1839
  %v1860 = vmul.f32 %v1802, %v1623
  %v1861 = vmul.f32 %v1803, %v1624
  %v1862 = vadd.f32 %v1858, %v1860
  %v1863 = vadd.f32 %v1859, %v1861
  %1865 = vrot.lane.b32.xlu0 %v1852, 64
  %v1866 = vpop.permute.xlu0 %1865
  %1868 = vst.msk [vmem:[#allocation3 + $0x30] sm:$0xff] %vm209, %v1866
  %1870 = vrot.lane.b32.xlu0 %v1853, 96
  %v1871 = vpop.permute.xlu0 %1870
  %1873 = vst.msk [vmem:[#allocation3 + $0x8] sm:$0xff] %vm438, %v1871
  %1875 = vrot.lane.b32.xlu0 %v1856, 64
  %v1876 = vpop.permute.xlu0 %1875
  %v1877 = vsel %vm209, %v1876, 0
  %1879 = vmatprep.subr.mxu0 0.0
  %1880 = vmatpush1.msra.mxu0 %v201
  %1881 = vmatprep.subr.mxu0 0.0
  %1882 = vmatpush1.msra.mxu0 %v202
  %1883 = vmatprep.subr.mxu0 0.0
  %1884 = vmatpush1.msra.mxu0 %v203
  %1885 = vmatprep.subr.mxu0 0.0
  %1886 = vmatpush1.msra.mxu0 %v204
  %1887 = vmatprep.subr.mxu0 0.0
  %1888 = vmatpush1.msra.mxu0 0.0
  %1889 = vmatprep.subr.mxu0 0.0
  %1890 = vmatpush1.msra.mxu0 0.0
  %1891 = vmatprep.subr.mxu0 0.0
  %1892 = vmatpush1.msra.mxu0 0.0
  %1893 = vmatprep.subr.mxu0 0.0
  %1894 = vmatpush1.msra.mxu0 0.0
  %1895 = vmatprep.subr.mxu0 0.0
  %1896 = vmatpush1.msra.mxu0 0.0
  %1897 = vmatprep.subr.mxu0 0.0
  %1898 = vmatpush1.msra.mxu0 0.0
  %1899 = vmatprep.subr.mxu0 0.0
  %1900 = vmatpush1.msra.mxu0 0.0
  %1901 = vmatprep.subr.mxu0 0.0
  %1902 = vmatpush1.msra.mxu0 0.0
  %1903 = vmatprep.subr.mxu0 0.0
  %1904 = vmatpush1.msra.mxu0 0.0
  %1905 = vmatprep.subr.mxu0 0.0
  %1906 = vmatpush1.msra.mxu0 0.0
  %1907 = vmatprep.subr.mxu0 0.0
  %1908 = vmatpush1.msra.mxu0 0.0
  %1909 = vmatprep.subr.mxu0 0.0
  %1910 = vmatpush1.msra.mxu0 0.0
  %1911 = vmatprep.subr.mxu0 0.0
  %1912 = vmatpush1.msra.mxu0 0.0
  %1913 = vmatprep.subr.mxu0 0.0
  %1914 = vmatpush1.msra.mxu0 0.0
  %1915 = vmatprep.subr.mxu0 0.0
  %1916 = vmatpush1.msra.mxu0 0.0
  %1917 = vmatprep.subr.mxu0 0.0
  %1918 = vmatpush1.msra.mxu0 0.0
  %1919 = vmatprep.subr.mxu0 0.0
  %1920 = vmatpush1.msra.mxu0 0.0
  %1921 = vmatprep.subr.mxu0 0.0
  %1922 = vmatpush1.msra.mxu0 0.0
  %1923 = vmatprep.subr.mxu0 0.0
  %1924 = vmatpush1.msra.mxu0 0.0
  %1925 = vmatprep.subr.mxu0 0.0
  %1926 = vmatpush1.msra.mxu0 0.0
  %1927 = vmatprep.subr.mxu0 0.0
  %1928 = vmatpush1.msra.mxu0 0.0
  %1929 = vmatprep.subr.mxu0 0.0
  %1930 = vmatpush1.msra.mxu0 0.0
  %1931 = vmatprep.subr.mxu0 0.0
  %1932 = vmatpush1.msra.mxu0 0.0
  %1933 = vmatprep.subr.mxu0 0.0
  %1934 = vmatpush1.msra.mxu0 0.0
  %1935 = vmatprep.subr.mxu0 0.0
  %1936 = vmatpush1.msra.mxu0 0.0
  %1937 = vmatprep.subr.mxu0 0.0
  %1938 = vmatpush1.msra.mxu0 0.0
  %1939 = vmatprep.subr.mxu0 0.0
  %1940 = vmatpush1.msra.mxu0 0.0
  %1941 = vmatprep.subr.mxu0 0.0
  %1942 = vmatpush1.msra.mxu0 0.0
  %1943 = vmatprep.mubr.f32.mxu0 0.0
  %1944 = vmatmul.mubr.f32.gmra.mrb[0].mxu0 %v1877
  %v1945 = vpop.f32.mrb[0].mxu0
  %v1946 = vadd.f32 0.0, %v1945
  %v1947 = vpop.f32.mrb[0].mxu0
  %1948 = vdwg.mxu0
  %1950 = vrot.lane.b32.xlu0 %v1857, 64
  %v1951 = vpop.permute.xlu0 %1950
  %v1952 = vsel %vm209, %v1951, 0
  %1954 = vmatprep.subr.mxu0 0.0
  %1955 = vmatpush1.msra.mxu0 %v205
  %1956 = vmatprep.subr.mxu0 0.0
  %1957 = vmatpush1.msra.mxu0 %v206
  %1958 = vmatprep.subr.mxu0 0.0
  %1959 = vmatpush1.msra.mxu0 %v207
  %1960 = vmatprep.subr.mxu0 0.0
  %1961 = vmatpush1.msra.mxu0 %v208
  %1962 = vmatprep.subr.mxu0 0.0
  %1963 = vmatpush1.msra.mxu0 0.0
  %1964 = vmatprep.subr.mxu0 0.0
  %1965 = vmatpush1.msra.mxu0 0.0
  %1966 = vmatprep.subr.mxu0 0.0
  %1967 = vmatpush1.msra.mxu0 0.0
  %1968 = vmatprep.subr.mxu0 0.0
  %1969 = vmatpush1.msra.mxu0 0.0
  %1970 = vmatprep.subr.mxu0 0.0
  %1971 = vmatpush1.msra.mxu0 0.0
  %1972 = vmatprep.subr.mxu0 0.0
  %1973 = vmatpush1.msra.mxu0 0.0
  %1974 = vmatprep.subr.mxu0 0.0
  %1975 = vmatpush1.msra.mxu0 0.0
  %1976 = vmatprep.subr.mxu0 0.0
  %1977 = vmatpush1.msra.mxu0 0.0
  %1978 = vmatprep.subr.mxu0 0.0
  %1979 = vmatpush1.msra.mxu0 0.0
  %1980 = vmatprep.subr.mxu0 0.0
  %1981 = vmatpush1.msra.mxu0 0.0
  %1982 = vmatprep.subr.mxu0 0.0
  %1983 = vmatpush1.msra.mxu0 0.0
  %1984 = vmatprep.subr.mxu0 0.0
  %1985 = vmatpush1.msra.mxu0 0.0
  %1986 = vmatprep.subr.mxu0 0.0
  %1987 = vmatpush1.msra.mxu0 0.0
  %1988 = vmatprep.subr.mxu0 0.0
  %1989 = vmatpush1.msra.mxu0 0.0
  %1990 = vmatprep.subr.mxu0 0.0
  %1991 = vmatpush1.msra.mxu0 0.0
  %1992 = vmatprep.subr.mxu0 0.0
  %1993 = vmatpush1.msra.mxu0 0.0
  %1994 = vmatprep.subr.mxu0 0.0
  %1995 = vmatpush1.msra.mxu0 0.0
  %1996 = vmatprep.subr.mxu0 0.0
  %1997 = vmatpush1.msra.mxu0 0.0
  %1998 = vmatprep.subr.mxu0 0.0
  %1999 = vmatpush1.msra.mxu0 0.0
  %2000 = vmatprep.subr.mxu0 0.0
  %2001 = vmatpush1.msra.mxu0 0.0
  %2002 = vmatprep.subr.mxu0 0.0
  %2003 = vmatpush1.msra.mxu0 0.0
  %2004 = vmatprep.subr.mxu0 0.0
  %2005 = vmatpush1.msra.mxu0 0.0
  %2006 = vmatprep.subr.mxu0 0.0
  %2007 = vmatpush1.msra.mxu0 0.0
  %2008 = vmatprep.subr.mxu0 0.0
  %2009 = vmatpush1.msra.mxu0 0.0
  %2010 = vmatprep.subr.mxu0 0.0
  %2011 = vmatpush1.msra.mxu0 0.0
  %2012 = vmatprep.subr.mxu0 0.0
  %2013 = vmatpush1.msra.mxu0 0.0
  %2014 = vmatprep.subr.mxu0 0.0
  %2015 = vmatpush1.msra.mxu0 0.0
  %2016 = vmatprep.subr.mxu0 0.0
  %2017 = vmatpush1.msra.mxu0 0.0
  %2018 = vmatprep.mubr.f32.mxu0 0.0
  %2019 = vmatmul.mubr.f32.gmra.mrb[0].mxu0 %v1952
  %v2020 = vpop.f32.mrb[0].mxu0
  %v2021 = vadd.f32 0.0, %v2020
  %v2022 = vpop.f32.mrb[0].mxu0
  %2023 = vdwg.mxu0
  %v2024 = vld [vmem:[#allocation2 + $0x70] sm:$0xff]
  %v2025 = vadd.f32 %v2024, %v1946
  %v2026 = vld [vmem:[#allocation2 + $0x8] sm:$0xff]
  %v2027 = vadd.f32 %v2026, %v2021
  %s2028 = scalar_lea.vmem %s0, 112
  %v2029 = vld [vmem:[%s2028] sm:$0xff]
  %v2030 = vld [vmem:[%s2028 + $0x8] sm:$0xff]
  %2032 = vset.pattern.permute.xlu0 0
  %2033 = vperm.xlu0 %2032, %v2029
  %v2034 = vpop.permute.xlu0 %2033
  %2037 = vset.pattern.permute.xlu0 0
  %2038 = vperm.xlu0 %2037, %v2030
  %v2039 = vpop.permute.xlu0 %2038
  %v2041 = vxor.u32 %v2025, 2147483648
  %v2042 = vxor.u32 %v2027, 2147483648
  %v2043 = vmul.f32 %v2041, 1.442695
  %v2044 = vpow.pop %v2043
  %v2045 = vmul.f32 %v2042, 1.442695
  %v2046 = vpow.pop %v2045
  %v2047 = vadd.f32 %v2044, 1.0
  %v2048 = vadd.f32 %v2046, 1.0
  %v2049 = vrcp.pop %v2047
  %v2050 = vmul.f32 1.0, %v2049
  %v2051 = vrcp.pop %v2048
  %v2052 = vmul.f32 1.0, %v2051
  %v2053 = vtanh.pop %v2025
  %v2054 = vtanh.pop %v2027
  %v2055 = vmul.f32 %v2050, %v1862
  %v2056 = vmul.f32 %v2052, %v1863
  %2059 = vrot.lane.b32.xlu0 %v2053, 32
  %v2060 = vpop.permute.xlu0 %2059
  %2061 = vrot.lane.b32.xlu0 %v2054, 32
  %v2062 = vpop.permute.xlu0 %2061
  %v2065 = vmul.f32 %v2050, %v2060
  %v2066 = vmul.f32 %v2052, %v2062
  %2069 = vrot.lane.b32.xlu0 %v2065, 32
  %v2070 = vpop.permute.xlu0 %2069
  %2071 = vrot.lane.b32.xlu0 %v2066, 32
  %v2072 = vpop.permute.xlu0 %2071
  %v2075 = vadd.f32 %v2055, %v2070
  %v2076 = vadd.f32 %v2056, %v2072
  %v2077 = vtanh.pop %v2075
  %v2078 = vtanh.pop %v2076
  %2081 = vrot.lane.b32.xlu0 %v2077, 32
  %v2082 = vpop.permute.xlu0 %2081
  %2083 = vrot.lane.b32.xlu0 %v2078, 32
  %v2084 = vpop.permute.xlu0 %2083
  %v2087 = vmul.f32 %v2050, %v2082
  %v2088 = vmul.f32 %v2052, %v2084
  %v2089 = vmul.f32 %v2034, %v2087
  %v2090 = vmul.f32 %v2039, %v2088
  %2092 = vrot.lane.b32.xlu0 %v2089, 64
  %v2093 = vpop.permute.xlu0 %2092
  %2095 = vst.msk [vmem:[#allocation3 + $0x38] sm:$0xff] %vm209, %v2093
  %2097 = vrot.lane.b32.xlu0 %v2090, 96
  %v2098 = vpop.permute.xlu0 %2097
  %2100 = vst.msk [vmem:[#allocation3] sm:$0xff] %vm438, %v2098
  %v2101 = vld [vmem:[#allocation3] sm:$0xff]
  %v2102 = vld [vmem:[#allocation3 + $0x8] sm:$0xff]
  %v2103 = vld [vmem:[#allocation3 + $0x10] sm:$0xff]
  %v2104 = vld [vmem:[#allocation3 + $0x18] sm:$0xff]
  %v2105 = vld [vmem:[#allocation3 + $0x20] sm:$0xff]
  %v2106 = vld [vmem:[#allocation3 + $0x28] sm:$0xff]
  %v2107 = vld [vmem:[#allocation3 + $0x30] sm:$0xff]
  %v2108 = vld [vmem:[#allocation3 + $0x38] sm:$0xff]
  %v2109 = vpack.c.bf16 %v2102, %v2101
  %v2110 = vpack.c.bf16 %v2104, %v2103
  %v2111 = vpack.c.bf16 %v2106, %v2105
  %v2112 = vpack.c.bf16 %v2108, %v2107
  %v2113 = vld [vmem:[%s6] sm:$0xff]
  %v2114 = vld [vmem:[%s6 + $0x8] sm:$0xff]
  %v2115 = vld [vmem:[%s6 + $0x10] sm:$0xff]
  %v2116 = vld [vmem:[%s6 + $0x18] sm:$0xff]
  %v2117 = vld [vmem:[%s6 + $0x20] sm:$0xff]
  %v2118 = vld [vmem:[%s6 + $0x28] sm:$0xff]
  %v2119 = vld [vmem:[%s6 + $0x30] sm:$0xff]
  %v2120 = vld [vmem:[%s6 + $0x38] sm:$0xff]
  %v2121 = vld [vmem:[%s7] sm:$0x3]
  %v2123 = vlaneseq
  %v2124 = vshrl.u32 %v2123, 7
  %v2125 = vsub.s32 0, %v2124
  %v2126 = vrot.slane %v2121, %v2125
  %v2127 = vlaneseq
  %v2128 = vshrl.u32 %v2127, 7
  %v2129 = vsub.s32 1, %v2128
  %v2130 = vrot.slane %v2121, %v2129
  %v2141 = vunpack.c.l.b16 %v2113
  %v2142 = vunpack.c.h.b16 %v2113
  %v2143 = vunpack.c.l.b16 %v2114
  %v2144 = vunpack.c.h.b16 %v2114
  %v2145 = vunpack.c.l.b16 %v2115
  %v2146 = vunpack.c.h.b16 %v2115
  %v2147 = vunpack.c.l.b16 %v2116
  %v2148 = vunpack.c.h.b16 %v2116
  %v2149 = vunpack.c.l.b16 %v2117
  %v2150 = vunpack.c.h.b16 %v2117
  %v2151 = vunpack.c.l.b16 %v2118
  %v2152 = vunpack.c.h.b16 %v2118
  %v2153 = vunpack.c.l.b16 %v2119
  %v2154 = vunpack.c.h.b16 %v2119
  %v2155 = vunpack.c.l.b16 %v2120
  %v2156 = vunpack.c.h.b16 %v2120
  %v2157 = vpack.c.b16 %v2143, %v2141
  %v2158 = vpack.c.b16 %v2144, %v2142
  %v2159 = vpack.c.b16 %v2147, %v2145
  %v2160 = vpack.c.b16 %v2148, %v2146
  %v2161 = vpack.c.b16 %v2151, %v2149
  %v2162 = vpack.c.b16 %v2152, %v2150
  %v2163 = vpack.c.b16 %v2155, %v2153
  %v2164 = vpack.c.b16 %v2156, %v2154
  %vm2173 = vcmask 523264
  %v2175 = vsel %vm2173, %v2109, 0
  %v2178 = vsel %vm2173, %v2110, 0
  %v2181 = vsel %vm2173, %v2111, 0
  %v2184 = vsel %vm2173, %v2112, 0
  %2186 = vmatprep.subr.bf16.mxu0 %v2158
  %2187 = vmatpush1.bf16.msra.mxu0 %v2157
  %2188 = vmatprep.subr.bf16.mxu0 %v2160
  %2189 = vmatpush1.bf16.msra.mxu0 %v2159
  %2190 = vmatprep.subr.bf16.mxu0 %v2162
  %2191 = vmatpush1.bf16.msra.mxu0 %v2161
  %2192 = vmatprep.subr.bf16.mxu0 %v2164
  %2193 = vmatpush1.bf16.msra.mxu0 %v2163
  %2194 = vmatprep.subr.bf16.mxu0 0
  %2195 = vmatpush1.bf16.msra.mxu0 0
  %2196 = vmatprep.subr.bf16.mxu0 0
  %2197 = vmatpush1.bf16.msra.mxu0 0
  %2198 = vmatprep.subr.bf16.mxu0 0
  %2199 = vmatpush1.bf16.msra.mxu0 0
  %2200 = vmatprep.subr.bf16.mxu0 0
  %2201 = vmatpush1.bf16.msra.mxu0 0
  %2202 = vmatprep.subr.bf16.mxu0 0
  %2203 = vmatpush1.bf16.msra.mxu0 0
  %2204 = vmatprep.subr.bf16.mxu0 0
  %2205 = vmatpush1.bf16.msra.mxu0 0
  %2206 = vmatprep.subr.bf16.mxu0 0
  %2207 = vmatpush1.bf16.msra.mxu0 0
  %2208 = vmatprep.subr.bf16.mxu0 0
  %2209 = vmatpush1.bf16.msra.mxu0 0
  %2210 = vmatprep.subr.bf16.mxu0 0
  %2211 = vmatpush1.bf16.msra.mxu0 0
  %2212 = vmatprep.subr.bf16.mxu0 0
  %2213 = vmatpush1.bf16.msra.mxu0 0
  %2214 = vmatprep.subr.bf16.mxu0 0
  %2215 = vmatpush1.bf16.msra.mxu0 0
  %2216 = vmatprep.subr.bf16.mxu0 0
  %2217 = vmatpush1.bf16.msra.mxu0 0
  %2218 = vmatprep.mubr.bf16.mxu0 0
  %2219 = vmatmul.mubr.bf16.gmra.mrb[0].mxu0 %v2175
  %v2220 = vpop.f32.mrb[0].mxu0
  %v2221 = vadd.f32 %v2126, %v2220
  %v2222 = vpop.f32.mrb[0].mxu0
  %v2223 = vadd.f32 %v2130, %v2222
  %v2224 = vpop.f32.mrb[0].mxu0
  %v2225 = vadd.f32 %v2126, %v2224
  %v2226 = vpop.f32.mrb[0].mxu0
  %v2227 = vadd.f32 %v2130, %v2226
  %2228 = vmatprep.mubr.bf16.mxu0 0
  %2229 = vmatmul.mubr.bf16.gmra.mrb[0].mxu0 %v2178
  %v2230 = vpop.f32.mrb[0].mxu0
  %v2231 = vadd.f32 %v2126, %v2230
  %v2232 = vpop.f32.mrb[0].mxu0
  %v2233 = vadd.f32 %v2130, %v2232
  %v2234 = vpop.f32.mrb[0].mxu0
  %v2235 = vadd.f32 %v2126, %v2234
  %v2236 = vpop.f32.mrb[0].mxu0
  %v2237 = vadd.f32 %v2130, %v2236
  %2238 = vmatprep.mubr.bf16.mxu0 0
  %2239 = vmatmul.mubr.bf16.gmra.mrb[0].mxu0 %v2181
  %v2240 = vpop.f32.mrb[0].mxu0
  %v2241 = vadd.f32 %v2126, %v2240
  %v2242 = vpop.f32.mrb[0].mxu0
  %v2243 = vadd.f32 %v2130, %v2242
  %v2244 = vpop.f32.mrb[0].mxu0
  %v2245 = vadd.f32 %v2126, %v2244
  %v2246 = vpop.f32.mrb[0].mxu0
  %v2247 = vadd.f32 %v2130, %v2246
  %2248 = vmatprep.mubr.bf16.mxu0 0
  %2249 = vmatmul.mubr.bf16.gmra.mrb[0].mxu0 %v2184
  %v2250 = vpop.f32.mrb[0].mxu0
  %v2251 = vadd.f32 %v2126, %v2250
  %v2252 = vpop.f32.mrb[0].mxu0
  %v2253 = vadd.f32 %v2130, %v2252
  %v2254 = vpop.f32.mrb[0].mxu0
  %v2255 = vadd.f32 %v2126, %v2254
  %v2256 = vpop.f32.mrb[0].mxu0
  %v2257 = vadd.f32 %v2130, %v2256
  %2258 = vdwg.mxu0
  %2259 = vst [vmem:[#allocation2] sm:$0xff] %v2221
  %2260 = vst [vmem:[#allocation2 + $0x8] sm:$0xff] %v2223
  %2261 = vst [vmem:[#allocation2 + $0x10] sm:$0xff] %v2225
  %2262 = vst [vmem:[#allocation2 + $0x18] sm:$0xff] %v2227
  %2263 = vst [vmem:[#allocation2 + $0x20] sm:$0xff] %v2231
  %2264 = vst [vmem:[#allocation2 + $0x28] sm:$0xff] %v2233
  %2265 = vst [vmem:[#allocation2 + $0x30] sm:$0xff] %v2235
  %2266 = vst [vmem:[#allocation2 + $0x38] sm:$0xff] %v2237
  %2267 = vst [vmem:[#allocation2 + $0x40] sm:$0xff] %v2241
  %2268 = vst [vmem:[#allocation2 + $0x48] sm:$0xff] %v2243
  %2269 = vst [vmem:[#allocation2 + $0x50] sm:$0xff] %v2245
  %2270 = vst [vmem:[#allocation2 + $0x58] sm:$0xff] %v2247
  %2271 = vst [vmem:[#allocation2 + $0x60] sm:$0xff] %v2251
  %2272 = vst [vmem:[#allocation2 + $0x68] sm:$0xff] %v2253
  %2273 = vst [vmem:[#allocation2 + $0x70] sm:$0xff] %v2255
  %2274 = vst [vmem:[#allocation2 + $0x78] sm:$0xff] %v2257
  %v2275 = vld [vmem:[%s8] sm:$0xff]
  %v2276 = vld [vmem:[%s8 + $0x8] sm:$0xff]
  %v2277 = vld [vmem:[%s8 + $0x10] sm:$0xff]
  %v2278 = vld [vmem:[%s8 + $0x18] sm:$0xff]
  %v2279 = vld [vmem:[%s9] sm:$0xff]
  %v2280 = vld [vmem:[%s9 + $0x8] sm:$0xff]
  %v2281 = vld [vmem:[%s9 + $0x10] sm:$0xff]
  %v2282 = vld [vmem:[%s9 + $0x18] sm:$0xff]
  %2283 = vmatprep.subr.mxu0 0.0
  %2284 = vmatpush1.msra.mxu0 %v2275
  %2285 = vmatprep.subr.mxu0 0.0
  %2286 = vmatpush1.msra.mxu0 %v2276
  %2287 = vmatprep.subr.mxu0 0.0
  %2288 = vmatpush1.msra.mxu0 %v2277
  %2289 = vmatprep.subr.mxu0 0.0
  %2290 = vmatpush1.msra.mxu0 %v2278
  %2291 = vmatprep.subr.mxu0 0.0
  %2292 = vmatpush1.msra.mxu0 0.0
  %2293 = vmatprep.subr.mxu0 0.0
  %2294 = vmatpush1.msra.mxu0 0.0
  %2295 = vmatprep.subr.mxu0 0.0
  %2296 = vmatpush1.msra.mxu0 0.0
  %2297 = vmatprep.subr.mxu0 0.0
  %2298 = vmatpush1.msra.mxu0 0.0
  %2299 = vmatprep.subr.mxu0 0.0
  %2300 = vmatpush1.msra.mxu0 0.0
  %2301 = vmatprep.subr.mxu0 0.0
  %2302 = vmatpush1.msra.mxu0 0.0
  %2303 = vmatprep.subr.mxu0 0.0
  %2304 = vmatpush1.msra.mxu0 0.0
  %2305 = vmatprep.subr.mxu0 0.0
  %2306 = vmatpush1.msra.mxu0 0.0
  %2307 = vmatprep.subr.mxu0 0.0
  %2308 = vmatpush1.msra.mxu0 0.0
  %2309 = vmatprep.subr.mxu0 0.0
  %2310 = vmatpush1.msra.mxu0 0.0
  %2311 = vmatprep.subr.mxu0 0.0
  %2312 = vmatpush1.msra.mxu0 0.0
  %2313 = vmatprep.subr.mxu0 0.0
  %2314 = vmatpush1.msra.mxu0 0.0
  %2315 = vmatprep.subr.mxu0 0.0
  %2316 = vmatpush1.msra.mxu0 0.0
  %2317 = vmatprep.subr.mxu0 0.0
  %2318 = vmatpush1.msra.mxu0 0.0
  %2319 = vmatprep.subr.mxu0 0.0
  %2320 = vmatpush1.msra.mxu0 0.0
  %2321 = vmatprep.subr.mxu0 0.0
  %2322 = vmatpush1.msra.mxu0 0.0
  %2323 = vmatprep.subr.mxu0 0.0
  %2324 = vmatpush1.msra.mxu0 0.0
  %2325 = vmatprep.subr.mxu0 0.0
  %2326 = vmatpush1.msra.mxu0 0.0
  %2327 = vmatprep.subr.mxu0 0.0
  %2328 = vmatpush1.msra.mxu0 0.0
  %2329 = vmatprep.subr.mxu0 0.0
  %2330 = vmatpush1.msra.mxu0 0.0
  %2331 = vmatprep.subr.mxu0 0.0
  %2332 = vmatpush1.msra.mxu0 0.0
  %2333 = vmatprep.subr.mxu0 0.0
  %2334 = vmatpush1.msra.mxu0 0.0
  %2335 = vmatprep.subr.mxu0 0.0
  %2336 = vmatpush1.msra.mxu0 0.0
  %2337 = vmatprep.subr.mxu0 0.0
  %2338 = vmatpush1.msra.mxu0 0.0
  %2339 = vmatprep.subr.mxu0 0.0
  %2340 = vmatpush1.msra.mxu0 0.0
  %2341 = vmatprep.subr.mxu0 0.0
  %2342 = vmatpush1.msra.mxu0 0.0
  %2343 = vmatprep.subr.mxu0 0.0
  %2344 = vmatpush1.msra.mxu0 0.0
  %2345 = vmatprep.subr.mxu0 0.0
  %2346 = vmatpush1.msra.mxu0 0.0
  %2347 = vmatprep.mubr.f32.mxu0 0.0
  %2348 = vmatmul.mubr.f32.gmra.mrb[0].mxu0 %v211
  %v2349 = vpop.f32.mrb[0].mxu0
  %v2350 = vadd.f32 0.0, %v2349
  %v2351 = vpop.f32.mrb[0].mxu0
  %2352 = vdwg.mxu0
  %2353 = vmatprep.subr.mxu0 0.0
  %2354 = vmatpush1.msra.mxu0 %v2279
  %2355 = vmatprep.subr.mxu0 0.0
  %2356 = vmatpush1.msra.mxu0 %v2280
  %2357 = vmatprep.subr.mxu0 0.0
  %2358 = vmatpush1.msra.mxu0 %v2281
  %2359 = vmatprep.subr.mxu0 0.0
  %2360 = vmatpush1.msra.mxu0 %v2282
  %2361 = vmatprep.subr.mxu0 0.0
  %2362 = vmatpush1.msra.mxu0 0.0
  %2363 = vmatprep.subr.mxu0 0.0
  %2364 = vmatpush1.msra.mxu0 0.0
  %2365 = vmatprep.subr.mxu0 0.0
  %2366 = vmatpush1.msra.mxu0 0.0
  %2367 = vmatprep.subr.mxu0 0.0
  %2368 = vmatpush1.msra.mxu0 0.0
  %2369 = vmatprep.subr.mxu0 0.0
  %2370 = vmatpush1.msra.mxu0 0.0
  %2371 = vmatprep.subr.mxu0 0.0
  %2372 = vmatpush1.msra.mxu0 0.0
  %2373 = vmatprep.subr.mxu0 0.0
  %2374 = vmatpush1.msra.mxu0 0.0
  %2375 = vmatprep.subr.mxu0 0.0
  %2376 = vmatpush1.msra.mxu0 0.0
  %2377 = vmatprep.subr.mxu0 0.0
  %2378 = vmatpush1.msra.mxu0 0.0
  %2379 = vmatprep.subr.mxu0 0.0
  %2380 = vmatpush1.msra.mxu0 0.0
  %2381 = vmatprep.subr.mxu0 0.0
  %2382 = vmatpush1.msra.mxu0 0.0
  %2383 = vmatprep.subr.mxu0 0.0
  %2384 = vmatpush1.msra.mxu0 0.0
  %2385 = vmatprep.subr.mxu0 0.0
  %2386 = vmatpush1.msra.mxu0 0.0
  %2387 = vmatprep.subr.mxu0 0.0
  %2388 = vmatpush1.msra.mxu0 0.0
  %2389 = vmatprep.subr.mxu0 0.0
  %2390 = vmatpush1.msra.mxu0 0.0
  %2391 = vmatprep.subr.mxu0 0.0
  %2392 = vmatpush1.msra.mxu0 0.0
  %2393 = vmatprep.subr.mxu0 0.0
  %2394 = vmatpush1.msra.mxu0 0.0
  %2395 = vmatprep.subr.mxu0 0.0
  %2396 = vmatpush1.msra.mxu0 0.0
  %2397 = vmatprep.subr.mxu0 0.0
  %2398 = vmatpush1.msra.mxu0 0.0
  %2399 = vmatprep.subr.mxu0 0.0
  %2400 = vmatpush1.msra.mxu0 0.0
  %2401 = vmatprep.subr.mxu0 0.0
  %2402 = vmatpush1.msra.mxu0 0.0
  %2403 = vmatprep.subr.mxu0 0.0
  %2404 = vmatpush1.msra.mxu0 0.0
  %2405 = vmatprep.subr.mxu0 0.0
  %2406 = vmatpush1.msra.mxu0 0.0
  %2407 = vmatprep.subr.mxu0 0.0
  %2408 = vmatpush1.msra.mxu0 0.0
  %2409 = vmatprep.subr.mxu0 0.0
  %2410 = vmatpush1.msra.mxu0 0.0
  %2411 = vmatprep.subr.mxu0 0.0
  %2412 = vmatpush1.msra.mxu0 0.0
  %2413 = vmatprep.subr.mxu0 0.0
  %2414 = vmatpush1.msra.mxu0 0.0
  %2415 = vmatprep.subr.mxu0 0.0
  %2416 = vmatpush1.msra.mxu0 0.0
  %2417 = vmatprep.mubr.f32.mxu0 0.0
  %2418 = vmatmul.mubr.f32.gmra.mrb[0].mxu0 %v211
  %v2419 = vpop.f32.mrb[0].mxu0
  %v2420 = vadd.f32 0.0, %v2419
  %v2421 = vpop.f32.mrb[0].mxu0
  %2422 = vdwg.mxu0
  %v2423 = vld [vmem:[#allocation2] sm:$0xff]
  %v2424 = vadd.f32 %v2423, %v2350
  %v2425 = vld [vmem:[#allocation2 + $0x78] sm:$0xff]
  %v2426 = vadd.f32 %v2425, %v2420
  %v2427 = vld [vmem:[%s0] sm:$0xff]
  %v2428 = vld [vmem:[%s0 + $0x8] sm:$0xff]
  %2430 = vset.pattern.permute.xlu0 0
  %2431 = vperm.xlu0 %2430, %v2427
  %v2432 = vpop.permute.xlu0 %2431
  %2435 = vset.pattern.permute.xlu0 0
  %2436 = vperm.xlu0 %2435, %v2428
  %v2437 = vpop.permute.xlu0 %2436
  %v2439 = vsub.f32 1.0, %v2432
  %v2440 = vsub.f32 1.0, %v2437
  %v2441 = vxor.u32 %v2424, 2147483648
  %v2442 = vxor.u32 %v2426, 2147483648
  %v2443 = vmul.f32 %v2441, 1.442695
  %v2444 = vpow.pop %v2443
  %v2445 = vmul.f32 %v2442, 1.442695
  %v2446 = vpow.pop %v2445
  %v2447 = vadd.f32 %v2444, 1.0
  %v2448 = vadd.f32 %v2446, 1.0
  %v2449 = vrcp.pop %v2447
  %v2450 = vmul.f32 1.0, %v2449
  %v2451 = vrcp.pop %v2448
  %v2452 = vmul.f32 1.0, %v2451
  %v2453 = vtanh.pop %v2424
  %v2454 = vtanh.pop %v2426
  %v2455 = vmul.f32 %v2450, 0.0
  %v2456 = vmul.f32 %v2452, 0.0
  %2459 = vrot.lane.b32.xlu0 %v2453, 32
  %v2460 = vpop.permute.xlu0 %2459
  %2461 = vrot.lane.b32.xlu0 %v2454, 32
  %v2462 = vpop.permute.xlu0 %2461
  %v2465 = vmul.f32 %v2450, %v2460
  %v2466 = vmul.f32 %v2452, %v2462
  %2469 = vrot.lane.b32.xlu0 %v2465, 32
  %v2470 = vpop.permute.xlu0 %2469
  %2471 = vrot.lane.b32.xlu0 %v2466, 32
  %v2472 = vpop.permute.xlu0 %2471
  %v2475 = vadd.f32 %v2455, %v2470
  %v2476 = vadd.f32 %v2456, %v2472
  %v2477 = vtanh.pop %v2475
  %v2478 = vtanh.pop %v2476
  %2481 = vrot.lane.b32.xlu0 %v2477, 32
  %v2482 = vpop.permute.xlu0 %2481
  %2483 = vrot.lane.b32.xlu0 %v2478, 32
  %v2484 = vpop.permute.xlu0 %2483
  %v2487 = vmul.f32 %v2450, %v2482
  %v2488 = vmul.f32 %v2452, %v2484
  %v2489 = vmul.f32 %v2432, %v2487
  %v2490 = vmul.f32 %v2437, %v2488
  %v2491 = vmul.f32 %v2439, 0.0
  %v2492 = vmul.f32 %v2440, 0.0
  %v2493 = vadd.f32 %v2489, %v2491
  %v2494 = vadd.f32 %v2490, %v2492
  %v2495 = vmul.f32 %v2432, %v2475
  %v2496 = vmul.f32 %v2437, %v2476
  %v2497 = vadd.f32 %v2495, %v2491
  %v2498 = vadd.f32 %v2496, %v2492
  %2500 = vrot.lane.b32.xlu0 %v2493, 64
  %v2501 = vpop.permute.xlu0 %2500
  %v2502 = vsel %vm209, %v2501, 0
  %2504 = vmatprep.subr.mxu0 0.0
  %2505 = vmatpush1.msra.mxu0 %v2275
  %2506 = vmatprep.subr.mxu0 0.0
  %2507 = vmatpush1.msra.mxu0 %v2276
  %2508 = vmatprep.subr.mxu0 0.0
  %2509 = vmatpush1.msra.mxu0 %v2277
  %2510 = vmatprep.subr.mxu0 0.0
  %2511 = vmatpush1.msra.mxu0 %v2278
  %2512 = vmatprep.subr.mxu0 0.0
  %2513 = vmatpush1.msra.mxu0 0.0
  %2514 = vmatprep.subr.mxu0 0.0
  %2515 = vmatpush1.msra.mxu0 0.0
  %2516 = vmatprep.subr.mxu0 0.0
  %2517 = vmatpush1.msra.mxu0 0.0
  %2518 = vmatprep.subr.mxu0 0.0
  %2519 = vmatpush1.msra.mxu0 0.0
  %2520 = vmatprep.subr.mxu0 0.0
  %2521 = vmatpush1.msra.mxu0 0.0
  %2522 = vmatprep.subr.mxu0 0.0
  %2523 = vmatpush1.msra.mxu0 0.0
  %2524 = vmatprep.subr.mxu0 0.0
  %2525 = vmatpush1.msra.mxu0 0.0
  %2526 = vmatprep.subr.mxu0 0.0
  %2527 = vmatpush1.msra.mxu0 0.0
  %2528 = vmatprep.subr.mxu0 0.0
  %2529 = vmatpush1.msra.mxu0 0.0
  %2530 = vmatprep.subr.mxu0 0.0
  %2531 = vmatpush1.msra.mxu0 0.0
  %2532 = vmatprep.subr.mxu0 0.0
  %2533 = vmatpush1.msra.mxu0 0.0
  %2534 = vmatprep.subr.mxu0 0.0
  %2535 = vmatpush1.msra.mxu0 0.0
  %2536 = vmatprep.subr.mxu0 0.0
  %2537 = vmatpush1.msra.mxu0 0.0
  %2538 = vmatprep.subr.mxu0 0.0
  %2539 = vmatpush1.msra.mxu0 0.0
  %2540 = vmatprep.subr.mxu0 0.0
  %2541 = vmatpush1.msra.mxu0 0.0
  %2542 = vmatprep.subr.mxu0 0.0
  %2543 = vmatpush1.msra.mxu0 0.0
  %2544 = vmatprep.subr.mxu0 0.0
  %2545 = vmatpush1.msra.mxu0 0.0
  %2546 = vmatprep.subr.mxu0 0.0
  %2547 = vmatpush1.msra.mxu0 0.0
  %2548 = vmatprep.subr.mxu0 0.0
  %2549 = vmatpush1.msra.mxu0 0.0
  %2550 = vmatprep.subr.mxu0 0.0
  %2551 = vmatpush1.msra.mxu0 0.0
  %2552 = vmatprep.subr.mxu0 0.0
  %2553 = vmatpush1.msra.mxu0 0.0
  %2554 = vmatprep.subr.mxu0 0.0
  %2555 = vmatpush1.msra.mxu0 0.0
  %2556 = vmatprep.subr.mxu0 0.0
  %2557 = vmatpush1.msra.mxu0 0.0
  %2558 = vmatprep.subr.mxu0 0.0
  %2559 = vmatpush1.msra.mxu0 0.0
  %2560 = vmatprep.subr.mxu0 0.0
  %2561 = vmatpush1.msra.mxu0 0.0
  %2562 = vmatprep.subr.mxu0 0.0
  %2563 = vmatpush1.msra.mxu0 0.0
  %2564 = vmatprep.subr.mxu0 0.0
  %2565 = vmatpush1.msra.mxu0 0.0
  %2566 = vmatprep.subr.mxu0 0.0
  %2567 = vmatpush1.msra.mxu0 0.0
  %2568 = vmatprep.mubr.f32.mxu0 0.0
  %2569 = vmatmul.mubr.f32.gmra.mrb[0].mxu0 %v2502
  %v2570 = vpop.f32.mrb[0].mxu0
  %v2571 = vadd.f32 0.0, %v2570
  %v2572 = vpop.f32.mrb[0].mxu0
  %2573 = vdwg.mxu0
  %2575 = vrot.lane.b32.xlu0 %v2494, 64
  %v2576 = vpop.permute.xlu0 %2575
  %v2577 = vsel %vm209, %v2576, 0
  %2579 = vmatprep.subr.mxu0 0.0
  %2580 = vmatpush1.msra.mxu0 %v2279
  %2581 = vmatprep.subr.mxu0 0.0
  %2582 = vmatpush1.msra.mxu0 %v2280
  %2583 = vmatprep.subr.mxu0 0.0
  %2584 = vmatpush1.msra.mxu0 %v2281
  %2585 = vmatprep.subr.mxu0 0.0
  %2586 = vmatpush1.msra.mxu0 %v2282
  %2587 = vmatprep.subr.mxu0 0.0
  %2588 = vmatpush1.msra.mxu0 0.0
  %2589 = vmatprep.subr.mxu0 0.0
  %2590 = vmatpush1.msra.mxu0 0.0
  %2591 = vmatprep.subr.mxu0 0.0
  %2592 = vmatpush1.msra.mxu0 0.0
  %2593 = vmatprep.subr.mxu0 0.0
  %2594 = vmatpush1.msra.mxu0 0.0
  %2595 = vmatprep.subr.mxu0 0.0
  %2596 = vmatpush1.msra.mxu0 0.0
  %2597 = vmatprep.subr.mxu0 0.0
  %2598 = vmatpush1.msra.mxu0 0.0
  %2599 = vmatprep.subr.mxu0 0.0
  %2600 = vmatpush1.msra.mxu0 0.0
  %2601 = vmatprep.subr.mxu0 0.0
  %2602 = vmatpush1.msra.mxu0 0.0
  %2603 = vmatprep.subr.mxu0 0.0
  %2604 = vmatpush1.msra.mxu0 0.0
  %2605 = vmatprep.subr.mxu0 0.0
  %2606 = vmatpush1.msra.mxu0 0.0
  %2607 = vmatprep.subr.mxu0 0.0
  %2608 = vmatpush1.msra.mxu0 0.0
  %2609 = vmatprep.subr.mxu0 0.0
  %2610 = vmatpush1.msra.mxu0 0.0
  %2611 = vmatprep.subr.mxu0 0.0
  %2612 = vmatpush1.msra.mxu0 0.0
  %2613 = vmatprep.subr.mxu0 0.0
  %2614 = vmatpush1.msra.mxu0 0.0
  %2615 = vmatprep.subr.mxu0 0.0
  %2616 = vmatpush1.msra.mxu0 0.0
  %2617 = vmatprep.subr.mxu0 0.0
  %2618 = vmatpush1.msra.mxu0 0.0
  %2619 = vmatprep.subr.mxu0 0.0
  %2620 = vmatpush1.msra.mxu0 0.0
  %2621 = vmatprep.subr.mxu0 0.0
  %2622 = vmatpush1.msra.mxu0 0.0
  %2623 = vmatprep.subr.mxu0 0.0
  %2624 = vmatpush1.msra.mxu0 0.0
  %2625 = vmatprep.subr.mxu0 0.0
  %2626 = vmatpush1.msra.mxu0 0.0
  %2627 = vmatprep.subr.mxu0 0.0
  %2628 = vmatpush1.msra.mxu0 0.0
  %2629 = vmatprep.subr.mxu0 0.0
  %2630 = vmatpush1.msra.mxu0 0.0
  %2631 = vmatprep.subr.mxu0 0.0
  %2632 = vmatpush1.msra.mxu0 0.0
  %2633 = vmatprep.subr.mxu0 0.0
  %2634 = vmatpush1.msra.mxu0 0.0
  %2635 = vmatprep.subr.mxu0 0.0
  %2636 = vmatpush1.msra.mxu0 0.0
  %2637 = vmatprep.subr.mxu0 0.0
  %2638 = vmatpush1.msra.mxu0 0.0
  %2639 = vmatprep.subr.mxu0 0.0
  %2640 = vmatpush1.msra.mxu0 0.0
  %2641 = vmatprep.subr.mxu0 0.0
  %2642 = vmatpush1.msra.mxu0 0.0
  %2643 = vmatprep.mubr.f32.mxu0 0.0
  %2644 = vmatmul.mubr.f32.gmra.mrb[0].mxu0 %v2577
  %v2645 = vpop.f32.mrb[0].mxu0
  %v2646 = vadd.f32 0.0, %v2645
  %v2647 = vpop.f32.mrb[0].mxu0
  %2648 = vdwg.mxu0
  %v2649 = vld [vmem:[#allocation2 + $0x10] sm:$0xff]
  %v2650 = vadd.f32 %v2649, %v2571
  %v2651 = vld [vmem:[#allocation2 + $0x68] sm:$0xff]
  %v2652 = vadd.f32 %v2651, %v2646
  %v2653 = vld [vmem:[%s594] sm:$0xff]
  %v2654 = vld [vmem:[%s594 + $0x8] sm:$0xff]
  %2656 = vset.pattern.permute.xlu0 0
  %2657 = vperm.xlu0 %2656, %v2653
  %v2658 = vpop.permute.xlu0 %2657
  %2661 = vset.pattern.permute.xlu0 0
  %2662 = vperm.xlu0 %2661, %v2654
  %v2663 = vpop.permute.xlu0 %2662
  %v2665 = vsub.f32 1.0, %v2658
  %v2666 = vsub.f32 1.0, %v2663
  %v2667 = vxor.u32 %v2650, 2147483648
  %v2668 = vxor.u32 %v2652, 2147483648
  %v2669 = vmul.f32 %v2667, 1.442695
  %v2670 = vpow.pop %v2669
  %v2671 = vmul.f32 %v2668, 1.442695
  %v2672 = vpow.pop %v2671
  %v2673 = vadd.f32 %v2670, 1.0
  %v2674 = vadd.f32 %v2672, 1.0
  %v2675 = vrcp.pop %v2673
  %v2676 = vmul.f32 1.0, %v2675
  %v2677 = vrcp.pop %v2674
  %v2678 = vmul.f32 1.0, %v2677
  %v2679 = vtanh.pop %v2650
  %v2680 = vtanh.pop %v2652
  %v2681 = vmul.f32 %v2676, %v2497
  %v2682 = vmul.f32 %v2678, %v2498
  %2685 = vrot.lane.b32.xlu0 %v2679, 32
  %v2686 = vpop.permute.xlu0 %2685
  %2687 = vrot.lane.b32.xlu0 %v2680, 32
  %v2688 = vpop.permute.xlu0 %2687
  %v2691 = vmul.f32 %v2676, %v2686
  %v2692 = vmul.f32 %v2678, %v2688
  %2695 = vrot.lane.b32.xlu0 %v2691, 32
  %v2696 = vpop.permute.xlu0 %2695
  %2697 = vrot.lane.b32.xlu0 %v2692, 32
  %v2698 = vpop.permute.xlu0 %2697
  %v2701 = vadd.f32 %v2681, %v2696
  %v2702 = vadd.f32 %v2682, %v2698
  %v2703 = vtanh.pop %v2701
  %v2704 = vtanh.pop %v2702
  %2707 = vrot.lane.b32.xlu0 %v2703, 32
  %v2708 = vpop.permute.xlu0 %2707
  %2709 = vrot.lane.b32.xlu0 %v2704, 32
  %v2710 = vpop.permute.xlu0 %2709
  %v2713 = vmul.f32 %v2676, %v2708
  %v2714 = vmul.f32 %v2678, %v2710
  %v2715 = vmul.f32 %v2658, %v2713
  %v2716 = vmul.f32 %v2663, %v2714
  %v2717 = vmul.f32 %v2665, %v2493
  %v2718 = vmul.f32 %v2666, %v2494
  %v2719 = vadd.f32 %v2715, %v2717
  %v2720 = vadd.f32 %v2716, %v2718
  %v2721 = vmul.f32 %v2658, %v2701
  %v2722 = vmul.f32 %v2663, %v2702
  %v2723 = vmul.f32 %v2665, %v2497
  %v2724 = vmul.f32 %v2666, %v2498
  %v2725 = vadd.f32 %v2721, %v2723
  %v2726 = vadd.f32 %v2722, %v2724
  %2728 = vrot.lane.b32.xlu0 %v2719, 64
  %v2729 = vpop.permute.xlu0 %2728
  %v2730 = vsel %vm209, %v2729, 0
  %2732 = vmatprep.subr.mxu0 0.0
  %2733 = vmatpush1.msra.mxu0 %v2275
  %2734 = vmatprep.subr.mxu0 0.0
  %2735 = vmatpush1.msra.mxu0 %v2276
  %2736 = vmatprep.subr.mxu0 0.0
  %2737 = vmatpush1.msra.mxu0 %v2277
  %2738 = vmatprep.subr.mxu0 0.0
  %2739 = vmatpush1.msra.mxu0 %v2278
  %2740 = vmatprep.subr.mxu0 0.0
  %2741 = vmatpush1.msra.mxu0 0.0
  %2742 = vmatprep.subr.mxu0 0.0
  %2743 = vmatpush1.msra.mxu0 0.0
  %2744 = vmatprep.subr.mxu0 0.0
  %2745 = vmatpush1.msra.mxu0 0.0
  %2746 = vmatprep.subr.mxu0 0.0
  %2747 = vmatpush1.msra.mxu0 0.0
  %2748 = vmatprep.subr.mxu0 0.0
  %2749 = vmatpush1.msra.mxu0 0.0
  %2750 = vmatprep.subr.mxu0 0.0
  %2751 = vmatpush1.msra.mxu0 0.0
  %2752 = vmatprep.subr.mxu0 0.0
  %2753 = vmatpush1.msra.mxu0 0.0
  %2754 = vmatprep.subr.mxu0 0.0
  %2755 = vmatpush1.msra.mxu0 0.0
  %2756 = vmatprep.subr.mxu0 0.0
  %2757 = vmatpush1.msra.mxu0 0.0
  %2758 = vmatprep.subr.mxu0 0.0
  %2759 = vmatpush1.msra.mxu0 0.0
  %2760 = vmatprep.subr.mxu0 0.0
  %2761 = vmatpush1.msra.mxu0 0.0
  %2762 = vmatprep.subr.mxu0 0.0
  %2763 = vmatpush1.msra.mxu0 0.0
  %2764 = vmatprep.subr.mxu0 0.0
  %2765 = vmatpush1.msra.mxu0 0.0
  %2766 = vmatprep.subr.mxu0 0.0
  %2767 = vmatpush1.msra.mxu0 0.0
  %2768 = vmatprep.subr.mxu0 0.0
  %2769 = vmatpush1.msra.mxu0 0.0
  %2770 = vmatprep.subr.mxu0 0.0
  %2771 = vmatpush1.msra.mxu0 0.0
  %2772 = vmatprep.subr.mxu0 0.0
  %2773 = vmatpush1.msra.mxu0 0.0
  %2774 = vmatprep.subr.mxu0 0.0
  %2775 = vmatpush1.msra.mxu0 0.0
  %2776 = vmatprep.subr.mxu0 0.0
  %2777 = vmatpush1.msra.mxu0 0.0
  %2778 = vmatprep.subr.mxu0 0.0
  %2779 = vmatpush1.msra.mxu0 0.0
  %2780 = vmatprep.subr.mxu0 0.0
  %2781 = vmatpush1.msra.mxu0 0.0
  %2782 = vmatprep.subr.mxu0 0.0
  %2783 = vmatpush1.msra.mxu0 0.0
  %2784 = vmatprep.subr.mxu0 0.0
  %2785 = vmatpush1.msra.mxu0 0.0
  %2786 = vmatprep.subr.mxu0 0.0
  %2787 = vmatpush1.msra.mxu0 0.0
  %2788 = vmatprep.subr.mxu0 0.0
  %2789 = vmatpush1.msra.mxu0 0.0
  %2790 = vmatprep.subr.mxu0 0.0
  %2791 = vmatpush1.msra.mxu0 0.0
  %2792 = vmatprep.subr.mxu0 0.0
  %2793 = vmatpush1.msra.mxu0 0.0
  %2794 = vmatprep.subr.mxu0 0.0
  %2795 = vmatpush1.msra.mxu0 0.0
  %2796 = vmatprep.mubr.f32.mxu0 0.0
  %2797 = vmatmul.mubr.f32.gmra.mrb[0].mxu0 %v2730
  %v2798 = vpop.f32.mrb[0].mxu0
  %v2799 = vadd.f32 0.0, %v2798
  %v2800 = vpop.f32.mrb[0].mxu0
  %2801 = vdwg.mxu0
  %2803 = vrot.lane.b32.xlu0 %v2720, 64
  %v2804 = vpop.permute.xlu0 %2803
  %v2805 = vsel %vm209, %v2804, 0
  %2807 = vmatprep.subr.mxu0 0.0
  %2808 = vmatpush1.msra.mxu0 %v2279
  %2809 = vmatprep.subr.mxu0 0.0
  %2810 = vmatpush1.msra.mxu0 %v2280
  %2811 = vmatprep.subr.mxu0 0.0
  %2812 = vmatpush1.msra.mxu0 %v2281
  %2813 = vmatprep.subr.mxu0 0.0
  %2814 = vmatpush1.msra.mxu0 %v2282
  %2815 = vmatprep.subr.mxu0 0.0
  %2816 = vmatpush1.msra.mxu0 0.0
  %2817 = vmatprep.subr.mxu0 0.0
  %2818 = vmatpush1.msra.mxu0 0.0
  %2819 = vmatprep.subr.mxu0 0.0
  %2820 = vmatpush1.msra.mxu0 0.0
  %2821 = vmatprep.subr.mxu0 0.0
  %2822 = vmatpush1.msra.mxu0 0.0
  %2823 = vmatprep.subr.mxu0 0.0
  %2824 = vmatpush1.msra.mxu0 0.0
  %2825 = vmatprep.subr.mxu0 0.0
  %2826 = vmatpush1.msra.mxu0 0.0
  %2827 = vmatprep.subr.mxu0 0.0
  %2828 = vmatpush1.msra.mxu0 0.0
  %2829 = vmatprep.subr.mxu0 0.0
  %2830 = vmatpush1.msra.mxu0 0.0
  %2831 = vmatprep.subr.mxu0 0.0
  %2832 = vmatpush1.msra.mxu0 0.0
  %2833 = vmatprep.subr.mxu0 0.0
  %2834 = vmatpush1.msra.mxu0 0.0
  %2835 = vmatprep.subr.mxu0 0.0
  %2836 = vmatpush1.msra.mxu0 0.0
  %2837 = vmatprep.subr.mxu0 0.0
  %2838 = vmatpush1.msra.mxu0 0.0
  %2839 = vmatprep.subr.mxu0 0.0
  %2840 = vmatpush1.msra.mxu0 0.0
  %2841 = vmatprep.subr.mxu0 0.0
  %2842 = vmatpush1.msra.mxu0 0.0
  %2843 = vmatprep.subr.mxu0 0.0
  %2844 = vmatpush1.msra.mxu0 0.0
  %2845 = vmatprep.subr.mxu0 0.0
  %2846 = vmatpush1.msra.mxu0 0.0
  %2847 = vmatprep.subr.mxu0 0.0
  %2848 = vmatpush1.msra.mxu0 0.0
  %2849 = vmatprep.subr.mxu0 0.0
  %2850 = vmatpush1.msra.mxu0 0.0
  %2851 = vmatprep.subr.mxu0 0.0
  %2852 = vmatpush1.msra.mxu0 0.0
  %2853 = vmatprep.subr.mxu0 0.0
  %2854 = vmatpush1.msra.mxu0 0.0
  %2855 = vmatprep.subr.mxu0 0.0
  %2856 = vmatpush1.msra.mxu0 0.0
  %2857 = vmatprep.subr.mxu0 0.0
  %2858 = vmatpush1.msra.mxu0 0.0
  %2859 = vmatprep.subr.mxu0 0.0
  %2860 = vmatpush1.msra.mxu0 0.0
  %2861 = vmatprep.subr.mxu0 0.0
  %2862 = vmatpush1.msra.mxu0 0.0
  %2863 = vmatprep.subr.mxu0 0.0
  %2864 = vmatpush1.msra.mxu0 0.0
  %2865 = vmatprep.subr.mxu0 0.0
  %2866 = vmatpush1.msra.mxu0 0.0
  %2867 = vmatprep.subr.mxu0 0.0
  %2868 = vmatpush1.msra.mxu0 0.0
  %2869 = vmatprep.subr.mxu0 0.0
  %2870 = vmatpush1.msra.mxu0 0.0
  %2871 = vmatprep.mubr.f32.mxu0 0.0
  %2872 = vmatmul.mubr.f32.gmra.mrb[0].mxu0 %v2805
  %v2873 = vpop.f32.mrb[0].mxu0
  %v2874 = vadd.f32 0.0, %v2873
  %v2875 = vpop.f32.mrb[0].mxu0
  %2876 = vdwg.mxu0
  %v2877 = vld [vmem:[#allocation2 + $0x20] sm:$0xff]
  %v2878 = vadd.f32 %v2877, %v2799
  %v2879 = vld [vmem:[#allocation2 + $0x58] sm:$0xff]
  %v2880 = vadd.f32 %v2879, %v2874
  %v2881 = vld [vmem:[%s833] sm:$0xff]
  %v2882 = vld [vmem:[%s833 + $0x8] sm:$0xff]
  %2884 = vset.pattern.permute.xlu0 0
  %2885 = vperm.xlu0 %2884, %v2881
  %v2886 = vpop.permute.xlu0 %2885
  %2889 = vset.pattern.permute.xlu0 0
  %2890 = vperm.xlu0 %2889, %v2882
  %v2891 = vpop.permute.xlu0 %2890
  %v2893 = vsub.f32 1.0, %v2886
  %v2894 = vsub.f32 1.0, %v2891
  %v2895 = vxor.u32 %v2878, 2147483648
  %v2896 = vxor.u32 %v2880, 2147483648
  %v2897 = vmul.f32 %v2895, 1.442695
  %v2898 = vpow.pop %v2897
  %v2899 = vmul.f32 %v2896, 1.442695
  %v2900 = vpow.pop %v2899
  %v2901 = vadd.f32 %v2898, 1.0
  %v2902 = vadd.f32 %v2900, 1.0
  %v2903 = vrcp.pop %v2901
  %v2904 = vmul.f32 1.0, %v2903
  %v2905 = vrcp.pop %v2902
  %v2906 = vmul.f32 1.0, %v2905
  %v2907 = vtanh.pop %v2878
  %v2908 = vtanh.pop %v2880
  %v2909 = vmul.f32 %v2904, %v2725
  %v2910 = vmul.f32 %v2906, %v2726
  %2913 = vrot.lane.b32.xlu0 %v2907, 32
  %v2914 = vpop.permute.xlu0 %2913
  %2915 = vrot.lane.b32.xlu0 %v2908, 32
  %v2916 = vpop.permute.xlu0 %2915
  %v2919 = vmul.f32 %v2904, %v2914
  %v2920 = vmul.f32 %v2906, %v2916
  %2923 = vrot.lane.b32.xlu0 %v2919, 32
  %v2924 = vpop.permute.xlu0 %2923
  %2925 = vrot.lane.b32.xlu0 %v2920, 32
  %v2926 = vpop.permute.xlu0 %2925
  %v2929 = vadd.f32 %v2909, %v2924
  %v2930 = vadd.f32 %v2910, %v2926
  %v2931 = vtanh.pop %v2929
  %v2932 = vtanh.pop %v2930
  %2935 = vrot.lane.b32.xlu0 %v2931, 32
  %v2936 = vpop.permute.xlu0 %2935
  %2937 = vrot.lane.b32.xlu0 %v2932, 32
  %v2938 = vpop.permute.xlu0 %2937
  %v2941 = vmul.f32 %v2904, %v2936
  %v2942 = vmul.f32 %v2906, %v2938
  %v2943 = vmul.f32 %v2886, %v2941
  %v2944 = vmul.f32 %v2891, %v2942
  %v2945 = vmul.f32 %v2893, %v2719
  %v2946 = vmul.f32 %v2894, %v2720
  %v2947 = vadd.f32 %v2943, %v2945
  %v2948 = vadd.f32 %v2944, %v2946
  %v2949 = vmul.f32 %v2886, %v2929
  %v2950 = vmul.f32 %v2891, %v2930
  %v2951 = vmul.f32 %v2893, %v2725
  %v2952 = vmul.f32 %v2894, %v2726
  %v2953 = vadd.f32 %v2949, %v2951
  %v2954 = vadd.f32 %v2950, %v2952
  %2956 = vrot.lane.b32.xlu0 %v2947, 64
  %v2957 = vpop.permute.xlu0 %2956
  %v2958 = vsel %vm209, %v2957, 0
  %2960 = vmatprep.subr.mxu0 0.0
  %2961 = vmatpush1.msra.mxu0 %v2275
  %2962 = vmatprep.subr.mxu0 0.0
  %2963 = vmatpush1.msra.mxu0 %v2276
  %2964 = vmatprep.subr.mxu0 0.0
  %2965 = vmatpush1.msra.mxu0 %v2277
  %2966 = vmatprep.subr.mxu0 0.0
  %2967 = vmatpush1.msra.mxu0 %v2278
  %2968 = vmatprep.subr.mxu0 0.0
  %2969 = vmatpush1.msra.mxu0 0.0
  %2970 = vmatprep.subr.mxu0 0.0
  %2971 = vmatpush1.msra.mxu0 0.0
  %2972 = vmatprep.subr.mxu0 0.0
  %2973 = vmatpush1.msra.mxu0 0.0
  %2974 = vmatprep.subr.mxu0 0.0
  %2975 = vmatpush1.msra.mxu0 0.0
  %2976 = vmatprep.subr.mxu0 0.0
  %2977 = vmatpush1.msra.mxu0 0.0
  %2978 = vmatprep.subr.mxu0 0.0
  %2979 = vmatpush1.msra.mxu0 0.0
  %2980 = vmatprep.subr.mxu0 0.0
  %2981 = vmatpush1.msra.mxu0 0.0
  %2982 = vmatprep.subr.mxu0 0.0
  %2983 = vmatpush1.msra.mxu0 0.0
  %2984 = vmatprep.subr.mxu0 0.0
  %2985 = vmatpush1.msra.mxu0 0.0
  %2986 = vmatprep.subr.mxu0 0.0
  %2987 = vmatpush1.msra.mxu0 0.0
  %2988 = vmatprep.subr.mxu0 0.0
  %2989 = vmatpush1.msra.mxu0 0.0
  %2990 = vmatprep.subr.mxu0 0.0
  %2991 = vmatpush1.msra.mxu0 0.0
  %2992 = vmatprep.subr.mxu0 0.0
  %2993 = vmatpush1.msra.mxu0 0.0
  %2994 = vmatprep.subr.mxu0 0.0
  %2995 = vmatpush1.msra.mxu0 0.0
  %2996 = vmatprep.subr.mxu0 0.0
  %2997 = vmatpush1.msra.mxu0 0.0
  %2998 = vmatprep.subr.mxu0 0.0
  %2999 = vmatpush1.msra.mxu0 0.0
  %3000 = vmatprep.subr.mxu0 0.0
  %3001 = vmatpush1.msra.mxu0 0.0
  %3002 = vmatprep.subr.mxu0 0.0
  %3003 = vmatpush1.msra.mxu0 0.0
  %3004 = vmatprep.subr.mxu0 0.0
  %3005 = vmatpush1.msra.mxu0 0.0
  %3006 = vmatprep.subr.mxu0 0.0
  %3007 = vmatpush1.msra.mxu0 0.0
  %3008 = vmatprep.subr.mxu0 0.0
  %3009 = vmatpush1.msra.mxu0 0.0
  %3010 = vmatprep.subr.mxu0 0.0
  %3011 = vmatpush1.msra.mxu0 0.0
  %3012 = vmatprep.subr.mxu0 0.0
  %3013 = vmatpush1.msra.mxu0 0.0
  %3014 = vmatprep.subr.mxu0 0.0
  %3015 = vmatpush1.msra.mxu0 0.0
  %3016 = vmatprep.subr.mxu0 0.0
  %3017 = vmatpush1.msra.mxu0 0.0
  %3018 = vmatprep.subr.mxu0 0.0
  %3019 = vmatpush1.msra.mxu0 0.0
  %3020 = vmatprep.subr.mxu0 0.0
  %3021 = vmatpush1.msra.mxu0 0.0
  %3022 = vmatprep.subr.mxu0 0.0
  %3023 = vmatpush1.msra.mxu0 0.0
  %3024 = vmatprep.mubr.f32.mxu0 0.0
  %3025 = vmatmul.mubr.f32.gmra.mrb[0].mxu0 %v2958
  %v3026 = vpop.f32.mrb[0].mxu0
  %v3027 = vadd.f32 0.0, %v3026
  %v3028 = vpop.f32.mrb[0].mxu0
  %3029 = vdwg.mxu0
  %3031 = vrot.lane.b32.xlu0 %v2948, 64
  %v3032 = vpop.permute.xlu0 %3031
  %v3033 = vsel %vm209, %v3032, 0
  %3035 = vmatprep.subr.mxu0 0.0
  %3036 = vmatpush1.msra.mxu0 %v2279
  %3037 = vmatprep.subr.mxu0 0.0
  %3038 = vmatpush1.msra.mxu0 %v2280
  %3039 = vmatprep.subr.mxu0 0.0
  %3040 = vmatpush1.msra.mxu0 %v2281
  %3041 = vmatprep.subr.mxu0 0.0
  %3042 = vmatpush1.msra.mxu0 %v2282
  %3043 = vmatprep.subr.mxu0 0.0
  %3044 = vmatpush1.msra.mxu0 0.0
  %3045 = vmatprep.subr.mxu0 0.0
  %3046 = vmatpush1.msra.mxu0 0.0
  %3047 = vmatprep.subr.mxu0 0.0
  %3048 = vmatpush1.msra.mxu0 0.0
  %3049 = vmatprep.subr.mxu0 0.0
  %3050 = vmatpush1.msra.mxu0 0.0
  %3051 = vmatprep.subr.mxu0 0.0
  %3052 = vmatpush1.msra.mxu0 0.0
  %3053 = vmatprep.subr.mxu0 0.0
  %3054 = vmatpush1.msra.mxu0 0.0
  %3055 = vmatprep.subr.mxu0 0.0
  %3056 = vmatpush1.msra.mxu0 0.0
  %3057 = vmatprep.subr.mxu0 0.0
  %3058 = vmatpush1.msra.mxu0 0.0
  %3059 = vmatprep.subr.mxu0 0.0
  %3060 = vmatpush1.msra.mxu0 0.0
  %3061 = vmatprep.subr.mxu0 0.0
  %3062 = vmatpush1.msra.mxu0 0.0
  %3063 = vmatprep.subr.mxu0 0.0
  %3064 = vmatpush1.msra.mxu0 0.0
  %3065 = vmatprep.subr.mxu0 0.0
  %3066 = vmatpush1.msra.mxu0 0.0
  %3067 = vmatprep.subr.mxu0 0.0
  %3068 = vmatpush1.msra.mxu0 0.0
  %3069 = vmatprep.subr.mxu0 0.0
  %3070 = vmatpush1.msra.mxu0 0.0
  %3071 = vmatprep.subr.mxu0 0.0
  %3072 = vmatpush1.msra.mxu0 0.0
  %3073 = vmatprep.subr.mxu0 0.0
  %3074 = vmatpush1.msra.mxu0 0.0
  %3075 = vmatprep.subr.mxu0 0.0
  %3076 = vmatpush1.msra.mxu0 0.0
  %3077 = vmatprep.subr.mxu0 0.0
  %3078 = vmatpush1.msra.mxu0 0.0
  %3079 = vmatprep.subr.mxu0 0.0
  %3080 = vmatpush1.msra.mxu0 0.0
  %3081 = vmatprep.subr.mxu0 0.0
  %3082 = vmatpush1.msra.mxu0 0.0
  %3083 = vmatprep.subr.mxu0 0.0
  %3084 = vmatpush1.msra.mxu0 0.0
  %3085 = vmatprep.subr.mxu0 0.0
  %3086 = vmatpush1.msra.mxu0 0.0
  %3087 = vmatprep.subr.mxu0 0.0
  %3088 = vmatpush1.msra.mxu0 0.0
  %3089 = vmatprep.subr.mxu0 0.0
  %3090 = vmatpush1.msra.mxu0 0.0
  %3091 = vmatprep.subr.mxu0 0.0
  %3092 = vmatpush1.msra.mxu0 0.0
  %3093 = vmatprep.subr.mxu0 0.0
  %3094 = vmatpush1.msra.mxu0 0.0
  %3095 = vmatprep.subr.mxu0 0.0
  %3096 = vmatpush1.msra.mxu0 0.0
  %3097 = vmatprep.subr.mxu0 0.0
  %3098 = vmatpush1.msra.mxu0 0.0
  %3099 = vmatprep.mubr.f32.mxu0 0.0
  %3100 = vmatmul.mubr.f32.gmra.mrb[0].mxu0 %v3033
  %v3101 = vpop.f32.mrb[0].mxu0
  %v3102 = vadd.f32 0.0, %v3101
  %v3103 = vpop.f32.mrb[0].mxu0
  %3104 = vdwg.mxu0
  %v3105 = vld [vmem:[#allocation2 + $0x30] sm:$0xff]
  %v3106 = vadd.f32 %v3105, %v3027
  %v3107 = vld [vmem:[#allocation2 + $0x48] sm:$0xff]
  %v3108 = vadd.f32 %v3107, %v3102
  %v3109 = vld [vmem:[%s1072] sm:$0xff]
  %v3110 = vld [vmem:[%s1072 + $0x8] sm:$0xff]
  %3112 = vset.pattern.permute.xlu0 0
  %3113 = vperm.xlu0 %3112, %v3109
  %v3114 = vpop.permute.xlu0 %3113
  %3117 = vset.pattern.permute.xlu0 0
  %3118 = vperm.xlu0 %3117, %v3110
  %v3119 = vpop.permute.xlu0 %3118
  %v3121 = vsub.f32 1.0, %v3114
  %v3122 = vsub.f32 1.0, %v3119
  %v3123 = vxor.u32 %v3106, 2147483648
  %v3124 = vxor.u32 %v3108, 2147483648
  %v3125 = vmul.f32 %v3123, 1.442695
  %v3126 = vpow.pop %v3125
  %v3127 = vmul.f32 %v3124, 1.442695
  %v3128 = vpow.pop %v3127
  %v3129 = vadd.f32 %v3126, 1.0
  %v3130 = vadd.f32 %v3128, 1.0
  %v3131 = vrcp.pop %v3129
  %v3132 = vmul.f32 1.0, %v3131
  %v3133 = vrcp.pop %v3130
  %v3134 = vmul.f32 1.0, %v3133
  %v3135 = vtanh.pop %v3106
  %v3136 = vtanh.pop %v3108
  %v3137 = vmul.f32 %v3132, %v2953
  %v3138 = vmul.f32 %v3134, %v2954
  %3141 = vrot.lane.b32.xlu0 %v3135, 32
  %v3142 = vpop.permute.xlu0 %3141
  %3143 = vrot.lane.b32.xlu0 %v3136, 32
  %v3144 = vpop.permute.xlu0 %3143
  %v3147 = vmul.f32 %v3132, %v3142
  %v3148 = vmul.f32 %v3134, %v3144
  %3151 = vrot.lane.b32.xlu0 %v3147, 32
  %v3152 = vpop.permute.xlu0 %3151
  %3153 = vrot.lane.b32.xlu0 %v3148, 32
  %v3154 = vpop.permute.xlu0 %3153
  %v3157 = vadd.f32 %v3137, %v3152
  %v3158 = vadd.f32 %v3138, %v3154
  %v3159 = vtanh.pop %v3157
  %v3160 = vtanh.pop %v3158
  %3163 = vrot.lane.b32.xlu0 %v3159, 32
  %v3164 = vpop.permute.xlu0 %3163
  %3165 = vrot.lane.b32.xlu0 %v3160, 32
  %v3166 = vpop.permute.xlu0 %3165
  %v3169 = vmul.f32 %v3132, %v3164
  %v3170 = vmul.f32 %v3134, %v3166
  %v3171 = vmul.f32 %v3114, %v3169
  %v3172 = vmul.f32 %v3119, %v3170
  %v3173 = vmul.f32 %v3121, %v2947
  %v3174 = vmul.f32 %v3122, %v2948
  %v3175 = vadd.f32 %v3171, %v3173
  %v3176 = vadd.f32 %v3172, %v3174
  %v3177 = vmul.f32 %v3114, %v3157
  %v3178 = vmul.f32 %v3119, %v3158
  %v3179 = vmul.f32 %v3121, %v2953
  %v3180 = vmul.f32 %v3122, %v2954
  %v3181 = vadd.f32 %v3177, %v3179
  %v3182 = vadd.f32 %v3178, %v3180
  %3184 = vrot.lane.b32.xlu0 %v3175, 64
  %v3185 = vpop.permute.xlu0 %3184
  %v3186 = vsel %vm209, %v3185, 0
  %3188 = vmatprep.subr.mxu0 0.0
  %3189 = vmatpush1.msra.mxu0 %v2275
  %3190 = vmatprep.subr.mxu0 0.0
  %3191 = vmatpush1.msra.mxu0 %v2276
  %3192 = vmatprep.subr.mxu0 0.0
  %3193 = vmatpush1.msra.mxu0 %v2277
  %3194 = vmatprep.subr.mxu0 0.0
  %3195 = vmatpush1.msra.mxu0 %v2278
  %3196 = vmatprep.subr.mxu0 0.0
  %3197 = vmatpush1.msra.mxu0 0.0
  %3198 = vmatprep.subr.mxu0 0.0
  %3199 = vmatpush1.msra.mxu0 0.0
  %3200 = vmatprep.subr.mxu0 0.0
  %3201 = vmatpush1.msra.mxu0 0.0
  %3202 = vmatprep.subr.mxu0 0.0
  %3203 = vmatpush1.msra.mxu0 0.0
  %3204 = vmatprep.subr.mxu0 0.0
  %3205 = vmatpush1.msra.mxu0 0.0
  %3206 = vmatprep.subr.mxu0 0.0
  %3207 = vmatpush1.msra.mxu0 0.0
  %3208 = vmatprep.subr.mxu0 0.0
  %3209 = vmatpush1.msra.mxu0 0.0
  %3210 = vmatprep.subr.mxu0 0.0
  %3211 = vmatpush1.msra.mxu0 0.0
  %3212 = vmatprep.subr.mxu0 0.0
  %3213 = vmatpush1.msra.mxu0 0.0
  %3214 = vmatprep.subr.mxu0 0.0
  %3215 = vmatpush1.msra.mxu0 0.0
  %3216 = vmatprep.subr.mxu0 0.0
  %3217 = vmatpush1.msra.mxu0 0.0
  %3218 = vmatprep.subr.mxu0 0.0
  %3219 = vmatpush1.msra.mxu0 0.0
  %3220 = vmatprep.subr.mxu0 0.0
  %3221 = vmatpush1.msra.mxu0 0.0
  %3222 = vmatprep.subr.mxu0 0.0
  %3223 = vmatpush1.msra.mxu0 0.0
  %3224 = vmatprep.subr.mxu0 0.0
  %3225 = vmatpush1.msra.mxu0 0.0
  %3226 = vmatprep.subr.mxu0 0.0
  %3227 = vmatpush1.msra.mxu0 0.0
  %3228 = vmatprep.subr.mxu0 0.0
  %3229 = vmatpush1.msra.mxu0 0.0
  %3230 = vmatprep.subr.mxu0 0.0
  %3231 = vmatpush1.msra.mxu0 0.0
  %3232 = vmatprep.subr.mxu0 0.0
  %3233 = vmatpush1.msra.mxu0 0.0
  %3234 = vmatprep.subr.mxu0 0.0
  %3235 = vmatpush1.msra.mxu0 0.0
  %3236 = vmatprep.subr.mxu0 0.0
  %3237 = vmatpush1.msra.mxu0 0.0
  %3238 = vmatprep.subr.mxu0 0.0
  %3239 = vmatpush1.msra.mxu0 0.0
  %3240 = vmatprep.subr.mxu0 0.0
  %3241 = vmatpush1.msra.mxu0 0.0
  %3242 = vmatprep.subr.mxu0 0.0
  %3243 = vmatpush1.msra.mxu0 0.0
  %3244 = vmatprep.subr.mxu0 0.0
  %3245 = vmatpush1.msra.mxu0 0.0
  %3246 = vmatprep.subr.mxu0 0.0
  %3247 = vmatpush1.msra.mxu0 0.0
  %3248 = vmatprep.subr.mxu0 0.0
  %3249 = vmatpush1.msra.mxu0 0.0
  %3250 = vmatprep.subr.mxu0 0.0
  %3251 = vmatpush1.msra.mxu0 0.0
  %3252 = vmatprep.mubr.f32.mxu0 0.0
  %3253 = vmatmul.mubr.f32.gmra.mrb[0].mxu0 %v3186
  %v3254 = vpop.f32.mrb[0].mxu0
  %v3255 = vadd.f32 0.0, %v3254
  %v3256 = vpop.f32.mrb[0].mxu0
  %3257 = vdwg.mxu0
  %3259 = vrot.lane.b32.xlu0 %v3176, 64
  %v3260 = vpop.permute.xlu0 %3259
  %v3261 = vsel %vm209, %v3260, 0
  %3263 = vmatprep.subr.mxu0 0.0
  %3264 = vmatpush1.msra.mxu0 %v2279
  %3265 = vmatprep.subr.mxu0 0.0
  %3266 = vmatpush1.msra.mxu0 %v2280
  %3267 = vmatprep.subr.mxu0 0.0
  %3268 = vmatpush1.msra.mxu0 %v2281
  %3269 = vmatprep.subr.mxu0 0.0
  %3270 = vmatpush1.msra.mxu0 %v2282
  %3271 = vmatprep.subr.mxu0 0.0
  %3272 = vmatpush1.msra.mxu0 0.0
  %3273 = vmatprep.subr.mxu0 0.0
  %3274 = vmatpush1.msra.mxu0 0.0
  %3275 = vmatprep.subr.mxu0 0.0
  %3276 = vmatpush1.msra.mxu0 0.0
  %3277 = vmatprep.subr.mxu0 0.0
  %3278 = vmatpush1.msra.mxu0 0.0
  %3279 = vmatprep.subr.mxu0 0.0
  %3280 = vmatpush1.msra.mxu0 0.0
  %3281 = vmatprep.subr.mxu0 0.0
  %3282 = vmatpush1.msra.mxu0 0.0
  %3283 = vmatprep.subr.mxu0 0.0
  %3284 = vmatpush1.msra.mxu0 0.0
  %3285 = vmatprep.subr.mxu0 0.0
  %3286 = vmatpush1.msra.mxu0 0.0
  %3287 = vmatprep.subr.mxu0 0.0
  %3288 = vmatpush1.msra.mxu0 0.0
  %3289 = vmatprep.subr.mxu0 0.0
  %3290 = vmatpush1.msra.mxu0 0.0
  %3291 = vmatprep.subr.mxu0 0.0
  %3292 = vmatpush1.msra.mxu0 0.0
  %3293 = vmatprep.subr.mxu0 0.0
  %3294 = vmatpush1.msra.mxu0 0.0
  %3295 = vmatprep.subr.mxu0 0.0
  %3296 = vmatpush1.msra.mxu0 0.0
  %3297 = vmatprep.subr.mxu0 0.0
  %3298 = vmatpush1.msra.mxu0 0.0
  %3299 = vmatprep.subr.mxu0 0.0
  %3300 = vmatpush1.msra.mxu0 0.0
  %3301 = vmatprep.subr.mxu0 0.0
  %3302 = vmatpush1.msra.mxu0 0.0
  %3303 = vmatprep.subr.mxu0 0.0
  %3304 = vmatpush1.msra.mxu0 0.0
  %3305 = vmatprep.subr.mxu0 0.0
  %3306 = vmatpush1.msra.mxu0 0.0
  %3307 = vmatprep.subr.mxu0 0.0
  %3308 = vmatpush1.msra.mxu0 0.0
  %3309 = vmatprep.subr.mxu0 0.0
  %3310 = vmatpush1.msra.mxu0 0.0
  %3311 = vmatprep.subr.mxu0 0.0
  %3312 = vmatpush1.msra.mxu0 0.0
  %3313 = vmatprep.subr.mxu0 0.0
  %3314 = vmatpush1.msra.mxu0 0.0
  %3315 = vmatprep.subr.mxu0 0.0
  %3316 = vmatpush1.msra.mxu0 0.0
  %3317 = vmatprep.subr.mxu0 0.0
  %3318 = vmatpush1.msra.mxu0 0.0
  %3319 = vmatprep.subr.mxu0 0.0
  %3320 = vmatpush1.msra.mxu0 0.0
  %3321 = vmatprep.subr.mxu0 0.0
  %3322 = vmatpush1.msra.mxu0 0.0
  %3323 = vmatprep.subr.mxu0 0.0
  %3324 = vmatpush1.msra.mxu0 0.0
  %3325 = vmatprep.subr.mxu0 0.0
  %3326 = vmatpush1.msra.mxu0 0.0
  %3327 = vmatprep.mubr.f32.mxu0 0.0
  %3328 = vmatmul.mubr.f32.gmra.mrb[0].mxu0 %v3261
  %v3329 = vpop.f32.mrb[0].mxu0
  %v3330 = vadd.f32 0.0, %v3329
  %v3331 = vpop.f32.mrb[0].mxu0
  %3332 = vdwg.mxu0
  %v3333 = vld [vmem:[#allocation2 + $0x40] sm:$0xff]
  %v3334 = vadd.f32 %v3333, %v3255
  %v3335 = vld [vmem:[#allocation2 + $0x38] sm:$0xff]
  %v3336 = vadd.f32 %v3335, %v3330
  %v3337 = vld [vmem:[%s1311] sm:$0xff]
  %v3338 = vld [vmem:[%s1311 + $0x8] sm:$0xff]
  %3340 = vset.pattern.permute.xlu0 0
  %3341 = vperm.xlu0 %3340, %v3337
  %v3342 = vpop.permute.xlu0 %3341
  %3345 = vset.pattern.permute.xlu0 0
  %3346 = vperm.xlu0 %3345, %v3338
  %v3347 = vpop.permute.xlu0 %3346
  %v3349 = vsub.f32 1.0, %v3342
  %v3350 = vsub.f32 1.0, %v3347
  %v3351 = vxor.u32 %v3334, 2147483648
  %v3352 = vxor.u32 %v3336, 2147483648
  %v3353 = vmul.f32 %v3351, 1.442695
  %v3354 = vpow.pop %v3353
  %v3355 = vmul.f32 %v3352, 1.442695
  %v3356 = vpow.pop %v3355
  %v3357 = vadd.f32 %v3354, 1.0
  %v3358 = vadd.f32 %v3356, 1.0
  %v3359 = vrcp.pop %v3357
  %v3360 = vmul.f32 1.0, %v3359
  %v3361 = vrcp.pop %v3358
  %v3362 = vmul.f32 1.0, %v3361
  %v3363 = vtanh.pop %v3334
  %v3364 = vtanh.pop %v3336
  %v3365 = vmul.f32 %v3360, %v3181
  %v3366 = vmul.f32 %v3362, %v3182
  %3369 = vrot.lane.b32.xlu0 %v3363, 32
  %v3370 = vpop.permute.xlu0 %3369
  %3371 = vrot.lane.b32.xlu0 %v3364, 32
  %v3372 = vpop.permute.xlu0 %3371
  %v3375 = vmul.f32 %v3360, %v3370
  %v3376 = vmul.f32 %v3362, %v3372
  %3379 = vrot.lane.b32.xlu0 %v3375, 32
  %v3380 = vpop.permute.xlu0 %3379
  %3381 = vrot.lane.b32.xlu0 %v3376, 32
  %v3382 = vpop.permute.xlu0 %3381
  %v3385 = vadd.f32 %v3365, %v3380
  %v3386 = vadd.f32 %v3366, %v3382
  %v3387 = vtanh.pop %v3385
  %v3388 = vtanh.pop %v3386
  %3391 = vrot.lane.b32.xlu0 %v3387, 32
  %v3392 = vpop.permute.xlu0 %3391
  %3393 = vrot.lane.b32.xlu0 %v3388, 32
  %v3394 = vpop.permute.xlu0 %3393
  %v3397 = vmul.f32 %v3360, %v3392
  %v3398 = vmul.f32 %v3362, %v3394
  %v3399 = vmul.f32 %v3342, %v3397
  %v3400 = vmul.f32 %v3347, %v3398
  %v3401 = vmul.f32 %v3349, %v3175
  %v3402 = vmul.f32 %v3350, %v3176
  %v3403 = vadd.f32 %v3399, %v3401
  %v3404 = vadd.f32 %v3400, %v3402
  %v3405 = vmul.f32 %v3342, %v3385
  %v3406 = vmul.f32 %v3347, %v3386
  %v3407 = vmul.f32 %v3349, %v3181
  %v3408 = vmul.f32 %v3350, %v3182
  %v3409 = vadd.f32 %v3405, %v3407
  %v3410 = vadd.f32 %v3406, %v3408
  %3412 = vrot.lane.b32.xlu0 %v3403, 64
  %v3413 = vpop.permute.xlu0 %3412
  %v3414 = vsel %vm209, %v3413, 0
  %3416 = vmatprep.subr.mxu0 0.0
  %3417 = vmatpush1.msra.mxu0 %v2275
  %3418 = vmatprep.subr.mxu0 0.0
  %3419 = vmatpush1.msra.mxu0 %v2276
  %3420 = vmatprep.subr.mxu0 0.0
  %3421 = vmatpush1.msra.mxu0 %v2277
  %3422 = vmatprep.subr.mxu0 0.0
  %3423 = vmatpush1.msra.mxu0 %v2278
  %3424 = vmatprep.subr.mxu0 0.0
  %3425 = vmatpush1.msra.mxu0 0.0
  %3426 = vmatprep.subr.mxu0 0.0
  %3427 = vmatpush1.msra.mxu0 0.0
  %3428 = vmatprep.subr.mxu0 0.0
  %3429 = vmatpush1.msra.mxu0 0.0
  %3430 = vmatprep.subr.mxu0 0.0
  %3431 = vmatpush1.msra.mxu0 0.0
  %3432 = vmatprep.subr.mxu0 0.0
  %3433 = vmatpush1.msra.mxu0 0.0
  %3434 = vmatprep.subr.mxu0 0.0
  %3435 = vmatpush1.msra.mxu0 0.0
  %3436 = vmatprep.subr.mxu0 0.0
  %3437 = vmatpush1.msra.mxu0 0.0
  %3438 = vmatprep.subr.mxu0 0.0
  %3439 = vmatpush1.msra.mxu0 0.0
  %3440 = vmatprep.subr.mxu0 0.0
  %3441 = vmatpush1.msra.mxu0 0.0
  %3442 = vmatprep.subr.mxu0 0.0
  %3443 = vmatpush1.msra.mxu0 0.0
  %3444 = vmatprep.subr.mxu0 0.0
  %3445 = vmatpush1.msra.mxu0 0.0
  %3446 = vmatprep.subr.mxu0 0.0
  %3447 = vmatpush1.msra.mxu0 0.0
  %3448 = vmatprep.subr.mxu0 0.0
  %3449 = vmatpush1.msra.mxu0 0.0
  %3450 = vmatprep.subr.mxu0 0.0
  %3451 = vmatpush1.msra.mxu0 0.0
  %3452 = vmatprep.subr.mxu0 0.0
  %3453 = vmatpush1.msra.mxu0 0.0
  %3454 = vmatprep.subr.mxu0 0.0
  %3455 = vmatpush1.msra.mxu0 0.0
  %3456 = vmatprep.subr.mxu0 0.0
  %3457 = vmatpush1.msra.mxu0 0.0
  %3458 = vmatprep.subr.mxu0 0.0
  %3459 = vmatpush1.msra.mxu0 0.0
  %3460 = vmatprep.subr.mxu0 0.0
  %3461 = vmatpush1.msra.mxu0 0.0
  %3462 = vmatprep.subr.mxu0 0.0
  %3463 = vmatpush1.msra.mxu0 0.0
  %3464 = vmatprep.subr.mxu0 0.0
  %3465 = vmatpush1.msra.mxu0 0.0
  %3466 = vmatprep.subr.mxu0 0.0
  %3467 = vmatpush1.msra.mxu0 0.0
  %3468 = vmatprep.subr.mxu0 0.0
  %3469 = vmatpush1.msra.mxu0 0.0
  %3470 = vmatprep.subr.mxu0 0.0
  %3471 = vmatpush1.msra.mxu0 0.0
  %3472 = vmatprep.subr.mxu0 0.0
  %3473 = vmatpush1.msra.mxu0 0.0
  %3474 = vmatprep.subr.mxu0 0.0
  %3475 = vmatpush1.msra.mxu0 0.0
  %3476 = vmatprep.subr.mxu0 0.0
  %3477 = vmatpush1.msra.mxu0 0.0
  %3478 = vmatprep.subr.mxu0 0.0
  %3479 = vmatpush1.msra.mxu0 0.0
  %3480 = vmatprep.mubr.f32.mxu0 0.0
  %3481 = vmatmul.mubr.f32.gmra.mrb[0].mxu0 %v3414
  %v3482 = vpop.f32.mrb[0].mxu0
  %v3483 = vadd.f32 0.0, %v3482
  %v3484 = vpop.f32.mrb[0].mxu0
  %3485 = vdwg.mxu0
  %3487 = vrot.lane.b32.xlu0 %v3404, 64
  %v3488 = vpop.permute.xlu0 %3487
  %v3489 = vsel %vm209, %v3488, 0
  %3491 = vmatprep.subr.mxu0 0.0
  %3492 = vmatpush1.msra.mxu0 %v2279
  %3493 = vmatprep.subr.mxu0 0.0
  %3494 = vmatpush1.msra.mxu0 %v2280
  %3495 = vmatprep.subr.mxu0 0.0
  %3496 = vmatpush1.msra.mxu0 %v2281
  %3497 = vmatprep.subr.mxu0 0.0
  %3498 = vmatpush1.msra.mxu0 %v2282
  %3499 = vmatprep.subr.mxu0 0.0
  %3500 = vmatpush1.msra.mxu0 0.0
  %3501 = vmatprep.subr.mxu0 0.0
  %3502 = vmatpush1.msra.mxu0 0.0
  %3503 = vmatprep.subr.mxu0 0.0
  %3504 = vmatpush1.msra.mxu0 0.0
  %3505 = vmatprep.subr.mxu0 0.0
  %3506 = vmatpush1.msra.mxu0 0.0
  %3507 = vmatprep.subr.mxu0 0.0
  %3508 = vmatpush1.msra.mxu0 0.0
  %3509 = vmatprep.subr.mxu0 0.0
  %3510 = vmatpush1.msra.mxu0 0.0
  %3511 = vmatprep.subr.mxu0 0.0
  %3512 = vmatpush1.msra.mxu0 0.0
  %3513 = vmatprep.subr.mxu0 0.0
  %3514 = vmatpush1.msra.mxu0 0.0
  %3515 = vmatprep.subr.mxu0 0.0
  %3516 = vmatpush1.msra.mxu0 0.0
  %3517 = vmatprep.subr.mxu0 0.0
  %3518 = vmatpush1.msra.mxu0 0.0
  %3519 = vmatprep.subr.mxu0 0.0
  %3520 = vmatpush1.msra.mxu0 0.0
  %3521 = vmatprep.subr.mxu0 0.0
  %3522 = vmatpush1.msra.mxu0 0.0
  %3523 = vmatprep.subr.mxu0 0.0
  %3524 = vmatpush1.msra.mxu0 0.0
  %3525 = vmatprep.subr.mxu0 0.0
  %3526 = vmatpush1.msra.mxu0 0.0
  %3527 = vmatprep.subr.mxu0 0.0
  %3528 = vmatpush1.msra.mxu0 0.0
  %3529 = vmatprep.subr.mxu0 0.0
  %3530 = vmatpush1.msra.mxu0 0.0
  %3531 = vmatprep.subr.mxu0 0.0
  %3532 = vmatpush1.msra.mxu0 0.0
  %3533 = vmatprep.subr.mxu0 0.0
  %3534 = vmatpush1.msra.mxu0 0.0
  %3535 = vmatprep.subr.mxu0 0.0
  %3536 = vmatpush1.msra.mxu0 0.0
  %3537 = vmatprep.subr.mxu0 0.0
  %3538 = vmatpush1.msra.mxu0 0.0
  %3539 = vmatprep.subr.mxu0 0.0
  %3540 = vmatpush1.msra.mxu0 0.0
  %3541 = vmatprep.subr.mxu0 0.0
  %3542 = vmatpush1.msra.mxu0 0.0
  %3543 = vmatprep.subr.mxu0 0.0
  %3544 = vmatpush1.msra.mxu0 0.0
  %3545 = vmatprep.subr.mxu0 0.0
  %3546 = vmatpush1.msra.mxu0 0.0
  %3547 = vmatprep.subr.mxu0 0.0
  %3548 = vmatpush1.msra.mxu0 0.0
  %3549 = vmatprep.subr.mxu0 0.0
  %3550 = vmatpush1.msra.mxu0 0.0
  %3551 = vmatprep.subr.mxu0 0.0
  %3552 = vmatpush1.msra.mxu0 0.0
  %3553 = vmatprep.subr.mxu0 0.0
  %3554 = vmatpush1.msra.mxu0 0.0
  %3555 = vmatprep.mubr.f32.mxu0 0.0
  %3556 = vmatmul.mubr.f32.gmra.mrb[0].mxu0 %v3489
  %v3557 = vpop.f32.mrb[0].mxu0
  %v3558 = vadd.f32 0.0, %v3557
  %v3559 = vpop.f32.mrb[0].mxu0
  %3560 = vdwg.mxu0
  %v3561 = vld [vmem:[#allocation2 + $0x50] sm:$0xff]
  %v3562 = vadd.f32 %v3561, %v3483
  %v3563 = vld [vmem:[#allocation2 + $0x28] sm:$0xff]
  %v3564 = vadd.f32 %v3563, %v3558
  %v3565 = vld [vmem:[%s1550] sm:$0xff]
  %v3566 = vld [vmem:[%s1550 + $0x8] sm:$0xff]
  %3568 = vset.pattern.permute.xlu0 0
  %3569 = vperm.xlu0 %3568, %v3565
  %v3570 = vpop.permute.xlu0 %3569
  %3573 = vset.pattern.permute.xlu0 0
  %3574 = vperm.xlu0 %3573, %v3566
  %v3575 = vpop.permute.xlu0 %3574
  %v3577 = vsub.f32 1.0, %v3570
  %v3578 = vsub.f32 1.0, %v3575
  %v3579 = vxor.u32 %v3562, 2147483648
  %v3580 = vxor.u32 %v3564, 2147483648
  %v3581 = vmul.f32 %v3579, 1.442695
  %v3582 = vpow.pop %v3581
  %v3583 = vmul.f32 %v3580, 1.442695
  %v3584 = vpow.pop %v3583
  %v3585 = vadd.f32 %v3582, 1.0
  %v3586 = vadd.f32 %v3584, 1.0
  %v3587 = vrcp.pop %v3585
  %v3588 = vmul.f32 1.0, %v3587
  %v3589 = vrcp.pop %v3586
  %v3590 = vmul.f32 1.0, %v3589
  %v3591 = vtanh.pop %v3562
  %v3592 = vtanh.pop %v3564
  %v3593 = vmul.f32 %v3588, %v3409
  %v3594 = vmul.f32 %v3590, %v3410
  %3597 = vrot.lane.b32.xlu0 %v3591, 32
  %v3598 = vpop.permute.xlu0 %3597
  %3599 = vrot.lane.b32.xlu0 %v3592, 32
  %v3600 = vpop.permute.xlu0 %3599
  %v3603 = vmul.f32 %v3588, %v3598
  %v3604 = vmul.f32 %v3590, %v3600
  %3607 = vrot.lane.b32.xlu0 %v3603, 32
  %v3608 = vpop.permute.xlu0 %3607
  %3609 = vrot.lane.b32.xlu0 %v3604, 32
  %v3610 = vpop.permute.xlu0 %3609
  %v3613 = vadd.f32 %v3593, %v3608
  %v3614 = vadd.f32 %v3594, %v3610
  %v3615 = vtanh.pop %v3613
  %v3616 = vtanh.pop %v3614
  %3619 = vrot.lane.b32.xlu0 %v3615, 32
  %v3620 = vpop.permute.xlu0 %3619
  %3621 = vrot.lane.b32.xlu0 %v3616, 32
  %v3622 = vpop.permute.xlu0 %3621
  %v3625 = vmul.f32 %v3588, %v3620
  %v3626 = vmul.f32 %v3590, %v3622
  %v3627 = vmul.f32 %v3570, %v3625
  %v3628 = vmul.f32 %v3575, %v3626
  %v3629 = vmul.f32 %v3577, %v3403
  %v3630 = vmul.f32 %v3578, %v3404
  %v3631 = vadd.f32 %v3627, %v3629
  %v3632 = vadd.f32 %v3628, %v3630
  %v3633 = vmul.f32 %v3570, %v3613
  %v3634 = vmul.f32 %v3575, %v3614
  %v3635 = vmul.f32 %v3577, %v3409
  %v3636 = vmul.f32 %v3578, %v3410
  %v3637 = vadd.f32 %v3633, %v3635
  %v3638 = vadd.f32 %v3634, %v3636
  %3640 = vrot.lane.b32.xlu0 %v3631, 64
  %v3641 = vpop.permute.xlu0 %3640
  %v3642 = vsel %vm209, %v3641, 0
  %3644 = vmatprep.subr.mxu0 0.0
  %3645 = vmatpush1.msra.mxu0 %v2275
  %3646 = vmatprep.subr.mxu0 0.0
  %3647 = vmatpush1.msra.mxu0 %v2276
  %3648 = vmatprep.subr.mxu0 0.0
  %3649 = vmatpush1.msra.mxu0 %v2277
  %3650 = vmatprep.subr.mxu0 0.0
  %3651 = vmatpush1.msra.mxu0 %v2278
  %3652 = vmatprep.subr.mxu0 0.0
  %3653 = vmatpush1.msra.mxu0 0.0
  %3654 = vmatprep.subr.mxu0 0.0
  %3655 = vmatpush1.msra.mxu0 0.0
  %3656 = vmatprep.subr.mxu0 0.0
  %3657 = vmatpush1.msra.mxu0 0.0
  %3658 = vmatprep.subr.mxu0 0.0
  %3659 = vmatpush1.msra.mxu0 0.0
  %3660 = vmatprep.subr.mxu0 0.0
  %3661 = vmatpush1.msra.mxu0 0.0
  %3662 = vmatprep.subr.mxu0 0.0
  %3663 = vmatpush1.msra.mxu0 0.0
  %3664 = vmatprep.subr.mxu0 0.0
  %3665 = vmatpush1.msra.mxu0 0.0
  %3666 = vmatprep.subr.mxu0 0.0
  %3667 = vmatpush1.msra.mxu0 0.0
  %3668 = vmatprep.subr.mxu0 0.0
  %3669 = vmatpush1.msra.mxu0 0.0
  %3670 = vmatprep.subr.mxu0 0.0
  %3671 = vmatpush1.msra.mxu0 0.0
  %3672 = vmatprep.subr.mxu0 0.0
  %3673 = vmatpush1.msra.mxu0 0.0
  %3674 = vmatprep.subr.mxu0 0.0
  %3675 = vmatpush1.msra.mxu0 0.0
  %3676 = vmatprep.subr.mxu0 0.0
  %3677 = vmatpush1.msra.mxu0 0.0
  %3678 = vmatprep.subr.mxu0 0.0
  %3679 = vmatpush1.msra.mxu0 0.0
  %3680 = vmatprep.subr.mxu0 0.0
  %3681 = vmatpush1.msra.mxu0 0.0
  %3682 = vmatprep.subr.mxu0 0.0
  %3683 = vmatpush1.msra.mxu0 0.0
  %3684 = vmatprep.subr.mxu0 0.0
  %3685 = vmatpush1.msra.mxu0 0.0
  %3686 = vmatprep.subr.mxu0 0.0
  %3687 = vmatpush1.msra.mxu0 0.0
  %3688 = vmatprep.subr.mxu0 0.0
  %3689 = vmatpush1.msra.mxu0 0.0
  %3690 = vmatprep.subr.mxu0 0.0
  %3691 = vmatpush1.msra.mxu0 0.0
  %3692 = vmatprep.subr.mxu0 0.0
  %3693 = vmatpush1.msra.mxu0 0.0
  %3694 = vmatprep.subr.mxu0 0.0
  %3695 = vmatpush1.msra.mxu0 0.0
  %3696 = vmatprep.subr.mxu0 0.0
  %3697 = vmatpush1.msra.mxu0 0.0
  %3698 = vmatprep.subr.mxu0 0.0
  %3699 = vmatpush1.msra.mxu0 0.0
  %3700 = vmatprep.subr.mxu0 0.0
  %3701 = vmatpush1.msra.mxu0 0.0
  %3702 = vmatprep.subr.mxu0 0.0
  %3703 = vmatpush1.msra.mxu0 0.0
  %3704 = vmatprep.subr.mxu0 0.0
  %3705 = vmatpush1.msra.mxu0 0.0
  %3706 = vmatprep.subr.mxu0 0.0
  %3707 = vmatpush1.msra.mxu0 0.0
  %3708 = vmatprep.mubr.f32.mxu0 0.0
  %3709 = vmatmul.mubr.f32.gmra.mrb[0].mxu0 %v3642
  %v3710 = vpop.f32.mrb[0].mxu0
  %v3711 = vadd.f32 0.0, %v3710
  %v3712 = vpop.f32.mrb[0].mxu0
  %3713 = vdwg.mxu0
  %3715 = vrot.lane.b32.xlu0 %v3632, 64
  %v3716 = vpop.permute.xlu0 %3715
  %v3717 = vsel %vm209, %v3716, 0
  %3719 = vmatprep.subr.mxu0 0.0
  %3720 = vmatpush1.msra.mxu0 %v2279
  %3721 = vmatprep.subr.mxu0 0.0
  %3722 = vmatpush1.msra.mxu0 %v2280
  %3723 = vmatprep.subr.mxu0 0.0
  %3724 = vmatpush1.msra.mxu0 %v2281
  %3725 = vmatprep.subr.mxu0 0.0
  %3726 = vmatpush1.msra.mxu0 %v2282
  %3727 = vmatprep.subr.mxu0 0.0
  %3728 = vmatpush1.msra.mxu0 0.0
  %3729 = vmatprep.subr.mxu0 0.0
  %3730 = vmatpush1.msra.mxu0 0.0
  %3731 = vmatprep.subr.mxu0 0.0
  %3732 = vmatpush1.msra.mxu0 0.0
  %3733 = vmatprep.subr.mxu0 0.0
  %3734 = vmatpush1.msra.mxu0 0.0
  %3735 = vmatprep.subr.mxu0 0.0
  %3736 = vmatpush1.msra.mxu0 0.0
  %3737 = vmatprep.subr.mxu0 0.0
  %3738 = vmatpush1.msra.mxu0 0.0
  %3739 = vmatprep.subr.mxu0 0.0
  %3740 = vmatpush1.msra.mxu0 0.0
  %3741 = vmatprep.subr.mxu0 0.0
  %3742 = vmatpush1.msra.mxu0 0.0
  %3743 = vmatprep.subr.mxu0 0.0
  %3744 = vmatpush1.msra.mxu0 0.0
  %3745 = vmatprep.subr.mxu0 0.0
  %3746 = vmatpush1.msra.mxu0 0.0
  %3747 = vmatprep.subr.mxu0 0.0
  %3748 = vmatpush1.msra.mxu0 0.0
  %3749 = vmatprep.subr.mxu0 0.0
  %3750 = vmatpush1.msra.mxu0 0.0
  %3751 = vmatprep.subr.mxu0 0.0
  %3752 = vmatpush1.msra.mxu0 0.0
  %3753 = vmatprep.subr.mxu0 0.0
  %3754 = vmatpush1.msra.mxu0 0.0
  %3755 = vmatprep.subr.mxu0 0.0
  %3756 = vmatpush1.msra.mxu0 0.0
  %3757 = vmatprep.subr.mxu0 0.0
  %3758 = vmatpush1.msra.mxu0 0.0
  %3759 = vmatprep.subr.mxu0 0.0
  %3760 = vmatpush1.msra.mxu0 0.0
  %3761 = vmatprep.subr.mxu0 0.0
  %3762 = vmatpush1.msra.mxu0 0.0
  %3763 = vmatprep.subr.mxu0 0.0
  %3764 = vmatpush1.msra.mxu0 0.0
  %3765 = vmatprep.subr.mxu0 0.0
  %3766 = vmatpush1.msra.mxu0 0.0
  %3767 = vmatprep.subr.mxu0 0.0
  %3768 = vmatpush1.msra.mxu0 0.0
  %3769 = vmatprep.subr.mxu0 0.0
  %3770 = vmatpush1.msra.mxu0 0.0
  %3771 = vmatprep.subr.mxu0 0.0
  %3772 = vmatpush1.msra.mxu0 0.0
  %3773 = vmatprep.subr.mxu0 0.0
  %3774 = vmatpush1.msra.mxu0 0.0
  %3775 = vmatprep.subr.mxu0 0.0
  %3776 = vmatpush1.msra.mxu0 0.0
  %3777 = vmatprep.subr.mxu0 0.0
  %3778 = vmatpush1.msra.mxu0 0.0
  %3779 = vmatprep.subr.mxu0 0.0
  %3780 = vmatpush1.msra.mxu0 0.0
  %3781 = vmatprep.subr.mxu0 0.0
  %3782 = vmatpush1.msra.mxu0 0.0
  %3783 = vmatprep.mubr.f32.mxu0 0.0
  %3784 = vmatmul.mubr.f32.gmra.mrb[0].mxu0 %v3717
  %v3785 = vpop.f32.mrb[0].mxu0
  %v3786 = vadd.f32 0.0, %v3785
  %v3787 = vpop.f32.mrb[0].mxu0
  %3788 = vdwg.mxu0
  %v3789 = vld [vmem:[#allocation2 + $0x60] sm:$0xff]
  %v3790 = vadd.f32 %v3789, %v3711
  %v3791 = vld [vmem:[#allocation2 + $0x18] sm:$0xff]
  %v3792 = vadd.f32 %v3791, %v3786
  %v3793 = vld [vmem:[%s1789] sm:$0xff]
  %v3794 = vld [vmem:[%s1789 + $0x8] sm:$0xff]
  %3796 = vset.pattern.permute.xlu0 0
  %3797 = vperm.xlu0 %3796, %v3793
  %v3798 = vpop.permute.xlu0 %3797
  %3801 = vset.pattern.permute.xlu0 0
  %3802 = vperm.xlu0 %3801, %v3794
  %v3803 = vpop.permute.xlu0 %3802
  %v3805 = vsub.f32 1.0, %v3798
  %v3806 = vsub.f32 1.0, %v3803
  %v3807 = vxor.u32 %v3790, 2147483648
  %v3808 = vxor.u32 %v3792, 2147483648
  %v3809 = vmul.f32 %v3807, 1.442695
  %v3810 = vpow.pop %v3809
  %v3811 = vmul.f32 %v3808, 1.442695
  %v3812 = vpow.pop %v3811
  %v3813 = vadd.f32 %v3810, 1.0
  %v3814 = vadd.f32 %v3812, 1.0
  %v3815 = vrcp.pop %v3813
  %v3816 = vmul.f32 1.0, %v3815
  %v3817 = vrcp.pop %v3814
  %v3818 = vmul.f32 1.0, %v3817
  %v3819 = vtanh.pop %v3790
  %v3820 = vtanh.pop %v3792
  %v3821 = vmul.f32 %v3816, %v3637
  %v3822 = vmul.f32 %v3818, %v3638
  %3825 = vrot.lane.b32.xlu0 %v3819, 32
  %v3826 = vpop.permute.xlu0 %3825
  %3827 = vrot.lane.b32.xlu0 %v3820, 32
  %v3828 = vpop.permute.xlu0 %3827
  %v3831 = vmul.f32 %v3816, %v3826
  %v3832 = vmul.f32 %v3818, %v3828
  %3835 = vrot.lane.b32.xlu0 %v3831, 32
  %v3836 = vpop.permute.xlu0 %3835
  %3837 = vrot.lane.b32.xlu0 %v3832, 32
  %v3838 = vpop.permute.xlu0 %3837
  %v3841 = vadd.f32 %v3821, %v3836
  %v3842 = vadd.f32 %v3822, %v3838
  %v3843 = vtanh.pop %v3841
  %v3844 = vtanh.pop %v3842
  %3847 = vrot.lane.b32.xlu0 %v3843, 32
  %v3848 = vpop.permute.xlu0 %3847
  %3849 = vrot.lane.b32.xlu0 %v3844, 32
  %v3850 = vpop.permute.xlu0 %3849
  %v3853 = vmul.f32 %v3816, %v3848
  %v3854 = vmul.f32 %v3818, %v3850
  %v3855 = vmul.f32 %v3798, %v3853
  %v3856 = vmul.f32 %v3803, %v3854
  %v3857 = vmul.f32 %v3805, %v3631
  %v3858 = vmul.f32 %v3806, %v3632
  %v3859 = vadd.f32 %v3855, %v3857
  %v3860 = vadd.f32 %v3856, %v3858
  %v3861 = vmul.f32 %v3798, %v3841
  %v3862 = vmul.f32 %v3803, %v3842
  %v3863 = vmul.f32 %v3805, %v3637
  %v3864 = vmul.f32 %v3806, %v3638
  %v3865 = vadd.f32 %v3861, %v3863
  %v3866 = vadd.f32 %v3862, %v3864
  %3868 = vrot.lane.b32.xlu0 %v3859, 64
  %v3869 = vpop.permute.xlu0 %3868
  %v3870 = vsel %vm209, %v3869, 0
  %3872 = vmatprep.subr.mxu0 0.0
  %3873 = vmatpush1.msra.mxu0 %v2275
  %3874 = vmatprep.subr.mxu0 0.0
  %3875 = vmatpush1.msra.mxu0 %v2276
  %3876 = vmatprep.subr.mxu0 0.0
  %3877 = vmatpush1.msra.mxu0 %v2277
  %3878 = vmatprep.subr.mxu0 0.0
  %3879 = vmatpush1.msra.mxu0 %v2278
  %3880 = vmatprep.subr.mxu0 0.0
  %3881 = vmatpush1.msra.mxu0 0.0
  %3882 = vmatprep.subr.mxu0 0.0
  %3883 = vmatpush1.msra.mxu0 0.0
  %3884 = vmatprep.subr.mxu0 0.0
  %3885 = vmatpush1.msra.mxu0 0.0
  %3886 = vmatprep.subr.mxu0 0.0
  %3887 = vmatpush1.msra.mxu0 0.0
  %3888 = vmatprep.subr.mxu0 0.0
  %3889 = vmatpush1.msra.mxu0 0.0
  %3890 = vmatprep.subr.mxu0 0.0
  %3891 = vmatpush1.msra.mxu0 0.0
  %3892 = vmatprep.subr.mxu0 0.0
  %3893 = vmatpush1.msra.mxu0 0.0
  %3894 = vmatprep.subr.mxu0 0.0
  %3895 = vmatpush1.msra.mxu0 0.0
  %3896 = vmatprep.subr.mxu0 0.0
  %3897 = vmatpush1.msra.mxu0 0.0
  %3898 = vmatprep.subr.mxu0 0.0
  %3899 = vmatpush1.msra.mxu0 0.0
  %3900 = vmatprep.subr.mxu0 0.0
  %3901 = vmatpush1.msra.mxu0 0.0
  %3902 = vmatprep.subr.mxu0 0.0
  %3903 = vmatpush1.msra.mxu0 0.0
  %3904 = vmatprep.subr.mxu0 0.0
  %3905 = vmatpush1.msra.mxu0 0.0
  %3906 = vmatprep.subr.mxu0 0.0
  %3907 = vmatpush1.msra.mxu0 0.0
  %3908 = vmatprep.subr.mxu0 0.0
  %3909 = vmatpush1.msra.mxu0 0.0
  %3910 = vmatprep.subr.mxu0 0.0
  %3911 = vmatpush1.msra.mxu0 0.0
  %3912 = vmatprep.subr.mxu0 0.0
  %3913 = vmatpush1.msra.mxu0 0.0
  %3914 = vmatprep.subr.mxu0 0.0
  %3915 = vmatpush1.msra.mxu0 0.0
  %3916 = vmatprep.subr.mxu0 0.0
  %3917 = vmatpush1.msra.mxu0 0.0
  %3918 = vmatprep.subr.mxu0 0.0
  %3919 = vmatpush1.msra.mxu0 0.0
  %3920 = vmatprep.subr.mxu0 0.0
  %3921 = vmatpush1.msra.mxu0 0.0
  %3922 = vmatprep.subr.mxu0 0.0
  %3923 = vmatpush1.msra.mxu0 0.0
  %3924 = vmatprep.subr.mxu0 0.0
  %3925 = vmatpush1.msra.mxu0 0.0
  %3926 = vmatprep.subr.mxu0 0.0
  %3927 = vmatpush1.msra.mxu0 0.0
  %3928 = vmatprep.subr.mxu0 0.0
  %3929 = vmatpush1.msra.mxu0 0.0
  %3930 = vmatprep.subr.mxu0 0.0
  %3931 = vmatpush1.msra.mxu0 0.0
  %3932 = vmatprep.subr.mxu0 0.0
  %3933 = vmatpush1.msra.mxu0 0.0
  %3934 = vmatprep.subr.mxu0 0.0
  %3935 = vmatpush1.msra.mxu0 0.0
  %3936 = vmatprep.mubr.f32.mxu0 0.0
  %3937 = vmatmul.mubr.f32.gmra.mrb[0].mxu0 %v3870
  %v3938 = vpop.f32.mrb[0].mxu0
  %v3939 = vadd.f32 0.0, %v3938
  %v3940 = vpop.f32.mrb[0].mxu0
  %3941 = vdwg.mxu0
  %3943 = vrot.lane.b32.xlu0 %v3860, 64
  %v3944 = vpop.permute.xlu0 %3943
  %v3945 = vsel %vm209, %v3944, 0
  %3947 = vmatprep.subr.mxu0 0.0
  %3948 = vmatpush1.msra.mxu0 %v2279
  %3949 = vmatprep.subr.mxu0 0.0
  %3950 = vmatpush1.msra.mxu0 %v2280
  %3951 = vmatprep.subr.mxu0 0.0
  %3952 = vmatpush1.msra.mxu0 %v2281
  %3953 = vmatprep.subr.mxu0 0.0
  %3954 = vmatpush1.msra.mxu0 %v2282
  %3955 = vmatprep.subr.mxu0 0.0
  %3956 = vmatpush1.msra.mxu0 0.0
  %3957 = vmatprep.subr.mxu0 0.0
  %3958 = vmatpush1.msra.mxu0 0.0
  %3959 = vmatprep.subr.mxu0 0.0
  %3960 = vmatpush1.msra.mxu0 0.0
  %3961 = vmatprep.subr.mxu0 0.0
  %3962 = vmatpush1.msra.mxu0 0.0
  %3963 = vmatprep.subr.mxu0 0.0
  %3964 = vmatpush1.msra.mxu0 0.0
  %3965 = vmatprep.subr.mxu0 0.0
  %3966 = vmatpush1.msra.mxu0 0.0
  %3967 = vmatprep.subr.mxu0 0.0
  %3968 = vmatpush1.msra.mxu0 0.0
  %3969 = vmatprep.subr.mxu0 0.0
  %3970 = vmatpush1.msra.mxu0 0.0
  %3971 = vmatprep.subr.mxu0 0.0
  %3972 = vmatpush1.msra.mxu0 0.0
  %3973 = vmatprep.subr.mxu0 0.0
  %3974 = vmatpush1.msra.mxu0 0.0
  %3975 = vmatprep.subr.mxu0 0.0
  %3976 = vmatpush1.msra.mxu0 0.0
  %3977 = vmatprep.subr.mxu0 0.0
  %3978 = vmatpush1.msra.mxu0 0.0
  %3979 = vmatprep.subr.mxu0 0.0
  %3980 = vmatpush1.msra.mxu0 0.0
  %3981 = vmatprep.subr.mxu0 0.0
  %3982 = vmatpush1.msra.mxu0 0.0
  %3983 = vmatprep.subr.mxu0 0.0
  %3984 = vmatpush1.msra.mxu0 0.0
  %3985 = vmatprep.subr.mxu0 0.0
  %3986 = vmatpush1.msra.mxu0 0.0
  %3987 = vmatprep.subr.mxu0 0.0
  %3988 = vmatpush1.msra.mxu0 0.0
  %3989 = vmatprep.subr.mxu0 0.0
  %3990 = vmatpush1.msra.mxu0 0.0
  %3991 = vmatprep.subr.mxu0 0.0
  %3992 = vmatpush1.msra.mxu0 0.0
  %3993 = vmatprep.subr.mxu0 0.0
  %3994 = vmatpush1.msra.mxu0 0.0
  %3995 = vmatprep.subr.mxu0 0.0
  %3996 = vmatpush1.msra.mxu0 0.0
  %3997 = vmatprep.subr.mxu0 0.0
  %3998 = vmatpush1.msra.mxu0 0.0
  %3999 = vmatprep.subr.mxu0 0.0
  %4000 = vmatpush1.msra.mxu0 0.0
  %4001 = vmatprep.subr.mxu0 0.0
  %4002 = vmatpush1.msra.mxu0 0.0
  %4003 = vmatprep.subr.mxu0 0.0
  %4004 = vmatpush1.msra.mxu0 0.0
  %4005 = vmatprep.subr.mxu0 0.0
  %4006 = vmatpush1.msra.mxu0 0.0
  %4007 = vmatprep.subr.mxu0 0.0
  %4008 = vmatpush1.msra.mxu0 0.0
  %4009 = vmatprep.subr.mxu0 0.0
  %4010 = vmatpush1.msra.mxu0 0.0
  %4011 = vmatprep.mubr.f32.mxu0 0.0
  %4012 = vmatmul.mubr.f32.gmra.mrb[0].mxu0 %v3945
  %v4013 = vpop.f32.mrb[0].mxu0
  %v4014 = vadd.f32 0.0, %v4013
  %v4015 = vpop.f32.mrb[0].mxu0
  %4016 = vdwg.mxu0
  %v4017 = vld [vmem:[#allocation2 + $0x70] sm:$0xff]
  %v4018 = vadd.f32 %v4017, %v3939
  %v4019 = vld [vmem:[#allocation2 + $0x8] sm:$0xff]
  %v4020 = vadd.f32 %v4019, %v4014
  %v4021 = vld [vmem:[%s2028] sm:$0xff]
  %v4022 = vld [vmem:[%s2028 + $0x8] sm:$0xff]
  %4024 = vset.pattern.permute.xlu0 0
  %4025 = vperm.xlu0 %4024, %v4021
  %v4026 = vpop.permute.xlu0 %4025
  %4029 = vset.pattern.permute.xlu0 0
  %4030 = vperm.xlu0 %4029, %v4022
  %v4031 = vpop.permute.xlu0 %4030
  %v4033 = vsub.f32 1.0, %v4026
  %v4034 = vsub.f32 1.0, %v4031
  %v4035 = vxor.u32 %v4018, 2147483648
  %v4036 = vxor.u32 %v4020, 2147483648
  %v4037 = vmul.f32 %v4035, 1.442695
  %v4038 = vpow.pop %v4037
  %v4039 = vmul.f32 %v4036, 1.442695
  %v4040 = vpow.pop %v4039
  %v4041 = vadd.f32 %v4038, 1.0
  %v4042 = vadd.f32 %v4040, 1.0
  %v4043 = vrcp.pop %v4041
  %v4044 = vmul.f32 1.0, %v4043
  %v4045 = vrcp.pop %v4042
  %v4046 = vmul.f32 1.0, %v4045
  %v4047 = vtanh.pop %v4018
  %v4048 = vtanh.pop %v4020
  %v4049 = vmul.f32 %v4044, %v3865
  %v4050 = vmul.f32 %v4046, %v3866
  %4053 = vrot.lane.b32.xlu0 %v4047, 32
  %v4054 = vpop.permute.xlu0 %4053
  %4055 = vrot.lane.b32.xlu0 %v4048, 32
  %v4056 = vpop.permute.xlu0 %4055
  %v4059 = vmul.f32 %v4044, %v4054
  %v4060 = vmul.f32 %v4046, %v4056
  %4063 = vrot.lane.b32.xlu0 %v4059, 32
  %v4064 = vpop.permute.xlu0 %4063
  %4065 = vrot.lane.b32.xlu0 %v4060, 32
  %v4066 = vpop.permute.xlu0 %4065
  %v4069 = vadd.f32 %v4049, %v4064
  %v4070 = vadd.f32 %v4050, %v4066
  %v4071 = vtanh.pop %v4069
  %v4072 = vtanh.pop %v4070
  %4075 = vrot.lane.b32.xlu0 %v4071, 32
  %v4076 = vpop.permute.xlu0 %4075
  %4077 = vrot.lane.b32.xlu0 %v4072, 32
  %v4078 = vpop.permute.xlu0 %4077
  %v4081 = vmul.f32 %v4044, %v4076
  %v4082 = vmul.f32 %v4046, %v4078
  %v4083 = vmul.f32 %v4026, %v4081
  %v4084 = vmul.f32 %v4031, %v4082
  %v4085 = vmul.f32 %v4033, %v3859
  %v4086 = vmul.f32 %v4034, %v3860
  %v4087 = vadd.f32 %v4083, %v4085
  %v4088 = vadd.f32 %v4084, %v4086
  %v4089 = vld [vmem:[%s10] sm:$0xff]
  %v4090 = vld [vmem:[%s10 + $0x8] sm:$0xff]
  %v4091 = vld [vmem:[%s10 + $0x10] sm:$0xff]
  %v4092 = vld [vmem:[%s10 + $0x18] sm:$0xff]
  %v4093 = vld [vmem:[%s11] sm:$0xff]
  %v4094 = vld [vmem:[%s11 + $0x8] sm:$0xff]
  %v4095 = vld [vmem:[%s11 + $0x10] sm:$0xff]
  %v4096 = vld [vmem:[%s11 + $0x18] sm:$0xff]
  %4098 = vrot.lane.b32.xlu0 %v4088, 64
  %v4099 = vpop.permute.xlu0 %4098
  %v4100 = vsel %vm209, %v4099, 0
  %4102 = vmatprep.subr.mxu0 0.0
  %4103 = vmatpush1.msra.mxu0 %v4093
  %4104 = vmatprep.subr.mxu0 0.0
  %4105 = vmatpush1.msra.mxu0 %v4094
  %4106 = vmatprep.subr.mxu0 0.0
  %4107 = vmatpush1.msra.mxu0 %v4095
  %4108 = vmatprep.subr.mxu0 0.0
  %4109 = vmatpush1.msra.mxu0 %v4096
  %4110 = vmatprep.subr.mxu0 0.0
  %4111 = vmatpush1.msra.mxu0 0.0
  %4112 = vmatprep.subr.mxu0 0.0
  %4113 = vmatpush1.msra.mxu0 0.0
  %4114 = vmatprep.subr.mxu0 0.0
  %4115 = vmatpush1.msra.mxu0 0.0
  %4116 = vmatprep.subr.mxu0 0.0
  %4117 = vmatpush1.msra.mxu0 0.0
  %4118 = vmatprep.subr.mxu0 0.0
  %4119 = vmatpush1.msra.mxu0 0.0
  %4120 = vmatprep.subr.mxu0 0.0
  %4121 = vmatpush1.msra.mxu0 0.0
  %4122 = vmatprep.subr.mxu0 0.0
  %4123 = vmatpush1.msra.mxu0 0.0
  %4124 = vmatprep.subr.mxu0 0.0
  %4125 = vmatpush1.msra.mxu0 0.0
  %4126 = vmatprep.subr.mxu0 0.0
  %4127 = vmatpush1.msra.mxu0 0.0
  %4128 = vmatprep.subr.mxu0 0.0
  %4129 = vmatpush1.msra.mxu0 0.0
  %4130 = vmatprep.subr.mxu0 0.0
  %4131 = vmatpush1.msra.mxu0 0.0
  %4132 = vmatprep.subr.mxu0 0.0
  %4133 = vmatpush1.msra.mxu0 0.0
  %4134 = vmatprep.subr.mxu0 0.0
  %4135 = vmatpush1.msra.mxu0 0.0
  %4136 = vmatprep.subr.mxu0 0.0
  %4137 = vmatpush1.msra.mxu0 0.0
  %4138 = vmatprep.subr.mxu0 0.0
  %4139 = vmatpush1.msra.mxu0 0.0
  %4140 = vmatprep.subr.mxu0 0.0
  %4141 = vmatpush1.msra.mxu0 0.0
  %4142 = vmatprep.subr.mxu0 0.0
  %4143 = vmatpush1.msra.mxu0 0.0
  %4144 = vmatprep.subr.mxu0 0.0
  %4145 = vmatpush1.msra.mxu0 0.0
  %4146 = vmatprep.subr.mxu0 0.0
  %4147 = vmatpush1.msra.mxu0 0.0
  %4148 = vmatprep.subr.mxu0 0.0
  %4149 = vmatpush1.msra.mxu0 0.0
  %4150 = vmatprep.subr.mxu0 0.0
  %4151 = vmatpush1.msra.mxu0 0.0
  %4152 = vmatprep.subr.mxu0 0.0
  %4153 = vmatpush1.msra.mxu0 0.0
  %4154 = vmatprep.subr.mxu0 0.0
  %4155 = vmatpush1.msra.mxu0 0.0
  %4156 = vmatprep.subr.mxu0 0.0
  %4157 = vmatpush1.msra.mxu0 0.0
  %4158 = vmatprep.subr.mxu0 0.0
  %4159 = vmatpush1.msra.mxu0 0.0
  %4160 = vmatprep.subr.mxu0 0.0
  %4161 = vmatpush1.msra.mxu0 0.0
  %4162 = vmatprep.subr.mxu0 0.0
  %4163 = vmatpush1.msra.mxu0 0.0
  %4164 = vmatprep.subr.mxu0 0.0
  %4165 = vmatpush1.msra.mxu0 0.0
  %4166 = vmatprep.mubr.f32.mxu0 0.0
  %4167 = vmatmul.mubr.f32.gmra.mrb[0].mxu0 %v4100
  %v4168 = vpop.f32.mrb[0].mxu0
  %v4169 = vadd.f32 0.0, %v4168
  %v4170 = vpop.f32.mrb[0].mxu0
  %4171 = vdwg.mxu0
  %4173 = vrot.lane.b32.xlu0 %v4087, 64
  %v4174 = vpop.permute.xlu0 %4173
  %v4175 = vsel %vm209, %v4174, 0
  %4177 = vmatprep.subr.mxu0 0.0
  %4178 = vmatpush1.msra.mxu0 %v4089
  %4179 = vmatprep.subr.mxu0 0.0
  %4180 = vmatpush1.msra.mxu0 %v4090
  %4181 = vmatprep.subr.mxu0 0.0
  %4182 = vmatpush1.msra.mxu0 %v4091
  %4183 = vmatprep.subr.mxu0 0.0
  %4184 = vmatpush1.msra.mxu0 %v4092
  %4185 = vmatprep.subr.mxu0 0.0
  %4186 = vmatpush1.msra.mxu0 0.0
  %4187 = vmatprep.subr.mxu0 0.0
  %4188 = vmatpush1.msra.mxu0 0.0
  %4189 = vmatprep.subr.mxu0 0.0
  %4190 = vmatpush1.msra.mxu0 0.0
  %4191 = vmatprep.subr.mxu0 0.0
  %4192 = vmatpush1.msra.mxu0 0.0
  %4193 = vmatprep.subr.mxu0 0.0
  %4194 = vmatpush1.msra.mxu0 0.0
  %4195 = vmatprep.subr.mxu0 0.0
  %4196 = vmatpush1.msra.mxu0 0.0
  %4197 = vmatprep.subr.mxu0 0.0
  %4198 = vmatpush1.msra.mxu0 0.0
  %4199 = vmatprep.subr.mxu0 0.0
  %4200 = vmatpush1.msra.mxu0 0.0
  %4201 = vmatprep.subr.mxu0 0.0
  %4202 = vmatpush1.msra.mxu0 0.0
  %4203 = vmatprep.subr.mxu0 0.0
  %4204 = vmatpush1.msra.mxu0 0.0
  %4205 = vmatprep.subr.mxu0 0.0
  %4206 = vmatpush1.msra.mxu0 0.0
  %4207 = vmatprep.subr.mxu0 0.0
  %4208 = vmatpush1.msra.mxu0 0.0
  %4209 = vmatprep.subr.mxu0 0.0
  %4210 = vmatpush1.msra.mxu0 0.0
  %4211 = vmatprep.subr.mxu0 0.0
  %4212 = vmatpush1.msra.mxu0 0.0
  %4213 = vmatprep.subr.mxu0 0.0
  %4214 = vmatpush1.msra.mxu0 0.0
  %4215 = vmatprep.subr.mxu0 0.0
  %4216 = vmatpush1.msra.mxu0 0.0
  %4217 = vmatprep.subr.mxu0 0.0
  %4218 = vmatpush1.msra.mxu0 0.0
  %4219 = vmatprep.subr.mxu0 0.0
  %4220 = vmatpush1.msra.mxu0 0.0
  %4221 = vmatprep.subr.mxu0 0.0
  %4222 = vmatpush1.msra.mxu0 0.0
  %4223 = vmatprep.subr.mxu0 0.0
  %4224 = vmatpush1.msra.mxu0 0.0
  %4225 = vmatprep.subr.mxu0 0.0
  %4226 = vmatpush1.msra.mxu0 0.0
  %4227 = vmatprep.subr.mxu0 0.0
  %4228 = vmatpush1.msra.mxu0 0.0
  %4229 = vmatprep.subr.mxu0 0.0
  %4230 = vmatpush1.msra.mxu0 0.0
  %4231 = vmatprep.subr.mxu0 0.0
  %4232 = vmatpush1.msra.mxu0 0.0
  %4233 = vmatprep.subr.mxu0 0.0
  %4234 = vmatpush1.msra.mxu0 0.0
  %4235 = vmatprep.subr.mxu0 0.0
  %4236 = vmatpush1.msra.mxu0 0.0
  %4237 = vmatprep.subr.mxu0 0.0
  %4238 = vmatpush1.msra.mxu0 0.0
  %4239 = vmatprep.subr.mxu0 0.0
  %4240 = vmatpush1.msra.mxu0 0.0
  %4241 = vmatprep.mubr.f32.mxu0 0.0
  %4242 = vmatmul.mubr.f32.gmra.mrb[0].mxu0 %v4175
  %v4243 = vpop.f32.mrb[0].mxu0
  %v4244 = vadd.f32 %v4169, %v4243
  %v4245 = vpop.f32.mrb[0].mxu0
  %4246 = vdwg.mxu0
  %v4247 = vld [vmem:[#allocation4] sm:$0x1]
  %v4249 = vlaneseq
  %v4250 = vshrl.u32 %v4249, 7
  %v4251 = vsub.s32 0, %v4250
  %v4252 = vrot.slane %v4247, %v4251
  %v4254 = vadd.f32 %v4244, %v4252
  %v4255 = vxor.u32 %v4254, 2147483648
  %v4256 = vmul.f32 %v4255, 1.442695
  %v4257 = vpow.pop %v4256
  %v4258 = vadd.f32 %v4257, 1.0
  %v4259 = vrcp.pop %v4258
  %v4260 = vmul.f32 1.0, %v4259
  %vm4261 = vcmask 7168
  %4262 = vst.msk [vmem:[%s13] sm:$0xff] %vm4261, %v4260
  // Predicated region
  $region54: #{tpu_custom_call.1} parent=0 // pred_check
    _
  $region55: #{tpu_custom_call.1} parent=0 // pred_check_branch
    %4264 = sbr.rel (0) target = $region57
  $region56: #{tpu_custom_call.1} parent=0 // pred_region
    _
  $region57: #{tpu_custom_call.1} parent=0 // pred_fallthru
    _
  // Predicated region
  $region58: #{tpu_custom_call.1} parent=0 // pred_check
    _
  $region59: #{tpu_custom_call.1} parent=0 // pred_check_branch
    %4266 = sbr.rel (0) target = $region61
  $region60: #{tpu_custom_call.1} parent=0 // pred_region
    _
  $region61: #{tpu_custom_call.1} parent=0 // pred_fallthru
    _

</llo_original>
